<compile_context>
chip_gen: v7x
topology: tpu7x:2x2x1
jax: 0.10.0
libtpu: 0.0.40
codegen_flags: <defaults>
</compile_context>

<pallas_src>
import jax
import jax.numpy as jnp
from jax.experimental import pallas as pl
from jax.experimental.pallas import tpu as pltpu


def mychallenge_kernel(seq_ref,                         # (T*B, In)   time-major
                       wxd_ref,                         # (In, 4*HdP) decoder W_ih (gate-stacked, padded)
                       whd_ref,                         # (HdP, 4*HdP) decoder W_hh
                       bd_ref,                          # (1, 4*HdP)  decoder bias
                       wxe_ref,                         # (In, 4*He)  encoder seq-part W
                       wre_ref,                         # (HdP+He, 4*He) encoder [W_hd ; W_hh]
                       be_ref,                          # (1, 4*He)   encoder bias
                       w1t_ref, b1_ref, w2t_ref, b2_ref,  # MLP
                       o_ref):                          # (B, Out)
    TB, _ = seq_ref.shape
    HdP = whd_ref.shape[0]          # 128 (padded from 124)
    He = wre_ref.shape[1] // 4      # 32
    B = o_ref.shape[0]
    T = TB // B
    f32 = jnp.float32

    def sigmoid(x):                 # exact; tanh runs on the EUP slot
        return 0.5 * jnp.tanh(0.5 * x) + 0.5

    # ---- hoisted, non-recurrent input projections (biases folded in) ----
    seq_flat = seq_ref[...]                                               # (T*B, In)
    xproj_d = jnp.dot(seq_flat, wxd_ref[...],
                      preferred_element_type=f32) + bd_ref[...]           # (T*B, 4*HdP)
    xproj_e = jnp.dot(seq_flat, wxe_ref[...],
                      preferred_element_type=f32) + be_ref[...]           # (T*B, 4*He)

    whd = whd_ref[...]                                                    # (HdP, 4*HdP)
    wre = wre_ref[...]                                                    # (HdP+He, 4*He)

    def lstm_update(gates, c, H):
        i = sigmoid(gates[:, 0 * H:1 * H])
        f = sigmoid(gates[:, 1 * H:2 * H])
        g = jnp.tanh(gates[:, 2 * H:3 * H])
        o = sigmoid(gates[:, 3 * H:4 * H])
        c_new = f * c + i * g
        h_new = o * jnp.tanh(c_new)
        return h_new, c_new

    h_d = jnp.zeros((B, HdP), f32)
    c_d = jnp.zeros((B, HdP), f32)
    h_e = jnp.zeros((B, He), f32)
    c_e = jnp.zeros((B, He), f32)

    # ---- fully-unrolled recurrence (T static & small): 2 dots per step ----
    for t in range(T):
        xd = xproj_d[t * B:(t + 1) * B, :]                                # (B, 4*HdP)
        xe = xproj_e[t * B:(t + 1) * B, :]                                # (B, 4*He)

        # Decoder step: single stacked-gate matmul.
        gates_d = xd + jnp.dot(h_d, whd, preferred_element_type=f32)
        h_d, c_d = lstm_update(gates_d, c_d, HdP)

        # Encoder step: concatenated-K recurrent matmul ([h_d | h_e] @ W_rec).
        hx = jnp.concatenate([h_d, h_e], axis=1)                          # (B, HdP+He)
        gates_e = xe + jnp.dot(hx, wre, preferred_element_type=f32)
        h_e, c_e = lstm_update(gates_e, c_e, He)

    # ---- MLP head: Linear(32->1024) -> ReLU -> Linear(1024->Out) ----
    hidden = jnp.maximum(
        jnp.dot(h_e, w1t_ref[...], preferred_element_type=f32) + b1_ref[...], 0.0)
    out = jnp.dot(hidden, w2t_ref[...], preferred_element_type=f32) + b2_ref[...]
    o_ref[...] = out.astype(o_ref.dtype)


def _stack_gates(w, h_pad=None, in_pad=None):
    """PyTorch LSTM weight (4H, In) -> (In[_pad], 4*H[_pad]); gate-major columns, zero padded."""
    four_h, in_dim = w.shape
    h = four_h // 4
    w = w.reshape(4, h, in_dim)
    if h_pad is not None and h_pad > h:
        w = jnp.pad(w, ((0, 0), (0, h_pad - h), (0, 0)))
        h = h_pad
    w = jnp.transpose(w, (2, 0, 1)).reshape(in_dim, 4 * h)
    if in_pad is not None and in_pad > in_dim:
        w = jnp.pad(w, ((0, in_pad - in_dim), (0, 0)))
    return w


def _stack_bias(b_ih, b_hh, h_pad=None):
    """Combined LSTM bias (4H,) -> (1, 4*H[_pad]) matching _stack_gates column order."""
    b = b_ih + b_hh
    h = b.shape[0] // 4
    b = b.reshape(4, h)
    if h_pad is not None and h_pad > h:
        b = jnp.pad(b, ((0, 0), (0, h_pad - h)))
    return b.reshape(1, -1)


def mychallenge_forward(seq, params):
    """seq: (B, T, In) float32. params: PyTorch-shaped weights. Returns (B, Out)."""
    B, T, in_dim = seq.shape
    Hd = params["whh_dec"].shape[1]                      # 124
    HdP = ((Hd + 127) // 128) * 128                      # -> 128
    He = params["whh_enc"].shape[1]                      # 32
    out_dim = params["w2"].shape[0]                      # 4

    # ---- layout glue (all outside the kernel) ----
    seq_flat = jnp.transpose(seq, (1, 0, 2)).reshape(T * B, in_dim)   # time-major (T*B, In)

    wxd = _stack_gates(params["wih_dec"], h_pad=HdP)                  # (In, 4*HdP)
    whd = _stack_gates(params["whh_dec"], h_pad=HdP, in_pad=HdP)      # (HdP, 4*HdP)
    bd = _stack_bias(params["bih_dec"], params["bhh_dec"], h_pad=HdP) # (1, 4*HdP)

    wih_e = params["wih_enc"]                                         # (4*He, In+Hd)
    wxe = _stack_gates(wih_e[:, :in_dim])                             # (In, 4*He)
    whe = _stack_gates(wih_e[:, in_dim:], in_pad=HdP)                 # (HdP, 4*He)
    whhe = _stack_gates(params["whh_enc"])                            # (He, 4*He)
    wre = jnp.concatenate([whe, whhe], axis=0)                        # (HdP+He, 4*He)
    be = _stack_bias(params["bih_enc"], params["bhh_enc"])            # (1, 4*He)

    w1t = params["w1"].T                                              # (He, 1024)
    b1r = params["b1"].reshape(1, -1)                                 # (1, 1024)
    w2t = params["w2"].T                                              # (1024, Out)
    b2r = params["b2"].reshape(1, -1)                                 # (1, Out)

    args = (seq_flat, wxd, whd, bd, wxe, wre, be, w1t, b1r, w2t, b2r)
    in_specs = [pl.BlockSpec(memory_space=pltpu.MemorySpace.VMEM) for _ in args]
    out = pl.pallas_call(
        mychallenge_kernel,
        out_shape=jax.ShapeDtypeStruct((B, out_dim), jnp.float32),
        in_specs=in_specs,
        out_specs=pl.BlockSpec(memory_space=pltpu.MemorySpace.VMEM),
    )(*args)
    # TODO(synk): if batch ever grows large, add a leading batch grid axis with
    # dimension_semantics=("parallel",) to use v7x's second TensorCore.
    return out


if __name__ == "__main__":
    key = jax.random.PRNGKey(0)
    ks = jax.random.split(key, 13)

    B, T = 2, 8
    In, Hd, He, Hm, Out = 4, 124, 32, 1024, 4

    def rnd(k, shape, scale):
        return jax.random.normal(k, shape, dtype=jnp.float32) * scale

    params = dict(
        wih_dec=rnd(ks[0], (4 * Hd, In), 0.1),
        whh_dec=rnd(ks[1], (4 * Hd, Hd), 0.1),
        bih_dec=rnd(ks[2], (4 * Hd,), 0.1),
        bhh_dec=rnd(ks[3], (4 * Hd,), 0.1),
        wih_enc=rnd(ks[4], (4 * He, In + Hd), 0.1),
        whh_enc=rnd(ks[5], (4 * He, He), 0.1),
        bih_enc=rnd(ks[6], (4 * He,), 0.1),
        bhh_enc=rnd(ks[7], (4 * He,), 0.1),
        w1=rnd(ks[8], (Hm, He), 0.1),
        b1=rnd(ks[9], (Hm,), 0.1),
        w2=rnd(ks[10], (Out, Hm), 0.05),
        b2=rnd(ks[11], (Out,), 0.1),
    )
    seq = rnd(ks[12], (B, T, In), 1.0)

    fwd = jax.jit(mychallenge_forward)
    out = jax.block_until_ready(fwd(seq, params))
    assert out.shape == (B, Out), out.shape

    # ---- pure-JAX reference (PyTorch LSTM semantics) ----
    def lstm_ref(x, w_ih, w_hh, b_ih, b_hh):
        Bb, Tt, _ = x.shape
        H = w_hh.shape[1]
        h = jnp.zeros((Bb, H), jnp.float32)
        c = jnp.zeros((Bb, H), jnp.float32)
        outs = []
        for t in range(Tt):
            gates = x[:, t, :] @ w_ih.T + b_ih + h @ w_hh.T + b_hh
            i, f, g, o = jnp.split(gates, 4, axis=1)
            i = 1.0 / (1.0 + jnp.exp(-i))
            f = 1.0 / (1.0 + jnp.exp(-f))
            g = jnp.tanh(g)
            o = 1.0 / (1.0 + jnp.exp(-o))
            c = f * c + i * g
            h = o * jnp.tanh(c)
            outs.append(h)
        return jnp.stack(outs, axis=1)

    dec = lstm_ref(seq, params["wih_dec"], params["whh_dec"],
                   params["bih_dec"], params["bhh_dec"])
    cat = jnp.concatenate([seq, dec], axis=2)
    enc = lstm_ref(cat, params["wih_enc"], params["whh_enc"],
                   params["bih_enc"], params["bhh_enc"])
    last = enc[:, -1, :]
    ref = jnp.maximum(last @ params["w1"].T + params["b1"], 0.0) @ params["w2"].T \
        + params["b2"]

    err = float(jnp.max(jnp.abs(out - ref)))
    assert jnp.allclose(out, ref, atol=1e-2, rtol=1e-2), err

    print("KERNEL_OK")
</pallas_src>

<mosaic_0001>
module attributes {stable_mosaic.version = 11 : i64} {
  func.func @mychallenge_kernel(%arg0: memref<16x4xf32, #tpu.memory_space<vmem>>, %arg1: memref<4x512xf32, #tpu.memory_space<vmem>>, %arg2: memref<128x512xf32, #tpu.memory_space<vmem>>, %arg3: memref<1x512xf32, #tpu.memory_space<vmem>>, %arg4: memref<4x128xf32, #tpu.memory_space<vmem>>, %arg5: memref<160x128xf32, #tpu.memory_space<vmem>>, %arg6: memref<1x128xf32, #tpu.memory_space<vmem>>, %arg7: memref<32x1024xf32, #tpu.memory_space<vmem>>, %arg8: memref<1x1024xf32, #tpu.memory_space<vmem>>, %arg9: memref<1024x4xf32, #tpu.memory_space<vmem>>, %arg10: memref<1x4xf32, #tpu.memory_space<vmem>>, %arg11: memref<2x4xf32, #tpu.memory_space<vmem>>) attributes {dimension_semantics = [], scalar_prefetch = 0 : i64, scratch_operands = 0 : i64, tpu.core_type = #tpu.core_type<tc>} {
    %c0 = arith.constant 0 : index
    %c0_0 = arith.constant 0 : index
    %0 = vector.load %arg0[%c0, %c0_0] : memref<16x4xf32, #tpu.memory_space<vmem>>, vector<16x4xf32>
    %c0_1 = arith.constant 0 : index
    %c0_2 = arith.constant 0 : index
    %1 = vector.load %arg1[%c0_1, %c0_2] : memref<4x512xf32, #tpu.memory_space<vmem>>, vector<4x512xf32>
    %cst = arith.constant dense<0.000000e+00> : vector<16x512xf32>
    %2 = tpu.matmul %0, %1, %cst {dimension_numbers = #tpu.dot_dimension_numbers<[1], [0], [0], [1], [0, 0, 1, 1], [], []>} : vector<16x4xf32>, vector<4x512xf32>, vector<16x512xf32> -> vector<16x512xf32>
    %c0_3 = arith.constant 0 : index
    %c0_4 = arith.constant 0 : index
    %3 = vector.load %arg3[%c0_3, %c0_4] : memref<1x512xf32, #tpu.memory_space<vmem>>, vector<1x512xf32>
    %4 = vector.broadcast %3 : vector<1x512xf32> to vector<16x512xf32>
    %5 = arith.addf %2, %4 : vector<16x512xf32>
    %c0_5 = arith.constant 0 : index
    %c0_6 = arith.constant 0 : index
    %6 = vector.load %arg4[%c0_5, %c0_6] : memref<4x128xf32, #tpu.memory_space<vmem>>, vector<4x128xf32>
    %cst_7 = arith.constant dense<0.000000e+00> : vector<16x128xf32>
    %7 = tpu.matmul %0, %6, %cst_7 {dimension_numbers = #tpu.dot_dimension_numbers<[1], [0], [0], [1], [0, 0, 1, 1], [], []>} : vector<16x4xf32>, vector<4x128xf32>, vector<16x128xf32> -> vector<16x128xf32>
    %c0_8 = arith.constant 0 : index
    %c0_9 = arith.constant 0 : index
    %8 = vector.load %arg6[%c0_8, %c0_9] : memref<1x128xf32, #tpu.memory_space<vmem>>, vector<1x128xf32>
    %9 = vector.broadcast %8 : vector<1x128xf32> to vector<16x128xf32>
    %10 = arith.addf %7, %9 : vector<16x128xf32>
    %c0_10 = arith.constant 0 : index
    %c0_11 = arith.constant 0 : index
    %11 = vector.load %arg2[%c0_10, %c0_11] : memref<128x512xf32, #tpu.memory_space<vmem>>, vector<128x512xf32>
    %c0_12 = arith.constant 0 : index
    %c0_13 = arith.constant 0 : index
    %12 = vector.load %arg5[%c0_12, %c0_13] : memref<160x128xf32, #tpu.memory_space<vmem>>, vector<160x128xf32>
    %cst_14 = arith.constant 0.000000e+00 : f32
    %13 = vector.broadcast %cst_14 : f32 to vector<2x128xf32>
    %cst_15 = arith.constant 0.000000e+00 : f32
    %14 = vector.broadcast %cst_15 : f32 to vector<2x128xf32>
    %cst_16 = arith.constant 0.000000e+00 : f32
    %15 = vector.broadcast %cst_16 : f32 to vector<2x32xf32>
    %cst_17 = arith.constant 0.000000e+00 : f32
    %16 = vector.broadcast %cst_17 : f32 to vector<2x32xf32>
    %17 = vector.extract_strided_slice %5 {offsets = [0, 0], sizes = [2, 512], strides = [1, 1]} : vector<16x512xf32> to vector<2x512xf32>
    %18 = vector.extract_strided_slice %10 {offsets = [0, 0], sizes = [2, 128], strides = [1, 1]} : vector<16x128xf32> to vector<2x128xf32>
    %cst_18 = arith.constant dense<0.000000e+00> : vector<2x512xf32>
    %19 = tpu.matmul %13, %11, %cst_18 {dimension_numbers = #tpu.dot_dimension_numbers<[1], [0], [0], [1], [0, 0, 1, 1], [], []>} : vector<2x128xf32>, vector<128x512xf32>, vector<2x512xf32> -> vector<2x512xf32>
    %20 = arith.addf %17, %19 : vector<2x512xf32>
    %21 = vector.extract_strided_slice %20 {offsets = [0, 0], sizes = [2, 128], strides = [1, 1]} : vector<2x512xf32> to vector<2x128xf32>
    %cst_19 = arith.constant 5.000000e-01 : f32
    %22 = vector.broadcast %cst_19 : f32 to vector<2x128xf32>
    %23 = arith.mulf %22, %21 : vector<2x128xf32>
    %24 = math.tanh %23 : vector<2x128xf32>
    %cst_20 = arith.constant 5.000000e-01 : f32
    %25 = vector.broadcast %cst_20 : f32 to vector<2x128xf32>
    %26 = arith.mulf %25, %24 : vector<2x128xf32>
    %cst_21 = arith.constant 5.000000e-01 : f32
    %27 = vector.broadcast %cst_21 : f32 to vector<2x128xf32>
    %28 = arith.addf %26, %27 : vector<2x128xf32>
    %29 = vector.extract_strided_slice %20 {offsets = [0, 128], sizes = [2, 128], strides = [1, 1]} : vector<2x512xf32> to vector<2x128xf32>
    %cst_22 = arith.constant 5.000000e-01 : f32
    %30 = vector.broadcast %cst_22 : f32 to vector<2x128xf32>
    %31 = arith.mulf %30, %29 : vector<2x128xf32>
    %32 = math.tanh %31 : vector<2x128xf32>
    %cst_23 = arith.constant 5.000000e-01 : f32
    %33 = vector.broadcast %cst_23 : f32 to vector<2x128xf32>
    %34 = arith.mulf %33, %32 : vector<2x128xf32>
    %cst_24 = arith.constant 5.000000e-01 : f32
    %35 = vector.broadcast %cst_24 : f32 to vector<2x128xf32>
    %36 = arith.addf %34, %35 : vector<2x128xf32>
    %37 = vector.extract_strided_slice %20 {offsets = [0, 256], sizes = [2, 128], strides = [1, 1]} : vector<2x512xf32> to vector<2x128xf32>
    %38 = math.tanh %37 : vector<2x128xf32>
    %39 = vector.extract_strided_slice %20 {offsets = [0, 384], sizes = [2, 128], strides = [1, 1]} : vector<2x512xf32> to vector<2x128xf32>
    %cst_25 = arith.constant 5.000000e-01 : f32
    %40 = vector.broadcast %cst_25 : f32 to vector<2x128xf32>
    %41 = arith.mulf %40, %39 : vector<2x128xf32>
    %42 = math.tanh %41 : vector<2x128xf32>
    %cst_26 = arith.constant 5.000000e-01 : f32
    %43 = vector.broadcast %cst_26 : f32 to vector<2x128xf32>
    %44 = arith.mulf %43, %42 : vector<2x128xf32>
    %cst_27 = arith.constant 5.000000e-01 : f32
    %45 = vector.broadcast %cst_27 : f32 to vector<2x128xf32>
    %46 = arith.addf %44, %45 : vector<2x128xf32>
    %47 = arith.mulf %36, %14 : vector<2x128xf32>
    %48 = arith.mulf %28, %38 : vector<2x128xf32>
    %49 = arith.addf %47, %48 : vector<2x128xf32>
    %50 = math.tanh %49 : vector<2x128xf32>
    %51 = arith.mulf %46, %50 : vector<2x128xf32>
    %52 = tpu.concatenate %51, %15 in 1 : vector<2x128xf32>, vector<2x32xf32> -> vector<2x160xf32>
    %cst_28 = arith.constant dense<0.000000e+00> : vector<2x128xf32>
    %53 = tpu.matmul %52, %12, %cst_28 {dimension_numbers = #tpu.dot_dimension_numbers<[1], [0], [0], [1], [0, 0, 1, 1], [], []>} : vector<2x160xf32>, vector<160x128xf32>, vector<2x128xf32> -> vector<2x128xf32>
    %54 = arith.addf %18, %53 : vector<2x128xf32>
    %55 = vector.extract_strided_slice %54 {offsets = [0, 0], sizes = [2, 32], strides = [1, 1]} : vector<2x128xf32> to vector<2x32xf32>
    %cst_29 = arith.constant 5.000000e-01 : f32
    %56 = vector.broadcast %cst_29 : f32 to vector<2x32xf32>
    %57 = arith.mulf %56, %55 : vector<2x32xf32>
    %58 = math.tanh %57 : vector<2x32xf32>
    %cst_30 = arith.constant 5.000000e-01 : f32
    %59 = vector.broadcast %cst_30 : f32 to vector<2x32xf32>
    %60 = arith.mulf %59, %58 : vector<2x32xf32>
    %cst_31 = arith.constant 5.000000e-01 : f32
    %61 = vector.broadcast %cst_31 : f32 to vector<2x32xf32>
    %62 = arith.addf %60, %61 : vector<2x32xf32>
    %63 = vector.extract_strided_slice %54 {offsets = [0, 32], sizes = [2, 32], strides = [1, 1]} : vector<2x128xf32> to vector<2x32xf32>
    %cst_32 = arith.constant 5.000000e-01 : f32
    %64 = vector.broadcast %cst_32 : f32 to vector<2x32xf32>
    %65 = arith.mulf %64, %63 : vector<2x32xf32>
    %66 = math.tanh %65 : vector<2x32xf32>
    %cst_33 = arith.constant 5.000000e-01 : f32
    %67 = vector.broadcast %cst_33 : f32 to vector<2x32xf32>
    %68 = arith.mulf %67, %66 : vector<2x32xf32>
    %cst_34 = arith.constant 5.000000e-01 : f32
    %69 = vector.broadcast %cst_34 : f32 to vector<2x32xf32>
    %70 = arith.addf %68, %69 : vector<2x32xf32>
    %71 = vector.extract_strided_slice %54 {offsets = [0, 64], sizes = [2, 32], strides = [1, 1]} : vector<2x128xf32> to vector<2x32xf32>
    %72 = math.tanh %71 : vector<2x32xf32>
    %73 = vector.extract_strided_slice %54 {offsets = [0, 96], sizes = [2, 32], strides = [1, 1]} : vector<2x128xf32> to vector<2x32xf32>
    %cst_35 = arith.constant 5.000000e-01 : f32
    %74 = vector.broadcast %cst_35 : f32 to vector<2x32xf32>
    %75 = arith.mulf %74, %73 : vector<2x32xf32>
    %76 = math.tanh %75 : vector<2x32xf32>
    %cst_36 = arith.constant 5.000000e-01 : f32
    %77 = vector.broadcast %cst_36 : f32 to vector<2x32xf32>
    %78 = arith.mulf %77, %76 : vector<2x32xf32>
    %cst_37 = arith.constant 5.000000e-01 : f32
    %79 = vector.broadcast %cst_37 : f32 to vector<2x32xf32>
    %80 = arith.addf %78, %79 : vector<2x32xf32>
    %81 = arith.mulf %70, %16 : vector<2x32xf32>
    %82 = arith.mulf %62, %72 : vector<2x32xf32>
    %83 = arith.addf %81, %82 : vector<2x32xf32>
    %84 = math.tanh %83 : vector<2x32xf32>
    %85 = arith.mulf %80, %84 : vector<2x32xf32>
    %86 = vector.extract_strided_slice %5 {offsets = [2, 0], sizes = [2, 512], strides = [1, 1]} : vector<16x512xf32> to vector<2x512xf32>
    %87 = vector.extract_strided_slice %10 {offsets = [2, 0], sizes = [2, 128], strides = [1, 1]} : vector<16x128xf32> to vector<2x128xf32>
    %cst_38 = arith.constant dense<0.000000e+00> : vector<2x512xf32>
    %88 = tpu.matmul %51, %11, %cst_38 {dimension_numbers = #tpu.dot_dimension_numbers<[1], [0], [0], [1], [0, 0, 1, 1], [], []>} : vector<2x128xf32>, vector<128x512xf32>, vector<2x512xf32> -> vector<2x512xf32>
    %89 = arith.addf %86, %88 : vector<2x512xf32>
    %90 = vector.extract_strided_slice %89 {offsets = [0, 0], sizes = [2, 128], strides = [1, 1]} : vector<2x512xf32> to vector<2x128xf32>
    %cst_39 = arith.constant 5.000000e-01 : f32
    %91 = vector.broadcast %cst_39 : f32 to vector<2x128xf32>
    %92 = arith.mulf %91, %90 : vector<2x128xf32>
    %93 = math.tanh %92 : vector<2x128xf32>
    %cst_40 = arith.constant 5.000000e-01 : f32
    %94 = vector.broadcast %cst_40 : f32 to vector<2x128xf32>
    %95 = arith.mulf %94, %93 : vector<2x128xf32>
    %cst_41 = arith.constant 5.000000e-01 : f32
    %96 = vector.broadcast %cst_41 : f32 to vector<2x128xf32>
    %97 = arith.addf %95, %96 : vector<2x128xf32>
    %98 = vector.extract_strided_slice %89 {offsets = [0, 128], sizes = [2, 128], strides = [1, 1]} : vector<2x512xf32> to vector<2x128xf32>
    %cst_42 = arith.constant 5.000000e-01 : f32
    %99 = vector.broadcast %cst_42 : f32 to vector<2x128xf32>
    %100 = arith.mulf %99, %98 : vector<2x128xf32>
    %101 = math.tanh %100 : vector<2x128xf32>
    %cst_43 = arith.constant 5.000000e-01 : f32
    %102 = vector.broadcast %cst_43 : f32 to vector<2x128xf32>
    %103 = arith.mulf %102, %101 : vector<2x128xf32>
    %cst_44 = arith.constant 5.000000e-01 : f32
    %104 = vector.broadcast %cst_44 : f32 to vector<2x128xf32>
    %105 = arith.addf %103, %104 : vector<2x128xf32>
    %106 = vector.extract_strided_slice %89 {offsets = [0, 256], sizes = [2, 128], strides = [1, 1]} : vector<2x512xf32> to vector<2x128xf32>
    %107 = math.tanh %106 : vector<2x128xf32>
    %108 = vector.extract_strided_slice %89 {offsets = [0, 384], sizes = [2, 128], strides = [1, 1]} : vector<2x512xf32> to vector<2x128xf32>
    %cst_45 = arith.constant 5.000000e-01 : f32
    %109 = vector.broadcast %cst_45 : f32 to vector<2x128xf32>
    %110 = arith.mulf %109, %108 : vector<2x128xf32>
    %111 = math.tanh %110 : vector<2x128xf32>
    %cst_46 = arith.constant 5.000000e-01 : f32
    %112 = vector.broadcast %cst_46 : f32 to vector<2x128xf32>
    %113 = arith.mulf %112, %111 : vector<2x128xf32>
    %cst_47 = arith.constant 5.000000e-01 : f32
    %114 = vector.broadcast %cst_47 : f32 to vector<2x128xf32>
    %115 = arith.addf %113, %114 : vector<2x128xf32>
    %116 = arith.mulf %105, %49 : vector<2x128xf32>
    %117 = arith.mulf %97, %107 : vector<2x128xf32>
    %118 = arith.addf %116, %117 : vector<2x128xf32>
    %119 = math.tanh %118 : vector<2x128xf32>
    %120 = arith.mulf %115, %119 : vector<2x128xf32>
    %121 = tpu.concatenate %120, %85 in 1 : vector<2x128xf32>, vector<2x32xf32> -> vector<2x160xf32>
    %cst_48 = arith.constant dense<0.000000e+00> : vector<2x128xf32>
    %122 = tpu.matmul %121, %12, %cst_48 {dimension_numbers = #tpu.dot_dimension_numbers<[1], [0], [0], [1], [0, 0, 1, 1], [], []>} : vector<2x160xf32>, vector<160x128xf32>, vector<2x128xf32> -> vector<2x128xf32>
    %123 = arith.addf %87, %122 : vector<2x128xf32>
    %124 = vector.extract_strided_slice %123 {offsets = [0, 0], sizes = [2, 32], strides = [1, 1]} : vector<2x128xf32> to vector<2x32xf32>
    %cst_49 = arith.constant 5.000000e-01 : f32
    %125 = vector.broadcast %cst_49 : f32 to vector<2x32xf32>
    %126 = arith.mulf %125, %124 : vector<2x32xf32>
    %127 = math.tanh %126 : vector<2x32xf32>
    %cst_50 = arith.constant 5.000000e-01 : f32
    %128 = vector.broadcast %cst_50 : f32 to vector<2x32xf32>
    %129 = arith.mulf %128, %127 : vector<2x32xf32>
    %cst_51 = arith.constant 5.000000e-01 : f32
    %130 = vector.broadcast %cst_51 : f32 to vector<2x32xf32>
    %131 = arith.addf %129, %130 : vector<2x32xf32>
    %132 = vector.extract_strided_slice %123 {offsets = [0, 32], sizes = [2, 32], strides = [1, 1]} : vector<2x128xf32> to vector<2x32xf32>
    %cst_52 = arith.constant 5.000000e-01 : f32
    %133 = vector.broadcast %cst_52 : f32 to vector<2x32xf32>
    %134 = arith.mulf %133, %132 : vector<2x32xf32>
    %135 = math.tanh %134 : vector<2x32xf32>
    %cst_53 = arith.constant 5.000000e-01 : f32
    %136 = vector.broadcast %cst_53 : f32 to vector<2x32xf32>
    %137 = arith.mulf %136, %135 : vector<2x32xf32>
    %cst_54 = arith.constant 5.000000e-01 : f32
    %138 = vector.broadcast %cst_54 : f32 to vector<2x32xf32>
    %139 = arith.addf %137, %138 : vector<2x32xf32>
    %140 = vector.extract_strided_slice %123 {offsets = [0, 64], sizes = [2, 32], strides = [1, 1]} : vector<2x128xf32> to vector<2x32xf32>
    %141 = math.tanh %140 : vector<2x32xf32>
    %142 = vector.extract_strided_slice %123 {offsets = [0, 96], sizes = [2, 32], strides = [1, 1]} : vector<2x128xf32> to vector<2x32xf32>
    %cst_55 = arith.constant 5.000000e-01 : f32
    %143 = vector.broadcast %cst_55 : f32 to vector<2x32xf32>
    %144 = arith.mulf %143, %142 : vector<2x32xf32>
    %145 = math.tanh %144 : vector<2x32xf32>
    %cst_56 = arith.constant 5.000000e-01 : f32
    %146 = vector.broadcast %cst_56 : f32 to vector<2x32xf32>
    %147 = arith.mulf %146, %145 : vector<2x32xf32>
    %cst_57 = arith.constant 5.000000e-01 : f32
    %148 = vector.broadcast %cst_57 : f32 to vector<2x32xf32>
    %149 = arith.addf %147, %148 : vector<2x32xf32>
    %150 = arith.mulf %139, %83 : vector<2x32xf32>
    %151 = arith.mulf %131, %141 : vector<2x32xf32>
    %152 = arith.addf %150, %151 : vector<2x32xf32>
    %153 = math.tanh %152 : vector<2x32xf32>
    %154 = arith.mulf %149, %153 : vector<2x32xf32>
    %155 = vector.extract_strided_slice %5 {offsets = [4, 0], sizes = [2, 512], strides = [1, 1]} : vector<16x512xf32> to vector<2x512xf32>
    %156 = vector.extract_strided_slice %10 {offsets = [4, 0], sizes = [2, 128], strides = [1, 1]} : vector<16x128xf32> to vector<2x128xf32>
    %cst_58 = arith.constant dense<0.000000e+00> : vector<2x512xf32>
    %157 = tpu.matmul %120, %11, %cst_58 {dimension_numbers = #tpu.dot_dimension_numbers<[1], [0], [0], [1], [0, 0, 1, 1], [], []>} : vector<2x128xf32>, vector<128x512xf32>, vector<2x512xf32> -> vector<2x512xf32>
    %158 = arith.addf %155, %157 : vector<2x512xf32>
    %159 = vector.extract_strided_slice %158 {offsets = [0, 0], sizes = [2, 128], strides = [1, 1]} : vector<2x512xf32> to vector<2x128xf32>
    %cst_59 = arith.constant 5.000000e-01 : f32
    %160 = vector.broadcast %cst_59 : f32 to vector<2x128xf32>
    %161 = arith.mulf %160, %159 : vector<2x128xf32>
    %162 = math.tanh %161 : vector<2x128xf32>
    %cst_60 = arith.constant 5.000000e-01 : f32
    %163 = vector.broadcast %cst_60 : f32 to vector<2x128xf32>
    %164 = arith.mulf %163, %162 : vector<2x128xf32>
    %cst_61 = arith.constant 5.000000e-01 : f32
    %165 = vector.broadcast %cst_61 : f32 to vector<2x128xf32>
    %166 = arith.addf %164, %165 : vector<2x128xf32>
    %167 = vector.extract_strided_slice %158 {offsets = [0, 128], sizes = [2, 128], strides = [1, 1]} : vector<2x512xf32> to vector<2x128xf32>
    %cst_62 = arith.constant 5.000000e-01 : f32
    %168 = vector.broadcast %cst_62 : f32 to vector<2x128xf32>
    %169 = arith.mulf %168, %167 : vector<2x128xf32>
    %170 = math.tanh %169 : vector<2x128xf32>
    %cst_63 = arith.constant 5.000000e-01 : f32
    %171 = vector.broadcast %cst_63 : f32 to vector<2x128xf32>
    %172 = arith.mulf %171, %170 : vector<2x128xf32>
    %cst_64 = arith.constant 5.000000e-01 : f32
    %173 = vector.broadcast %cst_64 : f32 to vector<2x128xf32>
    %174 = arith.addf %172, %173 : vector<2x128xf32>
    %175 = vector.extract_strided_slice %158 {offsets = [0, 256], sizes = [2, 128], strides = [1, 1]} : vector<2x512xf32> to vector<2x128xf32>
    %176 = math.tanh %175 : vector<2x128xf32>
    %177 = vector.extract_strided_slice %158 {offsets = [0, 384], sizes = [2, 128], strides = [1, 1]} : vector<2x512xf32> to vector<2x128xf32>
    %cst_65 = arith.constant 5.000000e-01 : f32
    %178 = vector.broadcast %cst_65 : f32 to vector<2x128xf32>
    %179 = arith.mulf %178, %177 : vector<2x128xf32>
    %180 = math.tanh %179 : vector<2x128xf32>
    %cst_66 = arith.constant 5.000000e-01 : f32
    %181 = vector.broadcast %cst_66 : f32 to vector<2x128xf32>
    %182 = arith.mulf %181, %180 : vector<2x128xf32>
    %cst_67 = arith.constant 5.000000e-01 : f32
    %183 = vector.broadcast %cst_67 : f32 to vector<2x128xf32>
    %184 = arith.addf %182, %183 : vector<2x128xf32>
    %185 = arith.mulf %174, %118 : vector<2x128xf32>
    %186 = arith.mulf %166, %176 : vector<2x128xf32>
    %187 = arith.addf %185, %186 : vector<2x128xf32>
    %188 = math.tanh %187 : vector<2x128xf32>
    %189 = arith.mulf %184, %188 : vector<2x128xf32>
    %190 = tpu.concatenate %189, %154 in 1 : vector<2x128xf32>, vector<2x32xf32> -> vector<2x160xf32>
    %cst_68 = arith.constant dense<0.000000e+00> : vector<2x128xf32>
    %191 = tpu.matmul %190, %12, %cst_68 {dimension_numbers = #tpu.dot_dimension_numbers<[1], [0], [0], [1], [0, 0, 1, 1], [], []>} : vector<2x160xf32>, vector<160x128xf32>, vector<2x128xf32> -> vector<2x128xf32>
    %192 = arith.addf %156, %191 : vector<2x128xf32>
    %193 = vector.extract_strided_slice %192 {offsets = [0, 0], sizes = [2, 32], strides = [1, 1]} : vector<2x128xf32> to vector<2x32xf32>
    %cst_69 = arith.constant 5.000000e-01 : f32
    %194 = vector.broadcast %cst_69 : f32 to vector<2x32xf32>
    %195 = arith.mulf %194, %193 : vector<2x32xf32>
    %196 = math.tanh %195 : vector<2x32xf32>
    %cst_70 = arith.constant 5.000000e-01 : f32
    %197 = vector.broadcast %cst_70 : f32 to vector<2x32xf32>
    %198 = arith.mulf %197, %196 : vector<2x32xf32>
    %cst_71 = arith.constant 5.000000e-01 : f32
    %199 = vector.broadcast %cst_71 : f32 to vector<2x32xf32>
    %200 = arith.addf %198, %199 : vector<2x32xf32>
    %201 = vector.extract_strided_slice %192 {offsets = [0, 32], sizes = [2, 32], strides = [1, 1]} : vector<2x128xf32> to vector<2x32xf32>
    %cst_72 = arith.constant 5.000000e-01 : f32
    %202 = vector.broadcast %cst_72 : f32 to vector<2x32xf32>
    %203 = arith.mulf %202, %201 : vector<2x32xf32>
    %204 = math.tanh %203 : vector<2x32xf32>
    %cst_73 = arith.constant 5.000000e-01 : f32
    %205 = vector.broadcast %cst_73 : f32 to vector<2x32xf32>
    %206 = arith.mulf %205, %204 : vector<2x32xf32>
    %cst_74 = arith.constant 5.000000e-01 : f32
    %207 = vector.broadcast %cst_74 : f32 to vector<2x32xf32>
    %208 = arith.addf %206, %207 : vector<2x32xf32>
    %209 = vector.extract_strided_slice %192 {offsets = [0, 64], sizes = [2, 32], strides = [1, 1]} : vector<2x128xf32> to vector<2x32xf32>
    %210 = math.tanh %209 : vector<2x32xf32>
    %211 = vector.extract_strided_slice %192 {offsets = [0, 96], sizes = [2, 32], strides = [1, 1]} : vector<2x128xf32> to vector<2x32xf32>
    %cst_75 = arith.constant 5.000000e-01 : f32
    %212 = vector.broadcast %cst_75 : f32 to vector<2x32xf32>
    %213 = arith.mulf %212, %211 : vector<2x32xf32>
    %214 = math.tanh %213 : vector<2x32xf32>
    %cst_76 = arith.constant 5.000000e-01 : f32
    %215 = vector.broadcast %cst_76 : f32 to vector<2x32xf32>
    %216 = arith.mulf %215, %214 : vector<2x32xf32>
    %cst_77 = arith.constant 5.000000e-01 : f32
    %217 = vector.broadcast %cst_77 : f32 to vector<2x32xf32>
    %218 = arith.addf %216, %217 : vector<2x32xf32>
    %219 = arith.mulf %208, %152 : vector<2x32xf32>
    %220 = arith.mulf %200, %210 : vector<2x32xf32>
    %221 = arith.addf %219, %220 : vector<2x32xf32>
    %222 = math.tanh %221 : vector<2x32xf32>
    %223 = arith.mulf %218, %222 : vector<2x32xf32>
    %224 = vector.extract_strided_slice %5 {offsets = [6, 0], sizes = [2, 512], strides = [1, 1]} : vector<16x512xf32> to vector<2x512xf32>
    %225 = vector.extract_strided_slice %10 {offsets = [6, 0], sizes = [2, 128], strides = [1, 1]} : vector<16x128xf32> to vector<2x128xf32>
    %cst_78 = arith.constant dense<0.000000e+00> : vector<2x512xf32>
    %226 = tpu.matmul %189, %11, %cst_78 {dimension_numbers = #tpu.dot_dimension_numbers<[1], [0], [0], [1], [0, 0, 1, 1], [], []>} : vector<2x128xf32>, vector<128x512xf32>, vector<2x512xf32> -> vector<2x512xf32>
    %227 = arith.addf %224, %226 : vector<2x512xf32>
    %228 = vector.extract_strided_slice %227 {offsets = [0, 0], sizes = [2, 128], strides = [1, 1]} : vector<2x512xf32> to vector<2x128xf32>
    %cst_79 = arith.constant 5.000000e-01 : f32
    %229 = vector.broadcast %cst_79 : f32 to vector<2x128xf32>
    %230 = arith.mulf %229, %228 : vector<2x128xf32>
    %231 = math.tanh %230 : vector<2x128xf32>
    %cst_80 = arith.constant 5.000000e-01 : f32
    %232 = vector.broadcast %cst_80 : f32 to vector<2x128xf32>
    %233 = arith.mulf %232, %231 : vector<2x128xf32>
    %cst_81 = arith.constant 5.000000e-01 : f32
    %234 = vector.broadcast %cst_81 : f32 to vector<2x128xf32>
    %235 = arith.addf %233, %234 : vector<2x128xf32>
    %236 = vector.extract_strided_slice %227 {offsets = [0, 128], sizes = [2, 128], strides = [1, 1]} : vector<2x512xf32> to vector<2x128xf32>
    %cst_82 = arith.constant 5.000000e-01 : f32
    %237 = vector.broadcast %cst_82 : f32 to vector<2x128xf32>
    %238 = arith.mulf %237, %236 : vector<2x128xf32>
    %239 = math.tanh %238 : vector<2x128xf32>
    %cst_83 = arith.constant 5.000000e-01 : f32
    %240 = vector.broadcast %cst_83 : f32 to vector<2x128xf32>
    %241 = arith.mulf %240, %239 : vector<2x128xf32>
    %cst_84 = arith.constant 5.000000e-01 : f32
    %242 = vector.broadcast %cst_84 : f32 to vector<2x128xf32>
    %243 = arith.addf %241, %242 : vector<2x128xf32>
    %244 = vector.extract_strided_slice %227 {offsets = [0, 256], sizes = [2, 128], strides = [1, 1]} : vector<2x512xf32> to vector<2x128xf32>
    %245 = math.tanh %244 : vector<2x128xf32>
    %246 = vector.extract_strided_slice %227 {offsets = [0, 384], sizes = [2, 128], strides = [1, 1]} : vector<2x512xf32> to vector<2x128xf32>
    %cst_85 = arith.constant 5.000000e-01 : f32
    %247 = vector.broadcast %cst_85 : f32 to vector<2x128xf32>
    %248 = arith.mulf %247, %246 : vector<2x128xf32>
    %249 = math.tanh %248 : vector<2x128xf32>
    %cst_86 = arith.constant 5.000000e-01 : f32
    %250 = vector.broadcast %cst_86 : f32 to vector<2x128xf32>
    %251 = arith.mulf %250, %249 : vector<2x128xf32>
    %cst_87 = arith.constant 5.000000e-01 : f32
    %252 = vector.broadcast %cst_87 : f32 to vector<2x128xf32>
    %253 = arith.addf %251, %252 : vector<2x128xf32>
    %254 = arith.mulf %243, %187 : vector<2x128xf32>
    %255 = arith.mulf %235, %245 : vector<2x128xf32>
    %256 = arith.addf %254, %255 : vector<2x128xf32>
    %257 = math.tanh %256 : vector<2x128xf32>
    %258 = arith.mulf %253, %257 : vector<2x128xf32>
    %259 = tpu.concatenate %258, %223 in 1 : vector<2x128xf32>, vector<2x32xf32> -> vector<2x160xf32>
    %cst_88 = arith.constant dense<0.000000e+00> : vector<2x128xf32>
    %260 = tpu.matmul %259, %12, %cst_88 {dimension_numbers = #tpu.dot_dimension_numbers<[1], [0], [0], [1], [0, 0, 1, 1], [], []>} : vector<2x160xf32>, vector<160x128xf32>, vector<2x128xf32> -> vector<2x128xf32>
    %261 = arith.addf %225, %260 : vector<2x128xf32>
    %262 = vector.extract_strided_slice %261 {offsets = [0, 0], sizes = [2, 32], strides = [1, 1]} : vector<2x128xf32> to vector<2x32xf32>
    %cst_89 = arith.constant 5.000000e-01 : f32
    %263 = vector.broadcast %cst_89 : f32 to vector<2x32xf32>
    %264 = arith.mulf %263, %262 : vector<2x32xf32>
    %265 = math.tanh %264 : vector<2x32xf32>
    %cst_90 = arith.constant 5.000000e-01 : f32
    %266 = vector.broadcast %cst_90 : f32 to vector<2x32xf32>
    %267 = arith.mulf %266, %265 : vector<2x32xf32>
    %cst_91 = arith.constant 5.000000e-01 : f32
    %268 = vector.broadcast %cst_91 : f32 to vector<2x32xf32>
    %269 = arith.addf %267, %268 : vector<2x32xf32>
    %270 = vector.extract_strided_slice %261 {offsets = [0, 32], sizes = [2, 32], strides = [1, 1]} : vector<2x128xf32> to vector<2x32xf32>
    %cst_92 = arith.constant 5.000000e-01 : f32
    %271 = vector.broadcast %cst_92 : f32 to vector<2x32xf32>
    %272 = arith.mulf %271, %270 : vector<2x32xf32>
    %273 = math.tanh %272 : vector<2x32xf32>
    %cst_93 = arith.constant 5.000000e-01 : f32
    %274 = vector.broadcast %cst_93 : f32 to vector<2x32xf32>
    %275 = arith.mulf %274, %273 : vector<2x32xf32>
    %cst_94 = arith.constant 5.000000e-01 : f32
    %276 = vector.broadcast %cst_94 : f32 to vector<2x32xf32>
    %277 = arith.addf %275, %276 : vector<2x32xf32>
    %278 = vector.extract_strided_slice %261 {offsets = [0, 64], sizes = [2, 32], strides = [1, 1]} : vector<2x128xf32> to vector<2x32xf32>
    %279 = math.tanh %278 : vector<2x32xf32>
    %280 = vector.extract_strided_slice %261 {offsets = [0, 96], sizes = [2, 32], strides = [1, 1]} : vector<2x128xf32> to vector<2x32xf32>
    %cst_95 = arith.constant 5.000000e-01 : f32
    %281 = vector.broadcast %cst_95 : f32 to vector<2x32xf32>
    %282 = arith.mulf %281, %280 : vector<2x32xf32>
    %283 = math.tanh %282 : vector<2x32xf32>
    %cst_96 = arith.constant 5.000000e-01 : f32
    %284 = vector.broadcast %cst_96 : f32 to vector<2x32xf32>
    %285 = arith.mulf %284, %283 : vector<2x32xf32>
    %cst_97 = arith.constant 5.000000e-01 : f32
    %286 = vector.broadcast %cst_97 : f32 to vector<2x32xf32>
    %287 = arith.addf %285, %286 : vector<2x32xf32>
    %288 = arith.mulf %277, %221 : vector<2x32xf32>
    %289 = arith.mulf %269, %279 : vector<2x32xf32>
    %290 = arith.addf %288, %289 : vector<2x32xf32>
    %291 = math.tanh %290 : vector<2x32xf32>
    %292 = arith.mulf %287, %291 : vector<2x32xf32>
    %293 = vector.extract_strided_slice %5 {offsets = [8, 0], sizes = [2, 512], strides = [1, 1]} : vector<16x512xf32> to vector<2x512xf32>
    %294 = vector.extract_strided_slice %10 {offsets = [8, 0], sizes = [2, 128], strides = [1, 1]} : vector<16x128xf32> to vector<2x128xf32>
    %cst_98 = arith.constant dense<0.000000e+00> : vector<2x512xf32>
    %295 = tpu.matmul %258, %11, %cst_98 {dimension_numbers = #tpu.dot_dimension_numbers<[1], [0], [0], [1], [0, 0, 1, 1], [], []>} : vector<2x128xf32>, vector<128x512xf32>, vector<2x512xf32> -> vector<2x512xf32>
    %296 = arith.addf %293, %295 : vector<2x512xf32>
    %297 = vector.extract_strided_slice %296 {offsets = [0, 0], sizes = [2, 128], strides = [1, 1]} : vector<2x512xf32> to vector<2x128xf32>
    %cst_99 = arith.constant 5.000000e-01 : f32
    %298 = vector.broadcast %cst_99 : f32 to vector<2x128xf32>
    %299 = arith.mulf %298, %297 : vector<2x128xf32>
    %300 = math.tanh %299 : vector<2x128xf32>
    %cst_100 = arith.constant 5.000000e-01 : f32
    %301 = vector.broadcast %cst_100 : f32 to vector<2x128xf32>
    %302 = arith.mulf %301, %300 : vector<2x128xf32>
    %cst_101 = arith.constant 5.000000e-01 : f32
    %303 = vector.broadcast %cst_101 : f32 to vector<2x128xf32>
    %304 = arith.addf %302, %303 : vector<2x128xf32>
    %305 = vector.extract_strided_slice %296 {offsets = [0, 128], sizes = [2, 128], strides = [1, 1]} : vector<2x512xf32> to vector<2x128xf32>
    %cst_102 = arith.constant 5.000000e-01 : f32
    %306 = vector.broadcast %cst_102 : f32 to vector<2x128xf32>
    %307 = arith.mulf %306, %305 : vector<2x128xf32>
    %308 = math.tanh %307 : vector<2x128xf32>
    %cst_103 = arith.constant 5.000000e-01 : f32
    %309 = vector.broadcast %cst_103 : f32 to vector<2x128xf32>
    %310 = arith.mulf %309, %308 : vector<2x128xf32>
    %cst_104 = arith.constant 5.000000e-01 : f32
    %311 = vector.broadcast %cst_104 : f32 to vector<2x128xf32>
    %312 = arith.addf %310, %311 : vector<2x128xf32>
    %313 = vector.extract_strided_slice %296 {offsets = [0, 256], sizes = [2, 128], strides = [1, 1]} : vector<2x512xf32> to vector<2x128xf32>
    %314 = math.tanh %313 : vector<2x128xf32>
    %315 = vector.extract_strided_slice %296 {offsets = [0, 384], sizes = [2, 128], strides = [1, 1]} : vector<2x512xf32> to vector<2x128xf32>
    %cst_105 = arith.constant 5.000000e-01 : f32
    %316 = vector.broadcast %cst_105 : f32 to vector<2x128xf32>
    %317 = arith.mulf %316, %315 : vector<2x128xf32>
    %318 = math.tanh %317 : vector<2x128xf32>
    %cst_106 = arith.constant 5.000000e-01 : f32
    %319 = vector.broadcast %cst_106 : f32 to vector<2x128xf32>
    %320 = arith.mulf %319, %318 : vector<2x128xf32>
    %cst_107 = arith.constant 5.000000e-01 : f32
    %321 = vector.broadcast %cst_107 : f32 to vector<2x128xf32>
    %322 = arith.addf %320, %321 : vector<2x128xf32>
    %323 = arith.mulf %312, %256 : vector<2x128xf32>
    %324 = arith.mulf %304, %314 : vector<2x128xf32>
    %325 = arith.addf %323, %324 : vector<2x128xf32>
    %326 = math.tanh %325 : vector<2x128xf32>
    %327 = arith.mulf %322, %326 : vector<2x128xf32>
    %328 = tpu.concatenate %327, %292 in 1 : vector<2x128xf32>, vector<2x32xf32> -> vector<2x160xf32>
    %cst_108 = arith.constant dense<0.000000e+00> : vector<2x128xf32>
    %329 = tpu.matmul %328, %12, %cst_108 {dimension_numbers = #tpu.dot_dimension_numbers<[1], [0], [0], [1], [0, 0, 1, 1], [], []>} : vector<2x160xf32>, vector<160x128xf32>, vector<2x128xf32> -> vector<2x128xf32>
    %330 = arith.addf %294, %329 : vector<2x128xf32>
    %331 = vector.extract_strided_slice %330 {offsets = [0, 0], sizes = [2, 32], strides = [1, 1]} : vector<2x128xf32> to vector<2x32xf32>
    %cst_109 = arith.constant 5.000000e-01 : f32
    %332 = vector.broadcast %cst_109 : f32 to vector<2x32xf32>
    %333 = arith.mulf %332, %331 : vector<2x32xf32>
    %334 = math.tanh %333 : vector<2x32xf32>
    %cst_110 = arith.constant 5.000000e-01 : f32
    %335 = vector.broadcast %cst_110 : f32 to vector<2x32xf32>
    %336 = arith.mulf %335, %334 : vector<2x32xf32>
    %cst_111 = arith.constant 5.000000e-01 : f32
    %337 = vector.broadcast %cst_111 : f32 to vector<2x32xf32>
    %338 = arith.addf %336, %337 : vector<2x32xf32>
    %339 = vector.extract_strided_slice %330 {offsets = [0, 32], sizes = [2, 32], strides = [1, 1]} : vector<2x128xf32> to vector<2x32xf32>
    %cst_112 = arith.constant 5.000000e-01 : f32
    %340 = vector.broadcast %cst_112 : f32 to vector<2x32xf32>
    %341 = arith.mulf %340, %339 : vector<2x32xf32>
    %342 = math.tanh %341 : vector<2x32xf32>
    %cst_113 = arith.constant 5.000000e-01 : f32
    %343 = vector.broadcast %cst_113 : f32 to vector<2x32xf32>
    %344 = arith.mulf %343, %342 : vector<2x32xf32>
    %cst_114 = arith.constant 5.000000e-01 : f32
    %345 = vector.broadcast %cst_114 : f32 to vector<2x32xf32>
    %346 = arith.addf %344, %345 : vector<2x32xf32>
    %347 = vector.extract_strided_slice %330 {offsets = [0, 64], sizes = [2, 32], strides = [1, 1]} : vector<2x128xf32> to vector<2x32xf32>
    %348 = math.tanh %347 : vector<2x32xf32>
    %349 = vector.extract_strided_slice %330 {offsets = [0, 96], sizes = [2, 32], strides = [1, 1]} : vector<2x128xf32> to vector<2x32xf32>
    %cst_115 = arith.constant 5.000000e-01 : f32
    %350 = vector.broadcast %cst_115 : f32 to vector<2x32xf32>
    %351 = arith.mulf %350, %349 : vector<2x32xf32>
    %352 = math.tanh %351 : vector<2x32xf32>
    %cst_116 = arith.constant 5.000000e-01 : f32
    %353 = vector.broadcast %cst_116 : f32 to vector<2x32xf32>
    %354 = arith.mulf %353, %352 : vector<2x32xf32>
    %cst_117 = arith.constant 5.000000e-01 : f32
    %355 = vector.broadcast %cst_117 : f32 to vector<2x32xf32>
    %356 = arith.addf %354, %355 : vector<2x32xf32>
    %357 = arith.mulf %346, %290 : vector<2x32xf32>
    %358 = arith.mulf %338, %348 : vector<2x32xf32>
    %359 = arith.addf %357, %358 : vector<2x32xf32>
    %360 = math.tanh %359 : vector<2x32xf32>
    %361 = arith.mulf %356, %360 : vector<2x32xf32>
    %362 = vector.extract_strided_slice %5 {offsets = [10, 0], sizes = [2, 512], strides = [1, 1]} : vector<16x512xf32> to vector<2x512xf32>
    %363 = vector.extract_strided_slice %10 {offsets = [10, 0], sizes = [2, 128], strides = [1, 1]} : vector<16x128xf32> to vector<2x128xf32>
    %cst_118 = arith.constant dense<0.000000e+00> : vector<2x512xf32>
    %364 = tpu.matmul %327, %11, %cst_118 {dimension_numbers = #tpu.dot_dimension_numbers<[1], [0], [0], [1], [0, 0, 1, 1], [], []>} : vector<2x128xf32>, vector<128x512xf32>, vector<2x512xf32> -> vector<2x512xf32>
    %365 = arith.addf %362, %364 : vector<2x512xf32>
    %366 = vector.extract_strided_slice %365 {offsets = [0, 0], sizes = [2, 128], strides = [1, 1]} : vector<2x512xf32> to vector<2x128xf32>
    %cst_119 = arith.constant 5.000000e-01 : f32
    %367 = vector.broadcast %cst_119 : f32 to vector<2x128xf32>
    %368 = arith.mulf %367, %366 : vector<2x128xf32>
    %369 = math.tanh %368 : vector<2x128xf32>
    %cst_120 = arith.constant 5.000000e-01 : f32
    %370 = vector.broadcast %cst_120 : f32 to vector<2x128xf32>
    %371 = arith.mulf %370, %369 : vector<2x128xf32>
    %cst_121 = arith.constant 5.000000e-01 : f32
    %372 = vector.broadcast %cst_121 : f32 to vector<2x128xf32>
    %373 = arith.addf %371, %372 : vector<2x128xf32>
    %374 = vector.extract_strided_slice %365 {offsets = [0, 128], sizes = [2, 128], strides = [1, 1]} : vector<2x512xf32> to vector<2x128xf32>
    %cst_122 = arith.constant 5.000000e-01 : f32
    %375 = vector.broadcast %cst_122 : f32 to vector<2x128xf32>
    %376 = arith.mulf %375, %374 : vector<2x128xf32>
    %377 = math.tanh %376 : vector<2x128xf32>
    %cst_123 = arith.constant 5.000000e-01 : f32
    %378 = vector.broadcast %cst_123 : f32 to vector<2x128xf32>
    %379 = arith.mulf %378, %377 : vector<2x128xf32>
    %cst_124 = arith.constant 5.000000e-01 : f32
    %380 = vector.broadcast %cst_124 : f32 to vector<2x128xf32>
    %381 = arith.addf %379, %380 : vector<2x128xf32>
    %382 = vector.extract_strided_slice %365 {offsets = [0, 256], sizes = [2, 128], strides = [1, 1]} : vector<2x512xf32> to vector<2x128xf32>
    %383 = math.tanh %382 : vector<2x128xf32>
    %384 = vector.extract_strided_slice %365 {offsets = [0, 384], sizes = [2, 128], strides = [1, 1]} : vector<2x512xf32> to vector<2x128xf32>
    %cst_125 = arith.constant 5.000000e-01 : f32
    %385 = vector.broadcast %cst_125 : f32 to vector<2x128xf32>
    %386 = arith.mulf %385, %384 : vector<2x128xf32>
    %387 = math.tanh %386 : vector<2x128xf32>
    %cst_126 = arith.constant 5.000000e-01 : f32
    %388 = vector.broadcast %cst_126 : f32 to vector<2x128xf32>
    %389 = arith.mulf %388, %387 : vector<2x128xf32>
    %cst_127 = arith.constant 5.000000e-01 : f32
    %390 = vector.broadcast %cst_127 : f32 to vector<2x128xf32>
    %391 = arith.addf %389, %390 : vector<2x128xf32>
    %392 = arith.mulf %381, %325 : vector<2x128xf32>
    %393 = arith.mulf %373, %383 : vector<2x128xf32>
    %394 = arith.addf %392, %393 : vector<2x128xf32>
    %395 = math.tanh %394 : vector<2x128xf32>
    %396 = arith.mulf %391, %395 : vector<2x128xf32>
    %397 = tpu.concatenate %396, %361 in 1 : vector<2x128xf32>, vector<2x32xf32> -> vector<2x160xf32>
    %cst_128 = arith.constant dense<0.000000e+00> : vector<2x128xf32>
    %398 = tpu.matmul %397, %12, %cst_128 {dimension_numbers = #tpu.dot_dimension_numbers<[1], [0], [0], [1], [0, 0, 1, 1], [], []>} : vector<2x160xf32>, vector<160x128xf32>, vector<2x128xf32> -> vector<2x128xf32>
    %399 = arith.addf %363, %398 : vector<2x128xf32>
    %400 = vector.extract_strided_slice %399 {offsets = [0, 0], sizes = [2, 32], strides = [1, 1]} : vector<2x128xf32> to vector<2x32xf32>
    %cst_129 = arith.constant 5.000000e-01 : f32
    %401 = vector.broadcast %cst_129 : f32 to vector<2x32xf32>
    %402 = arith.mulf %401, %400 : vector<2x32xf32>
    %403 = math.tanh %402 : vector<2x32xf32>
    %cst_130 = arith.constant 5.000000e-01 : f32
    %404 = vector.broadcast %cst_130 : f32 to vector<2x32xf32>
    %405 = arith.mulf %404, %403 : vector<2x32xf32>
    %cst_131 = arith.constant 5.000000e-01 : f32
    %406 = vector.broadcast %cst_131 : f32 to vector<2x32xf32>
    %407 = arith.addf %405, %406 : vector<2x32xf32>
    %408 = vector.extract_strided_slice %399 {offsets = [0, 32], sizes = [2, 32], strides = [1, 1]} : vector<2x128xf32> to vector<2x32xf32>
    %cst_132 = arith.constant 5.000000e-01 : f32
    %409 = vector.broadcast %cst_132 : f32 to vector<2x32xf32>
    %410 = arith.mulf %409, %408 : vector<2x32xf32>
    %411 = math.tanh %410 : vector<2x32xf32>
    %cst_133 = arith.constant 5.000000e-01 : f32
    %412 = vector.broadcast %cst_133 : f32 to vector<2x32xf32>
    %413 = arith.mulf %412, %411 : vector<2x32xf32>
    %cst_134 = arith.constant 5.000000e-01 : f32
    %414 = vector.broadcast %cst_134 : f32 to vector<2x32xf32>
    %415 = arith.addf %413, %414 : vector<2x32xf32>
    %416 = vector.extract_strided_slice %399 {offsets = [0, 64], sizes = [2, 32], strides = [1, 1]} : vector<2x128xf32> to vector<2x32xf32>
    %417 = math.tanh %416 : vector<2x32xf32>
    %418 = vector.extract_strided_slice %399 {offsets = [0, 96], sizes = [2, 32], strides = [1, 1]} : vector<2x128xf32> to vector<2x32xf32>
    %cst_135 = arith.constant 5.000000e-01 : f32
    %419 = vector.broadcast %cst_135 : f32 to vector<2x32xf32>
    %420 = arith.mulf %419, %418 : vector<2x32xf32>
    %421 = math.tanh %420 : vector<2x32xf32>
    %cst_136 = arith.constant 5.000000e-01 : f32
    %422 = vector.broadcast %cst_136 : f32 to vector<2x32xf32>
    %423 = arith.mulf %422, %421 : vector<2x32xf32>
    %cst_137 = arith.constant 5.000000e-01 : f32
    %424 = vector.broadcast %cst_137 : f32 to vector<2x32xf32>
    %425 = arith.addf %423, %424 : vector<2x32xf32>
    %426 = arith.mulf %415, %359 : vector<2x32xf32>
    %427 = arith.mulf %407, %417 : vector<2x32xf32>
    %428 = arith.addf %426, %427 : vector<2x32xf32>
    %429 = math.tanh %428 : vector<2x32xf32>
    %430 = arith.mulf %425, %429 : vector<2x32xf32>
    %431 = vector.extract_strided_slice %5 {offsets = [12, 0], sizes = [2, 512], strides = [1, 1]} : vector<16x512xf32> to vector<2x512xf32>
    %432 = vector.extract_strided_slice %10 {offsets = [12, 0], sizes = [2, 128], strides = [1, 1]} : vector<16x128xf32> to vector<2x128xf32>
    %cst_138 = arith.constant dense<0.000000e+00> : vector<2x512xf32>
    %433 = tpu.matmul %396, %11, %cst_138 {dimension_numbers = #tpu.dot_dimension_numbers<[1], [0], [0], [1], [0, 0, 1, 1], [], []>} : vector<2x128xf32>, vector<128x512xf32>, vector<2x512xf32> -> vector<2x512xf32>
    %434 = arith.addf %431, %433 : vector<2x512xf32>
    %435 = vector.extract_strided_slice %434 {offsets = [0, 0], sizes = [2, 128], strides = [1, 1]} : vector<2x512xf32> to vector<2x128xf32>
    %cst_139 = arith.constant 5.000000e-01 : f32
    %436 = vector.broadcast %cst_139 : f32 to vector<2x128xf32>
    %437 = arith.mulf %436, %435 : vector<2x128xf32>
    %438 = math.tanh %437 : vector<2x128xf32>
    %cst_140 = arith.constant 5.000000e-01 : f32
    %439 = vector.broadcast %cst_140 : f32 to vector<2x128xf32>
    %440 = arith.mulf %439, %438 : vector<2x128xf32>
    %cst_141 = arith.constant 5.000000e-01 : f32
    %441 = vector.broadcast %cst_141 : f32 to vector<2x128xf32>
    %442 = arith.addf %440, %441 : vector<2x128xf32>
    %443 = vector.extract_strided_slice %434 {offsets = [0, 128], sizes = [2, 128], strides = [1, 1]} : vector<2x512xf32> to vector<2x128xf32>
    %cst_142 = arith.constant 5.000000e-01 : f32
    %444 = vector.broadcast %cst_142 : f32 to vector<2x128xf32>
    %445 = arith.mulf %444, %443 : vector<2x128xf32>
    %446 = math.tanh %445 : vector<2x128xf32>
    %cst_143 = arith.constant 5.000000e-01 : f32
    %447 = vector.broadcast %cst_143 : f32 to vector<2x128xf32>
    %448 = arith.mulf %447, %446 : vector<2x128xf32>
    %cst_144 = arith.constant 5.000000e-01 : f32
    %449 = vector.broadcast %cst_144 : f32 to vector<2x128xf32>
    %450 = arith.addf %448, %449 : vector<2x128xf32>
    %451 = vector.extract_strided_slice %434 {offsets = [0, 256], sizes = [2, 128], strides = [1, 1]} : vector<2x512xf32> to vector<2x128xf32>
    %452 = math.tanh %451 : vector<2x128xf32>
    %453 = vector.extract_strided_slice %434 {offsets = [0, 384], sizes = [2, 128], strides = [1, 1]} : vector<2x512xf32> to vector<2x128xf32>
    %cst_145 = arith.constant 5.000000e-01 : f32
    %454 = vector.broadcast %cst_145 : f32 to vector<2x128xf32>
    %455 = arith.mulf %454, %453 : vector<2x128xf32>
    %456 = math.tanh %455 : vector<2x128xf32>
    %cst_146 = arith.constant 5.000000e-01 : f32
    %457 = vector.broadcast %cst_146 : f32 to vector<2x128xf32>
    %458 = arith.mulf %457, %456 : vector<2x128xf32>
    %cst_147 = arith.constant 5.000000e-01 : f32
    %459 = vector.broadcast %cst_147 : f32 to vector<2x128xf32>
    %460 = arith.addf %458, %459 : vector<2x128xf32>
    %461 = arith.mulf %450, %394 : vector<2x128xf32>
    %462 = arith.mulf %442, %452 : vector<2x128xf32>
    %463 = arith.addf %461, %462 : vector<2x128xf32>
    %464 = math.tanh %463 : vector<2x128xf32>
    %465 = arith.mulf %460, %464 : vector<2x128xf32>
    %466 = tpu.concatenate %465, %430 in 1 : vector<2x128xf32>, vector<2x32xf32> -> vector<2x160xf32>
    %cst_148 = arith.constant dense<0.000000e+00> : vector<2x128xf32>
    %467 = tpu.matmul %466, %12, %cst_148 {dimension_numbers = #tpu.dot_dimension_numbers<[1], [0], [0], [1], [0, 0, 1, 1], [], []>} : vector<2x160xf32>, vector<160x128xf32>, vector<2x128xf32> -> vector<2x128xf32>
    %468 = arith.addf %432, %467 : vector<2x128xf32>
    %469 = vector.extract_strided_slice %468 {offsets = [0, 0], sizes = [2, 32], strides = [1, 1]} : vector<2x128xf32> to vector<2x32xf32>
    %cst_149 = arith.constant 5.000000e-01 : f32
    %470 = vector.broadcast %cst_149 : f32 to vector<2x32xf32>
    %471 = arith.mulf %470, %469 : vector<2x32xf32>
    %472 = math.tanh %471 : vector<2x32xf32>
    %cst_150 = arith.constant 5.000000e-01 : f32
    %473 = vector.broadcast %cst_150 : f32 to vector<2x32xf32>
    %474 = arith.mulf %473, %472 : vector<2x32xf32>
    %cst_151 = arith.constant 5.000000e-01 : f32
    %475 = vector.broadcast %cst_151 : f32 to vector<2x32xf32>
    %476 = arith.addf %474, %475 : vector<2x32xf32>
    %477 = vector.extract_strided_slice %468 {offsets = [0, 32], sizes = [2, 32], strides = [1, 1]} : vector<2x128xf32> to vector<2x32xf32>
    %cst_152 = arith.constant 5.000000e-01 : f32
    %478 = vector.broadcast %cst_152 : f32 to vector<2x32xf32>
    %479 = arith.mulf %478, %477 : vector<2x32xf32>
    %480 = math.tanh %479 : vector<2x32xf32>
    %cst_153 = arith.constant 5.000000e-01 : f32
    %481 = vector.broadcast %cst_153 : f32 to vector<2x32xf32>
    %482 = arith.mulf %481, %480 : vector<2x32xf32>
    %cst_154 = arith.constant 5.000000e-01 : f32
    %483 = vector.broadcast %cst_154 : f32 to vector<2x32xf32>
    %484 = arith.addf %482, %483 : vector<2x32xf32>
    %485 = vector.extract_strided_slice %468 {offsets = [0, 64], sizes = [2, 32], strides = [1, 1]} : vector<2x128xf32> to vector<2x32xf32>
    %486 = math.tanh %485 : vector<2x32xf32>
    %487 = vector.extract_strided_slice %468 {offsets = [0, 96], sizes = [2, 32], strides = [1, 1]} : vector<2x128xf32> to vector<2x32xf32>
    %cst_155 = arith.constant 5.000000e-01 : f32
    %488 = vector.broadcast %cst_155 : f32 to vector<2x32xf32>
    %489 = arith.mulf %488, %487 : vector<2x32xf32>
    %490 = math.tanh %489 : vector<2x32xf32>
    %cst_156 = arith.constant 5.000000e-01 : f32
    %491 = vector.broadcast %cst_156 : f32 to vector<2x32xf32>
    %492 = arith.mulf %491, %490 : vector<2x32xf32>
    %cst_157 = arith.constant 5.000000e-01 : f32
    %493 = vector.broadcast %cst_157 : f32 to vector<2x32xf32>
    %494 = arith.addf %492, %493 : vector<2x32xf32>
    %495 = arith.mulf %484, %428 : vector<2x32xf32>
    %496 = arith.mulf %476, %486 : vector<2x32xf32>
    %497 = arith.addf %495, %496 : vector<2x32xf32>
    %498 = math.tanh %497 : vector<2x32xf32>
    %499 = arith.mulf %494, %498 : vector<2x32xf32>
    %500 = vector.extract_strided_slice %5 {offsets = [14, 0], sizes = [2, 512], strides = [1, 1]} : vector<16x512xf32> to vector<2x512xf32>
    %501 = vector.extract_strided_slice %10 {offsets = [14, 0], sizes = [2, 128], strides = [1, 1]} : vector<16x128xf32> to vector<2x128xf32>
    %cst_158 = arith.constant dense<0.000000e+00> : vector<2x512xf32>
    %502 = tpu.matmul %465, %11, %cst_158 {dimension_numbers = #tpu.dot_dimension_numbers<[1], [0], [0], [1], [0, 0, 1, 1], [], []>} : vector<2x128xf32>, vector<128x512xf32>, vector<2x512xf32> -> vector<2x512xf32>
    %503 = arith.addf %500, %502 : vector<2x512xf32>
    %504 = vector.extract_strided_slice %503 {offsets = [0, 0], sizes = [2, 128], strides = [1, 1]} : vector<2x512xf32> to vector<2x128xf32>
    %cst_159 = arith.constant 5.000000e-01 : f32
    %505 = vector.broadcast %cst_159 : f32 to vector<2x128xf32>
    %506 = arith.mulf %505, %504 : vector<2x128xf32>
    %507 = math.tanh %506 : vector<2x128xf32>
    %cst_160 = arith.constant 5.000000e-01 : f32
    %508 = vector.broadcast %cst_160 : f32 to vector<2x128xf32>
    %509 = arith.mulf %508, %507 : vector<2x128xf32>
    %cst_161 = arith.constant 5.000000e-01 : f32
    %510 = vector.broadcast %cst_161 : f32 to vector<2x128xf32>
    %511 = arith.addf %509, %510 : vector<2x128xf32>
    %512 = vector.extract_strided_slice %503 {offsets = [0, 128], sizes = [2, 128], strides = [1, 1]} : vector<2x512xf32> to vector<2x128xf32>
    %cst_162 = arith.constant 5.000000e-01 : f32
    %513 = vector.broadcast %cst_162 : f32 to vector<2x128xf32>
    %514 = arith.mulf %513, %512 : vector<2x128xf32>
    %515 = math.tanh %514 : vector<2x128xf32>
    %cst_163 = arith.constant 5.000000e-01 : f32
    %516 = vector.broadcast %cst_163 : f32 to vector<2x128xf32>
    %517 = arith.mulf %516, %515 : vector<2x128xf32>
    %cst_164 = arith.constant 5.000000e-01 : f32
    %518 = vector.broadcast %cst_164 : f32 to vector<2x128xf32>
    %519 = arith.addf %517, %518 : vector<2x128xf32>
    %520 = vector.extract_strided_slice %503 {offsets = [0, 256], sizes = [2, 128], strides = [1, 1]} : vector<2x512xf32> to vector<2x128xf32>
    %521 = math.tanh %520 : vector<2x128xf32>
    %522 = vector.extract_strided_slice %503 {offsets = [0, 384], sizes = [2, 128], strides = [1, 1]} : vector<2x512xf32> to vector<2x128xf32>
    %cst_165 = arith.constant 5.000000e-01 : f32
    %523 = vector.broadcast %cst_165 : f32 to vector<2x128xf32>
    %524 = arith.mulf %523, %522 : vector<2x128xf32>
    %525 = math.tanh %524 : vector<2x128xf32>
    %cst_166 = arith.constant 5.000000e-01 : f32
    %526 = vector.broadcast %cst_166 : f32 to vector<2x128xf32>
    %527 = arith.mulf %526, %525 : vector<2x128xf32>
    %cst_167 = arith.constant 5.000000e-01 : f32
    %528 = vector.broadcast %cst_167 : f32 to vector<2x128xf32>
    %529 = arith.addf %527, %528 : vector<2x128xf32>
    %530 = arith.mulf %519, %463 : vector<2x128xf32>
    %531 = arith.mulf %511, %521 : vector<2x128xf32>
    %532 = arith.addf %530, %531 : vector<2x128xf32>
    %533 = math.tanh %532 : vector<2x128xf32>
    %534 = arith.mulf %529, %533 : vector<2x128xf32>
    %535 = tpu.concatenate %534, %499 in 1 : vector<2x128xf32>, vector<2x32xf32> -> vector<2x160xf32>
    %cst_168 = arith.constant dense<0.000000e+00> : vector<2x128xf32>
    %536 = tpu.matmul %535, %12, %cst_168 {dimension_numbers = #tpu.dot_dimension_numbers<[1], [0], [0], [1], [0, 0, 1, 1], [], []>} : vector<2x160xf32>, vector<160x128xf32>, vector<2x128xf32> -> vector<2x128xf32>
    %537 = arith.addf %501, %536 : vector<2x128xf32>
    %538 = vector.extract_strided_slice %537 {offsets = [0, 0], sizes = [2, 32], strides = [1, 1]} : vector<2x128xf32> to vector<2x32xf32>
    %cst_169 = arith.constant 5.000000e-01 : f32
    %539 = vector.broadcast %cst_169 : f32 to vector<2x32xf32>
    %540 = arith.mulf %539, %538 : vector<2x32xf32>
    %541 = math.tanh %540 : vector<2x32xf32>
    %cst_170 = arith.constant 5.000000e-01 : f32
    %542 = vector.broadcast %cst_170 : f32 to vector<2x32xf32>
    %543 = arith.mulf %542, %541 : vector<2x32xf32>
    %cst_171 = arith.constant 5.000000e-01 : f32
    %544 = vector.broadcast %cst_171 : f32 to vector<2x32xf32>
    %545 = arith.addf %543, %544 : vector<2x32xf32>
    %546 = vector.extract_strided_slice %537 {offsets = [0, 32], sizes = [2, 32], strides = [1, 1]} : vector<2x128xf32> to vector<2x32xf32>
    %cst_172 = arith.constant 5.000000e-01 : f32
    %547 = vector.broadcast %cst_172 : f32 to vector<2x32xf32>
    %548 = arith.mulf %547, %546 : vector<2x32xf32>
    %549 = math.tanh %548 : vector<2x32xf32>
    %cst_173 = arith.constant 5.000000e-01 : f32
    %550 = vector.broadcast %cst_173 : f32 to vector<2x32xf32>
    %551 = arith.mulf %550, %549 : vector<2x32xf32>
    %cst_174 = arith.constant 5.000000e-01 : f32
    %552 = vector.broadcast %cst_174 : f32 to vector<2x32xf32>
    %553 = arith.addf %551, %552 : vector<2x32xf32>
    %554 = vector.extract_strided_slice %537 {offsets = [0, 64], sizes = [2, 32], strides = [1, 1]} : vector<2x128xf32> to vector<2x32xf32>
    %555 = math.tanh %554 : vector<2x32xf32>
    %556 = vector.extract_strided_slice %537 {offsets = [0, 96], sizes = [2, 32], strides = [1, 1]} : vector<2x128xf32> to vector<2x32xf32>
    %cst_175 = arith.constant 5.000000e-01 : f32
    %557 = vector.broadcast %cst_175 : f32 to vector<2x32xf32>
    %558 = arith.mulf %557, %556 : vector<2x32xf32>
    %559 = math.tanh %558 : vector<2x32xf32>
    %cst_176 = arith.constant 5.000000e-01 : f32
    %560 = vector.broadcast %cst_176 : f32 to vector<2x32xf32>
    %561 = arith.mulf %560, %559 : vector<2x32xf32>
    %cst_177 = arith.constant 5.000000e-01 : f32
    %562 = vector.broadcast %cst_177 : f32 to vector<2x32xf32>
    %563 = arith.addf %561, %562 : vector<2x32xf32>
    %564 = arith.mulf %553, %497 : vector<2x32xf32>
    %565 = arith.mulf %545, %555 : vector<2x32xf32>
    %566 = arith.addf %564, %565 : vector<2x32xf32>
    %567 = math.tanh %566 : vector<2x32xf32>
    %568 = arith.mulf %563, %567 : vector<2x32xf32>
    %c0_178 = arith.constant 0 : index
    %c0_179 = arith.constant 0 : index
    %569 = vector.load %arg7[%c0_178, %c0_179] : memref<32x1024xf32, #tpu.memory_space<vmem>>, vector<32x1024xf32>
    %cst_180 = arith.constant dense<0.000000e+00> : vector<2x1024xf32>
    %570 = tpu.matmul %568, %569, %cst_180 {dimension_numbers = #tpu.dot_dimension_numbers<[1], [0], [0], [1], [0, 0, 1, 1], [], []>} : vector<2x32xf32>, vector<32x1024xf32>, vector<2x1024xf32> -> vector<2x1024xf32>
    %c0_181 = arith.constant 0 : index
    %c0_182 = arith.constant 0 : index
    %571 = vector.load %arg8[%c0_181, %c0_182] : memref<1x1024xf32, #tpu.memory_space<vmem>>, vector<1x1024xf32>
    %572 = vector.broadcast %571 : vector<1x1024xf32> to vector<2x1024xf32>
    %573 = arith.addf %570, %572 : vector<2x1024xf32>
    %cst_183 = arith.constant 0.000000e+00 : f32
    %574 = vector.broadcast %cst_183 : f32 to vector<2x1024xf32>
    %575 = arith.maximumf %573, %574 : vector<2x1024xf32>
    %c0_184 = arith.constant 0 : index
    %c0_185 = arith.constant 0 : index
    %576 = vector.load %arg9[%c0_184, %c0_185] : memref<1024x4xf32, #tpu.memory_space<vmem>>, vector<1024x4xf32>
    %cst_186 = arith.constant dense<0.000000e+00> : vector<2x4xf32>
    %577 = tpu.matmul %575, %576, %cst_186 {dimension_numbers = #tpu.dot_dimension_numbers<[1], [0], [0], [1], [0, 0, 1, 1], [], []>} : vector<2x1024xf32>, vector<1024x4xf32>, vector<2x4xf32> -> vector<2x4xf32>
    %c0_187 = arith.constant 0 : index
    %c0_188 = arith.constant 0 : index
    %578 = vector.load %arg10[%c0_187, %c0_188] : memref<1x4xf32, #tpu.memory_space<vmem>>, vector<1x4xf32>
    %579 = vector.broadcast %578 : vector<1x4xf32> to vector<2x4xf32>
    %580 = arith.addf %577, %579 : vector<2x4xf32>
    %c0_189 = arith.constant 0 : index
    %c0_190 = arith.constant 0 : index
    %581 = vector.load %arg11[%c0_189, %c0_190] : memref<2x4xf32, #tpu.memory_space<vmem>>, vector<2x4xf32>
    tpu.vector_store %arg11[%c0_189, %c0_190], %580 {strides = array<i32>} : memref<2x4xf32, #tpu.memory_space<vmem>>, vector<2x4xf32>,
    return
  }
}

</mosaic_0001>

<llo_original>
// kernel: mychallenge_forward.1
$region0: #{mychallenge_forward.1}
  #allocation0 [shape = 'u32[]', space=smem, size = 0x4, offset = 0x4, fixed_abs, tag = 'smem constant byte address 0x4 - core index']
  #allocation1 [shape = 'u32[144,128]{1,0:T(1,128)}', space=vmem, size = 0x12000, scoped, tag = 'internal scratch']
  %s0 = inlined_call_operand.vmem [shape: f32[16,4], index: 0, kind: input, shape index: {}]
  %s1 = inlined_call_operand.vmem [shape: f32[4,512], index: 1, kind: input, shape index: {}]
  %s2 = inlined_call_operand.vmem [shape: f32[128,512], index: 2, kind: input, shape index: {}]
  %s3 = inlined_call_operand.vmem [shape: f32[1,512], index: 3, kind: input, shape index: {}]
  %s4 = inlined_call_operand.vmem [shape: f32[4,128], index: 4, kind: input, shape index: {}]
  %s5 = inlined_call_operand.vmem [shape: f32[160,128], index: 5, kind: input, shape index: {}]
  %s6 = inlined_call_operand.vmem [shape: f32[1,128], index: 6, kind: input, shape index: {}]
  %s7 = inlined_call_operand.vmem [shape: f32[32,1024], index: 7, kind: input, shape index: {}]
  %s8 = inlined_call_operand.vmem [shape: f32[1,1024], index: 8, kind: input, shape index: {}]
  %s9 = inlined_call_operand.vmem [shape: f32[1024,4], index: 9, kind: input, shape index: {}]
  %s10 = inlined_call_operand.vmem [shape: f32[1,4], index: 10, kind: input, shape index: {}]
  %s11 = inlined_call_operand.hbm [shape: f32[2,4], index: 11, kind: output, shape index: {}]
  %s12 = sld [smem:[#allocation0]]
  $region54: #{mychallenge_forward.1} parent=0
    _
  %s14 = ssub.s32 1, %s12
  %s15 = scalar_select 0, %s14, %s12
  $region1: #{mychallenge_forward.1} parent=0
    #allocation2 [shape = 'u8[1024]{0}', space=vmem, size = 0x400, scoped, tag = 'output window, operand 0, single buffered']
    #allocation3 [shape = 's32[1]{0}', space=sflag, size = 0x4, scoped, tag = 'scoped memory for mychallenge_forward.1']
    %16 = vsyncpa [#allocation3], 0
    // Predicated region
    $region2: #{mychallenge_forward.1} parent=1 // pred_check
      _
    $region3: #{mychallenge_forward.1} parent=1 // pred_check_branch
      %18 = sbr.rel (0) target = $region5
    $region4: #{mychallenge_forward.1} parent=1 // pred_region
      _
    $region5: #{mychallenge_forward.1} parent=1 // pred_fallthru
      _
    // Predicated region
    $region6: #{mychallenge_forward.1} parent=1 // pred_check
      _
    $region7: #{mychallenge_forward.1} parent=1 // pred_check_branch
      %20 = sbr.rel (0) target = $region9
    $region8: #{mychallenge_forward.1} parent=1 // pred_region
      _
    $region9: #{mychallenge_forward.1} parent=1 // pred_fallthru
      _
    // Predicated region
    $region10: #{mychallenge_forward.1} parent=1 // pred_check
      _
    $region11: #{mychallenge_forward.1} parent=1 // pred_check_branch
      %22 = sbr.rel (0) target = $region13
    $region12: #{mychallenge_forward.1} parent=1 // pred_region
      _
    $region13: #{mychallenge_forward.1} parent=1 // pred_fallthru
      _
    // Predicated region
    $region14: #{mychallenge_forward.1} parent=1 // pred_check
      _
    $region15: #{mychallenge_forward.1} parent=1 // pred_check_branch
      %24 = sbr.rel (0) target = $region17
    $region16: #{mychallenge_forward.1} parent=1 // pred_region
      _
    $region17: #{mychallenge_forward.1} parent=1 // pred_fallthru
      _
    // Predicated region
    $region18: #{mychallenge_forward.1} parent=1 // pred_check
      _
    $region19: #{mychallenge_forward.1} parent=1 // pred_check_branch
      %26 = sbr.rel (0) target = $region21
    $region20: #{mychallenge_forward.1} parent=1 // pred_region
      _
    $region21: #{mychallenge_forward.1} parent=1 // pred_fallthru
      _
    // Predicated region
    $region22: #{mychallenge_forward.1} parent=1 // pred_check
      _
    $region23: #{mychallenge_forward.1} parent=1 // pred_check_branch
      %28 = sbr.rel (0) target = $region25
    $region24: #{mychallenge_forward.1} parent=1 // pred_region
      _
    $region25: #{mychallenge_forward.1} parent=1 // pred_fallthru
      _
    // Predicated region
    $region26: #{mychallenge_forward.1} parent=1 // pred_check
      _
    $region27: #{mychallenge_forward.1} parent=1 // pred_check_branch
      %30 = sbr.rel (0) target = $region29
    $region28: #{mychallenge_forward.1} parent=1 // pred_region
      _
    $region29: #{mychallenge_forward.1} parent=1 // pred_fallthru
      _
    // Predicated region
    $region30: #{mychallenge_forward.1} parent=1 // pred_check
      _
    $region31: #{mychallenge_forward.1} parent=1 // pred_check_branch
      %32 = sbr.rel (0) target = $region33
    $region32: #{mychallenge_forward.1} parent=1 // pred_region
      _
    $region33: #{mychallenge_forward.1} parent=1 // pred_fallthru
      _
    // Predicated region
    $region34: #{mychallenge_forward.1} parent=1 // pred_check
      _
    $region35: #{mychallenge_forward.1} parent=1 // pred_check_branch
      %34 = sbr.rel (0) target = $region37
    $region36: #{mychallenge_forward.1} parent=1 // pred_region
      _
    $region37: #{mychallenge_forward.1} parent=1 // pred_fallthru
      _
    // Predicated region
    $region38: #{mychallenge_forward.1} parent=1 // pred_check
      _
    $region39: #{mychallenge_forward.1} parent=1 // pred_check_branch
      %36 = sbr.rel (0) target = $region41
    $region40: #{mychallenge_forward.1} parent=1 // pred_region
      _
    $region41: #{mychallenge_forward.1} parent=1 // pred_fallthru
      _
    // Predicated region
    $region42: #{mychallenge_forward.1} parent=1 // pred_check
      _
    $region43: #{mychallenge_forward.1} parent=1 // pred_check_branch
      %38 = sbr.rel (0) target = $region45
    $region44: #{mychallenge_forward.1} parent=1 // pred_region
      _
    $region45: #{mychallenge_forward.1} parent=1 // pred_fallthru
      _
    %v39 = vld [vmem:[%s0] sm:$0xff]
    %v40 = vld [vmem:[%s0 + $0x8] sm:$0xff]
    %v41 = vld [vmem:[%s1] sm:$0xff]
    %v42 = vld [vmem:[%s1 + $0x8] sm:$0xff]
    %v43 = vld [vmem:[%s3] sm:$0xf]
    %v45 = vlaneseq
    %v46 = vshrl.u32 %v45, 7
    %v47 = vsub.s32 0, %v46
    %v48 = vrot.slane %v43, %v47
    %v49 = vlaneseq
    %v50 = vshrl.u32 %v49, 7
    %v51 = vsub.s32 1, %v50
    %v52 = vrot.slane %v43, %v51
    %v53 = vlaneseq
    %v54 = vshrl.u32 %v53, 7
    %v55 = vsub.s32 2, %v54
    %v56 = vrot.slane %v43, %v55
    %v57 = vlaneseq
    %v58 = vshrl.u32 %v57, 7
    %v59 = vsub.s32 3, %v58
    %v60 = vrot.slane %v43, %v59
    %v67 = vcombine.high %v41, %v41
    %v68 = vcombine.high %v42, %v42
    %vm69 = vcmask 31744
    %v71 = vsel %vm69, %v39, 0
    %v74 = vsel %vm69, %v40, 0
    %vm76 = vcmask 1043456
    %v77 = vsel %vm76, %v41, 0
    %v79 = vsel %vm76, %v67, 0
    %v81 = vsel %vm76, %v42, 0
    %v83 = vsel %vm76, %v68, 0
    %85 = vmatprep.subr.mxu0 %v79
    %86 = vmatpush1.msra.mxu0 %v77
    %87 = vmatprep.subr.mxu0 0.0
    %88 = vmatpush1.msra.mxu0 0.0
    %89 = vmatprep.subr.mxu0 0.0
    %90 = vmatpush1.msra.mxu0 0.0
    %91 = vmatprep.subr.mxu0 0.0
    %92 = vmatpush1.msra.mxu0 0.0
    %93 = vmatprep.subr.mxu0 0.0
    %94 = vmatpush1.msra.mxu0 0.0
    %95 = vmatprep.subr.mxu0 0.0
    %96 = vmatpush1.msra.mxu0 0.0
    %97 = vmatprep.subr.mxu0 0.0
    %98 = vmatpush1.msra.mxu0 0.0
    %99 = vmatprep.subr.mxu0 0.0
    %100 = vmatpush1.msra.mxu0 0.0
    %101 = vmatprep.subr.mxu0 0.0
    %102 = vmatpush1.msra.mxu0 0.0
    %103 = vmatprep.subr.mxu0 0.0
    %104 = vmatpush1.msra.mxu0 0.0
    %105 = vmatprep.subr.mxu0 0.0
    %106 = vmatpush1.msra.mxu0 0.0
    %107 = vmatprep.subr.mxu0 0.0
    %108 = vmatpush1.msra.mxu0 0.0
    %109 = vmatprep.subr.mxu0 0.0
    %110 = vmatpush1.msra.mxu0 0.0
    %111 = vmatprep.subr.mxu0 0.0
    %112 = vmatpush1.msra.mxu0 0.0
    %113 = vmatprep.subr.mxu0 0.0
    %114 = vmatpush1.msra.mxu0 0.0
    %115 = vmatprep.subr.mxu0 0.0
    %116 = vmatpush1.msra.mxu0 0.0
    %117 = vmatprep.subr.mxu0 0.0
    %118 = vmatpush1.msra.mxu0 0.0
    %119 = vmatprep.subr.mxu0 0.0
    %120 = vmatpush1.msra.mxu0 0.0
    %121 = vmatprep.subr.mxu0 0.0
    %122 = vmatpush1.msra.mxu0 0.0
    %123 = vmatprep.subr.mxu0 0.0
    %124 = vmatpush1.msra.mxu0 0.0
    %125 = vmatprep.subr.mxu0 0.0
    %126 = vmatpush1.msra.mxu0 0.0
    %127 = vmatprep.subr.mxu0 0.0
    %128 = vmatpush1.msra.mxu0 0.0
    %129 = vmatprep.subr.mxu0 0.0
    %130 = vmatpush1.msra.mxu0 0.0
    %131 = vmatprep.subr.mxu0 0.0
    %132 = vmatpush1.msra.mxu0 0.0
    %133 = vmatprep.subr.mxu0 0.0
    %134 = vmatpush1.msra.mxu0 0.0
    %135 = vmatprep.subr.mxu0 0.0
    %136 = vmatpush1.msra.mxu0 0.0
    %137 = vmatprep.subr.mxu0 0.0
    %138 = vmatpush1.msra.mxu0 0.0
    %139 = vmatprep.subr.mxu0 0.0
    %140 = vmatpush1.msra.mxu0 0.0
    %141 = vmatprep.subr.mxu0 0.0
    %142 = vmatpush1.msra.mxu0 0.0
    %143 = vmatprep.subr.mxu0 0.0
    %144 = vmatpush1.msra.mxu0 0.0
    %145 = vmatprep.subr.mxu0 0.0
    %146 = vmatpush1.msra.mxu0 0.0
    %147 = vmatprep.subr.mxu0 0.0
    %148 = vmatpush1.msra.mxu0 0.0
    %149 = vmatprep.mubr.f32.mxu0 0.0
    %150 = vmatmul.mubr.f32.gmra.mrb[0].mxu0 %v71
    %v151 = vpop.f32.mrb[0].mxu0
    %v152 = vadd.f32 %v48, %v151
    %v153 = vpop.f32.mrb[0].mxu0
    %v154 = vadd.f32 %v52, %v153
    %155 = vmatprep.mubr.f32.mxu0 0.0
    %156 = vmatmul.mubr.f32.gmra.mrb[0].mxu0 %v74
    %v157 = vpop.f32.mrb[0].mxu0
    %v158 = vadd.f32 %v48, %v157
    %v159 = vpop.f32.mrb[0].mxu0
    %v160 = vadd.f32 %v52, %v159
    %161 = vdwg.mxu0
    %162 = vmatprep.subr.mxu0 %v83
    %163 = vmatpush1.msra.mxu0 %v81
    %164 = vmatprep.subr.mxu0 0.0
    %165 = vmatpush1.msra.mxu0 0.0
    %166 = vmatprep.subr.mxu0 0.0
    %167 = vmatpush1.msra.mxu0 0.0
    %168 = vmatprep.subr.mxu0 0.0
    %169 = vmatpush1.msra.mxu0 0.0
    %170 = vmatprep.subr.mxu0 0.0
    %171 = vmatpush1.msra.mxu0 0.0
    %172 = vmatprep.subr.mxu0 0.0
    %173 = vmatpush1.msra.mxu0 0.0
    %174 = vmatprep.subr.mxu0 0.0
    %175 = vmatpush1.msra.mxu0 0.0
    %176 = vmatprep.subr.mxu0 0.0
    %177 = vmatpush1.msra.mxu0 0.0
    %178 = vmatprep.subr.mxu0 0.0
    %179 = vmatpush1.msra.mxu0 0.0
    %180 = vmatprep.subr.mxu0 0.0
    %181 = vmatpush1.msra.mxu0 0.0
    %182 = vmatprep.subr.mxu0 0.0
    %183 = vmatpush1.msra.mxu0 0.0
    %184 = vmatprep.subr.mxu0 0.0
    %185 = vmatpush1.msra.mxu0 0.0
    %186 = vmatprep.subr.mxu0 0.0
    %187 = vmatpush1.msra.mxu0 0.0
    %188 = vmatprep.subr.mxu0 0.0
    %189 = vmatpush1.msra.mxu0 0.0
    %190 = vmatprep.subr.mxu0 0.0
    %191 = vmatpush1.msra.mxu0 0.0
    %192 = vmatprep.subr.mxu0 0.0
    %193 = vmatpush1.msra.mxu0 0.0
    %194 = vmatprep.subr.mxu0 0.0
    %195 = vmatpush1.msra.mxu0 0.0
    %196 = vmatprep.subr.mxu0 0.0
    %197 = vmatpush1.msra.mxu0 0.0
    %198 = vmatprep.subr.mxu0 0.0
    %199 = vmatpush1.msra.mxu0 0.0
    %200 = vmatprep.subr.mxu0 0.0
    %201 = vmatpush1.msra.mxu0 0.0
    %202 = vmatprep.subr.mxu0 0.0
    %203 = vmatpush1.msra.mxu0 0.0
    %204 = vmatprep.subr.mxu0 0.0
    %205 = vmatpush1.msra.mxu0 0.0
    %206 = vmatprep.subr.mxu0 0.0
    %207 = vmatpush1.msra.mxu0 0.0
    %208 = vmatprep.subr.mxu0 0.0
    %209 = vmatpush1.msra.mxu0 0.0
    %210 = vmatprep.subr.mxu0 0.0
    %211 = vmatpush1.msra.mxu0 0.0
    %212 = vmatprep.subr.mxu0 0.0
    %213 = vmatpush1.msra.mxu0 0.0
    %214 = vmatprep.subr.mxu0 0.0
    %215 = vmatpush1.msra.mxu0 0.0
    %216 = vmatprep.subr.mxu0 0.0
    %217 = vmatpush1.msra.mxu0 0.0
    %218 = vmatprep.subr.mxu0 0.0
    %219 = vmatpush1.msra.mxu0 0.0
    %220 = vmatprep.subr.mxu0 0.0
    %221 = vmatpush1.msra.mxu0 0.0
    %222 = vmatprep.subr.mxu0 0.0
    %223 = vmatpush1.msra.mxu0 0.0
    %224 = vmatprep.subr.mxu0 0.0
    %225 = vmatpush1.msra.mxu0 0.0
    %226 = vmatprep.mubr.f32.mxu0 0.0
    %227 = vmatmul.mubr.f32.gmra.mrb[0].mxu0 %v71
    %v228 = vpop.f32.mrb[0].mxu0
    %v229 = vadd.f32 %v56, %v228
    %v230 = vpop.f32.mrb[0].mxu0
    %v231 = vadd.f32 %v60, %v230
    %232 = vmatprep.mubr.f32.mxu0 0.0
    %233 = vmatmul.mubr.f32.gmra.mrb[0].mxu0 %v74
    %v234 = vpop.f32.mrb[0].mxu0
    %v235 = vadd.f32 %v56, %v234
    %v236 = vpop.f32.mrb[0].mxu0
    %v237 = vadd.f32 %v60, %v236
    %238 = vdwg.mxu0
    %v239 = vld [vmem:[%s4] sm:$0xf]
    %v240 = vld [vmem:[%s6] sm:$0x1]
    %v242 = vlaneseq
    %v243 = vshrl.u32 %v242, 7
    %v244 = vsub.s32 0, %v243
    %v245 = vrot.slane %v240, %v244
    %v248 = vsel %vm76, %v239, 0
    %250 = vmatprep.subr.mxu0 0.0
    %251 = vmatpush1.msra.mxu0 %v248
    %252 = vmatprep.subr.mxu0 0.0
    %253 = vmatpush1.msra.mxu0 0.0
    %254 = vmatprep.subr.mxu0 0.0
    %255 = vmatpush1.msra.mxu0 0.0
    %256 = vmatprep.subr.mxu0 0.0
    %257 = vmatpush1.msra.mxu0 0.0
    %258 = vmatprep.subr.mxu0 0.0
    %259 = vmatpush1.msra.mxu0 0.0
    %260 = vmatprep.subr.mxu0 0.0
    %261 = vmatpush1.msra.mxu0 0.0
    %262 = vmatprep.subr.mxu0 0.0
    %263 = vmatpush1.msra.mxu0 0.0
    %264 = vmatprep.subr.mxu0 0.0
    %265 = vmatpush1.msra.mxu0 0.0
    %266 = vmatprep.subr.mxu0 0.0
    %267 = vmatpush1.msra.mxu0 0.0
    %268 = vmatprep.subr.mxu0 0.0
    %269 = vmatpush1.msra.mxu0 0.0
    %270 = vmatprep.subr.mxu0 0.0
    %271 = vmatpush1.msra.mxu0 0.0
    %272 = vmatprep.subr.mxu0 0.0
    %273 = vmatpush1.msra.mxu0 0.0
    %274 = vmatprep.subr.mxu0 0.0
    %275 = vmatpush1.msra.mxu0 0.0
    %276 = vmatprep.subr.mxu0 0.0
    %277 = vmatpush1.msra.mxu0 0.0
    %278 = vmatprep.subr.mxu0 0.0
    %279 = vmatpush1.msra.mxu0 0.0
    %280 = vmatprep.subr.mxu0 0.0
    %281 = vmatpush1.msra.mxu0 0.0
    %282 = vmatprep.subr.mxu0 0.0
    %283 = vmatpush1.msra.mxu0 0.0
    %284 = vmatprep.subr.mxu0 0.0
    %285 = vmatpush1.msra.mxu0 0.0
    %286 = vmatprep.subr.mxu0 0.0
    %287 = vmatpush1.msra.mxu0 0.0
    %288 = vmatprep.subr.mxu0 0.0
    %289 = vmatpush1.msra.mxu0 0.0
    %290 = vmatprep.subr.mxu0 0.0
    %291 = vmatpush1.msra.mxu0 0.0
    %292 = vmatprep.subr.mxu0 0.0
    %293 = vmatpush1.msra.mxu0 0.0
    %294 = vmatprep.subr.mxu0 0.0
    %295 = vmatpush1.msra.mxu0 0.0
    %296 = vmatprep.subr.mxu0 0.0
    %297 = vmatpush1.msra.mxu0 0.0
    %298 = vmatprep.subr.mxu0 0.0
    %299 = vmatpush1.msra.mxu0 0.0
    %300 = vmatprep.subr.mxu0 0.0
    %301 = vmatpush1.msra.mxu0 0.0
    %302 = vmatprep.subr.mxu0 0.0
    %303 = vmatpush1.msra.mxu0 0.0
    %304 = vmatprep.subr.mxu0 0.0
    %305 = vmatpush1.msra.mxu0 0.0
    %306 = vmatprep.subr.mxu0 0.0
    %307 = vmatpush1.msra.mxu0 0.0
    %308 = vmatprep.subr.mxu0 0.0
    %309 = vmatpush1.msra.mxu0 0.0
    %310 = vmatprep.subr.mxu0 0.0
    %311 = vmatpush1.msra.mxu0 0.0
    %312 = vmatprep.subr.mxu0 0.0
    %313 = vmatpush1.msra.mxu0 0.0
    %314 = vmatprep.mubr.f32.mxu0 0.0
    %315 = vmatmul.mubr.f32.gmra.mrb[0].mxu0 %v71
    %v316 = vpop.f32.mrb[0].mxu0
    %v317 = vadd.f32 %v245, %v316
    %v318 = vpop.f32.mrb[0].mxu0
    %319 = vmatprep.mubr.f32.mxu0 0.0
    %320 = vmatmul.mubr.f32.gmra.mrb[0].mxu0 %v74
    %v321 = vpop.f32.mrb[0].mxu0
    %v322 = vadd.f32 %v245, %v321
    %v323 = vpop.f32.mrb[0].mxu0
    %324 = vdwg.mxu0
    %v325 = vld [vmem:[%s2] sm:$0xff]
    %v326 = vld [vmem:[%s2 + $0x8] sm:$0xff]
    %v327 = vld [vmem:[%s2 + $0x10] sm:$0xff]
    %v328 = vld [vmem:[%s2 + $0x18] sm:$0xff]
    %v329 = vld [vmem:[%s2 + $0x20] sm:$0xff]
    %v330 = vld [vmem:[%s2 + $0x28] sm:$0xff]
    %v331 = vld [vmem:[%s2 + $0x30] sm:$0xff]
    %v332 = vld [vmem:[%s2 + $0x38] sm:$0xff]
    %v333 = vld [vmem:[%s2 + $0x40] sm:$0xff]
    %v334 = vld [vmem:[%s2 + $0x48] sm:$0xff]
    %v335 = vld [vmem:[%s2 + $0x50] sm:$0xff]
    %v336 = vld [vmem:[%s2 + $0x58] sm:$0xff]
    %v337 = vld [vmem:[%s2 + $0x60] sm:$0xff]
    %v338 = vld [vmem:[%s2 + $0x68] sm:$0xff]
    %v339 = vld [vmem:[%s2 + $0x70] sm:$0xff]
    %v340 = vld [vmem:[%s2 + $0x78] sm:$0xff]
    %v341 = vld [vmem:[%s2 + $0x80] sm:$0xff]
    %v342 = vld [vmem:[%s2 + $0x88] sm:$0xff]
    %v343 = vld [vmem:[%s2 + $0x90] sm:$0xff]
    %v344 = vld [vmem:[%s2 + $0x98] sm:$0xff]
    %v345 = vld [vmem:[%s2 + $0xa0] sm:$0xff]
    %v346 = vld [vmem:[%s2 + $0xa8] sm:$0xff]
    %v347 = vld [vmem:[%s2 + $0xb0] sm:$0xff]
    %v348 = vld [vmem:[%s2 + $0xb8] sm:$0xff]
    %v349 = vld [vmem:[%s2 + $0xc0] sm:$0xff]
    %v350 = vld [vmem:[%s2 + $0xc8] sm:$0xff]
    %v351 = vld [vmem:[%s2 + $0xd0] sm:$0xff]
    %v352 = vld [vmem:[%s2 + $0xd8] sm:$0xff]
    %v353 = vld [vmem:[%s2 + $0xe0] sm:$0xff]
    %v354 = vld [vmem:[%s2 + $0xe8] sm:$0xff]
    %v355 = vld [vmem:[%s2 + $0xf0] sm:$0xff]
    %v356 = vld [vmem:[%s2 + $0xf8] sm:$0xff]
    %v357 = vld [vmem:[%s2 + $0x100] sm:$0xff]
    %v358 = vld [vmem:[%s2 + $0x108] sm:$0xff]
    %v359 = vld [vmem:[%s2 + $0x110] sm:$0xff]
    %v360 = vld [vmem:[%s2 + $0x118] sm:$0xff]
    %v361 = vld [vmem:[%s2 + $0x120] sm:$0xff]
    %v362 = vld [vmem:[%s2 + $0x128] sm:$0xff]
    %v363 = vld [vmem:[%s2 + $0x130] sm:$0xff]
    %v364 = vld [vmem:[%s2 + $0x138] sm:$0xff]
    %v365 = vld [vmem:[%s2 + $0x140] sm:$0xff]
    %v366 = vld [vmem:[%s2 + $0x148] sm:$0xff]
    %v367 = vld [vmem:[%s2 + $0x150] sm:$0xff]
    %v368 = vld [vmem:[%s2 + $0x158] sm:$0xff]
    %v369 = vld [vmem:[%s2 + $0x160] sm:$0xff]
    %v370 = vld [vmem:[%s2 + $0x168] sm:$0xff]
    %v371 = vld [vmem:[%s2 + $0x170] sm:$0xff]
    %v372 = vld [vmem:[%s2 + $0x178] sm:$0xff]
    %v373 = vld [vmem:[%s2 + $0x180] sm:$0xff]
    %v374 = vld [vmem:[%s2 + $0x188] sm:$0xff]
    %v375 = vld [vmem:[%s2 + $0x190] sm:$0xff]
    %v376 = vld [vmem:[%s2 + $0x198] sm:$0xff]
    %v377 = vld [vmem:[%s2 + $0x1a0] sm:$0xff]
    %v378 = vld [vmem:[%s2 + $0x1a8] sm:$0xff]
    %v379 = vld [vmem:[%s2 + $0x1b0] sm:$0xff]
    %v380 = vld [vmem:[%s2 + $0x1b8] sm:$0xff]
    %v381 = vld [vmem:[%s2 + $0x1c0] sm:$0xff]
    %v382 = vld [vmem:[%s2 + $0x1c8] sm:$0xff]
    %v383 = vld [vmem:[%s2 + $0x1d0] sm:$0xff]
    %v384 = vld [vmem:[%s2 + $0x1d8] sm:$0xff]
    %v385 = vld [vmem:[%s2 + $0x1e0] sm:$0xff]
    %v386 = vld [vmem:[%s2 + $0x1e8] sm:$0xff]
    %v387 = vld [vmem:[%s2 + $0x1f0] sm:$0xff]
    %v388 = vld [vmem:[%s2 + $0x1f8] sm:$0xff]
    %v389 = vld [vmem:[%s5] sm:$0xff]
    %v390 = vld [vmem:[%s5 + $0x8] sm:$0xff]
    %v391 = vld [vmem:[%s5 + $0x10] sm:$0xff]
    %v392 = vld [vmem:[%s5 + $0x18] sm:$0xff]
    %v393 = vld [vmem:[%s5 + $0x20] sm:$0xff]
    %v394 = vld [vmem:[%s5 + $0x28] sm:$0xff]
    %v395 = vld [vmem:[%s5 + $0x30] sm:$0xff]
    %v396 = vld [vmem:[%s5 + $0x38] sm:$0xff]
    %v397 = vld [vmem:[%s5 + $0x40] sm:$0xff]
    %v398 = vld [vmem:[%s5 + $0x48] sm:$0xff]
    %v399 = vld [vmem:[%s5 + $0x50] sm:$0xff]
    %v400 = vld [vmem:[%s5 + $0x58] sm:$0xff]
    %v401 = vld [vmem:[%s5 + $0x60] sm:$0xff]
    %v402 = vld [vmem:[%s5 + $0x68] sm:$0xff]
    %v403 = vld [vmem:[%s5 + $0x70] sm:$0xff]
    %v404 = vld [vmem:[%s5 + $0x78] sm:$0xff]
    %v405 = vld [vmem:[%s5 + $0x80] sm:$0xff]
    %v406 = vld [vmem:[%s5 + $0x88] sm:$0xff]
    %v407 = vld [vmem:[%s5 + $0x90] sm:$0xff]
    %v408 = vld [vmem:[%s5 + $0x98] sm:$0xff]
    %409 = vmatprep.subr.mxu0 %v326
    %410 = vmatpush1.msra.mxu0 %v325
    %411 = vmatprep.subr.mxu0 %v330
    %412 = vmatpush1.msra.mxu0 %v329
    %413 = vmatprep.subr.mxu0 %v334
    %414 = vmatpush1.msra.mxu0 %v333
    %415 = vmatprep.subr.mxu0 %v338
    %416 = vmatpush1.msra.mxu0 %v337
    %417 = vmatprep.subr.mxu0 %v342
    %418 = vmatpush1.msra.mxu0 %v341
    %419 = vmatprep.subr.mxu0 %v346
    %420 = vmatpush1.msra.mxu0 %v345
    %421 = vmatprep.subr.mxu0 %v350
    %422 = vmatpush1.msra.mxu0 %v349
    %423 = vmatprep.subr.mxu0 %v354
    %424 = vmatpush1.msra.mxu0 %v353
    %425 = vmatprep.subr.mxu0 %v358
    %426 = vmatpush1.msra.mxu0 %v357
    %427 = vmatprep.subr.mxu0 %v362
    %428 = vmatpush1.msra.mxu0 %v361
    %429 = vmatprep.subr.mxu0 %v366
    %430 = vmatpush1.msra.mxu0 %v365
    %431 = vmatprep.subr.mxu0 %v370
    %432 = vmatpush1.msra.mxu0 %v369
    %433 = vmatprep.subr.mxu0 %v374
    %434 = vmatpush1.msra.mxu0 %v373
    %435 = vmatprep.subr.mxu0 %v378
    %436 = vmatpush1.msra.mxu0 %v377
    %437 = vmatprep.subr.mxu0 %v382
    %438 = vmatpush1.msra.mxu0 %v381
    %439 = vmatprep.subr.mxu0 %v386
    %440 = vmatpush1.msra.mxu0 %v385
    %441 = vmatprep.subr.mxu0 0.0
    %442 = vmatpush1.msra.mxu0 0.0
    %443 = vmatprep.subr.mxu0 0.0
    %444 = vmatpush1.msra.mxu0 0.0
    %445 = vmatprep.subr.mxu0 0.0
    %446 = vmatpush1.msra.mxu0 0.0
    %447 = vmatprep.subr.mxu0 0.0
    %448 = vmatpush1.msra.mxu0 0.0
    %449 = vmatprep.subr.mxu0 0.0
    %450 = vmatpush1.msra.mxu0 0.0
    %451 = vmatprep.subr.mxu0 0.0
    %452 = vmatpush1.msra.mxu0 0.0
    %453 = vmatprep.subr.mxu0 0.0
    %454 = vmatpush1.msra.mxu0 0.0
    %455 = vmatprep.subr.mxu0 0.0
    %456 = vmatpush1.msra.mxu0 0.0
    %457 = vmatprep.subr.mxu0 0.0
    %458 = vmatpush1.msra.mxu0 0.0
    %459 = vmatprep.subr.mxu0 0.0
    %460 = vmatpush1.msra.mxu0 0.0
    %461 = vmatprep.subr.mxu0 0.0
    %462 = vmatpush1.msra.mxu0 0.0
    %463 = vmatprep.subr.mxu0 0.0
    %464 = vmatpush1.msra.mxu0 0.0
    %465 = vmatprep.subr.mxu0 0.0
    %466 = vmatpush1.msra.mxu0 0.0
    %467 = vmatprep.subr.mxu0 0.0
    %468 = vmatpush1.msra.mxu0 0.0
    %469 = vmatprep.subr.mxu0 0.0
    %470 = vmatpush1.msra.mxu0 0.0
    %471 = vmatprep.subr.mxu0 0.0
    %472 = vmatpush1.msra.mxu0 0.0
    %473 = vmatprep.mubr.f32.mxu0 0.0
    %474 = vmatmul.mubr.f32.gmra.mrb[0].mxu0 0.0
    %v475 = vpop.f32.mrb[0].mxu0
    %v476 = vadd.f32 0.0, %v475
    %v477 = vpop.f32.mrb[0].mxu0
    %v478 = vadd.f32 0.0, %v477
    %479 = vdwg.mxu0
    %480 = vmatprep.subr.mxu0 %v328
    %481 = vmatpush1.msra.mxu0 %v327
    %482 = vmatprep.subr.mxu0 %v332
    %483 = vmatpush1.msra.mxu0 %v331
    %484 = vmatprep.subr.mxu0 %v336
    %485 = vmatpush1.msra.mxu0 %v335
    %486 = vmatprep.subr.mxu0 %v340
    %487 = vmatpush1.msra.mxu0 %v339
    %488 = vmatprep.subr.mxu0 %v344
    %489 = vmatpush1.msra.mxu0 %v343
    %490 = vmatprep.subr.mxu0 %v348
    %491 = vmatpush1.msra.mxu0 %v347
    %492 = vmatprep.subr.mxu0 %v352
    %493 = vmatpush1.msra.mxu0 %v351
    %494 = vmatprep.subr.mxu0 %v356
    %495 = vmatpush1.msra.mxu0 %v355
    %496 = vmatprep.subr.mxu0 %v360
    %497 = vmatpush1.msra.mxu0 %v359
    %498 = vmatprep.subr.mxu0 %v364
    %499 = vmatpush1.msra.mxu0 %v363
    %500 = vmatprep.subr.mxu0 %v368
    %501 = vmatpush1.msra.mxu0 %v367
    %502 = vmatprep.subr.mxu0 %v372
    %503 = vmatpush1.msra.mxu0 %v371
    %504 = vmatprep.subr.mxu0 %v376
    %505 = vmatpush1.msra.mxu0 %v375
    %506 = vmatprep.subr.mxu0 %v380
    %507 = vmatpush1.msra.mxu0 %v379
    %508 = vmatprep.subr.mxu0 %v384
    %509 = vmatpush1.msra.mxu0 %v383
    %510 = vmatprep.subr.mxu0 %v388
    %511 = vmatpush1.msra.mxu0 %v387
    %512 = vmatprep.subr.mxu0 0.0
    %513 = vmatpush1.msra.mxu0 0.0
    %514 = vmatprep.subr.mxu0 0.0
    %515 = vmatpush1.msra.mxu0 0.0
    %516 = vmatprep.subr.mxu0 0.0
    %517 = vmatpush1.msra.mxu0 0.0
    %518 = vmatprep.subr.mxu0 0.0
    %519 = vmatpush1.msra.mxu0 0.0
    %520 = vmatprep.subr.mxu0 0.0
    %521 = vmatpush1.msra.mxu0 0.0
    %522 = vmatprep.subr.mxu0 0.0
    %523 = vmatpush1.msra.mxu0 0.0
    %524 = vmatprep.subr.mxu0 0.0
    %525 = vmatpush1.msra.mxu0 0.0
    %526 = vmatprep.subr.mxu0 0.0
    %527 = vmatpush1.msra.mxu0 0.0
    %528 = vmatprep.subr.mxu0 0.0
    %529 = vmatpush1.msra.mxu0 0.0
    %530 = vmatprep.subr.mxu0 0.0
    %531 = vmatpush1.msra.mxu0 0.0
    %532 = vmatprep.subr.mxu0 0.0
    %533 = vmatpush1.msra.mxu0 0.0
    %534 = vmatprep.subr.mxu0 0.0
    %535 = vmatpush1.msra.mxu0 0.0
    %536 = vmatprep.subr.mxu0 0.0
    %537 = vmatpush1.msra.mxu0 0.0
    %538 = vmatprep.subr.mxu0 0.0
    %539 = vmatpush1.msra.mxu0 0.0
    %540 = vmatprep.subr.mxu0 0.0
    %541 = vmatpush1.msra.mxu0 0.0
    %542 = vmatprep.subr.mxu0 0.0
    %543 = vmatpush1.msra.mxu0 0.0
    %544 = vmatprep.mubr.f32.mxu0 0.0
    %545 = vmatmul.mubr.f32.gmra.mrb[0].mxu0 0.0
    %v546 = vpop.f32.mrb[0].mxu0
    %v547 = vadd.f32 0.0, %v546
    %v548 = vpop.f32.mrb[0].mxu0
    %v549 = vadd.f32 0.0, %v548
    %550 = vdwg.mxu0
    %v551 = vadd.f32 %v152, %v476
    %v552 = vadd.f32 %v154, %v478
    %v553 = vadd.f32 %v229, %v547
    %v554 = vadd.f32 %v231, %v549
    %v555 = vmul.f32 %v551, 0.5
    %v556 = vtanh.pop %v555
    %v557 = vmul.f32 %v556, 0.5
    %v558 = vadd.f32 %v557, 0.5
    %v559 = vmul.f32 %v552, 0.5
    %v560 = vtanh.pop %v559
    %v561 = vmul.f32 %v560, 0.5
    %v562 = vadd.f32 %v561, 0.5
    %v563 = vtanh.pop %v553
    %v564 = vmul.f32 %v554, 0.5
    %v565 = vtanh.pop %v564
    %v566 = vmul.f32 %v565, 0.5
    %v567 = vadd.f32 %v566, 0.5
    %v568 = vmul.f32 %v562, 0.0
    %v569 = vmul.f32 %v558, %v563
    %v570 = vadd.f32 %v568, %v569
    %v571 = vtanh.pop %v570
    %v572 = vmul.f32 %v567, %v571
    %vm573 = vcmask 261120
    %v575 = vsel %vm573, 0.0, 0
    %577 = vmatprep.subr.mxu0 0.0
    %578 = vmatpush1.msra.mxu0 %v389
    %579 = vmatprep.subr.mxu0 0.0
    %580 = vmatpush1.msra.mxu0 %v390
    %581 = vmatprep.subr.mxu0 0.0
    %582 = vmatpush1.msra.mxu0 %v391
    %583 = vmatprep.subr.mxu0 0.0
    %584 = vmatpush1.msra.mxu0 %v392
    %585 = vmatprep.subr.mxu0 0.0
    %586 = vmatpush1.msra.mxu0 %v393
    %587 = vmatprep.subr.mxu0 0.0
    %588 = vmatpush1.msra.mxu0 %v394
    %589 = vmatprep.subr.mxu0 0.0
    %590 = vmatpush1.msra.mxu0 %v395
    %591 = vmatprep.subr.mxu0 0.0
    %592 = vmatpush1.msra.mxu0 %v396
    %593 = vmatprep.subr.mxu0 0.0
    %594 = vmatpush1.msra.mxu0 %v397
    %595 = vmatprep.subr.mxu0 0.0
    %596 = vmatpush1.msra.mxu0 %v398
    %597 = vmatprep.subr.mxu0 0.0
    %598 = vmatpush1.msra.mxu0 %v399
    %599 = vmatprep.subr.mxu0 0.0
    %600 = vmatpush1.msra.mxu0 %v400
    %601 = vmatprep.subr.mxu0 0.0
    %602 = vmatpush1.msra.mxu0 %v401
    %603 = vmatprep.subr.mxu0 0.0
    %604 = vmatpush1.msra.mxu0 %v402
    %605 = vmatprep.subr.mxu0 0.0
    %606 = vmatpush1.msra.mxu0 %v403
    %607 = vmatprep.subr.mxu0 0.0
    %608 = vmatpush1.msra.mxu0 %v404
    %609 = vmatprep.subr.mxu0 0.0
    %610 = vmatpush1.msra.mxu0 %v405
    %611 = vmatprep.subr.mxu0 0.0
    %612 = vmatpush1.msra.mxu0 %v406
    %613 = vmatprep.subr.mxu0 0.0
    %614 = vmatpush1.msra.mxu0 %v407
    %615 = vmatprep.subr.mxu0 0.0
    %616 = vmatpush1.msra.mxu0 %v408
    %617 = vmatprep.subr.mxu0 0.0
    %618 = vmatpush1.msra.mxu0 0.0
    %619 = vmatprep.subr.mxu0 0.0
    %620 = vmatpush1.msra.mxu0 0.0
    %621 = vmatprep.subr.mxu0 0.0
    %622 = vmatpush1.msra.mxu0 0.0
    %623 = vmatprep.subr.mxu0 0.0
    %624 = vmatpush1.msra.mxu0 0.0
    %625 = vmatprep.subr.mxu0 0.0
    %626 = vmatpush1.msra.mxu0 0.0
    %627 = vmatprep.subr.mxu0 0.0
    %628 = vmatpush1.msra.mxu0 0.0
    %629 = vmatprep.subr.mxu0 0.0
    %630 = vmatpush1.msra.mxu0 0.0
    %631 = vmatprep.subr.mxu0 0.0
    %632 = vmatpush1.msra.mxu0 0.0
    %633 = vmatprep.subr.mxu0 0.0
    %634 = vmatpush1.msra.mxu0 0.0
    %635 = vmatprep.subr.mxu0 0.0
    %636 = vmatpush1.msra.mxu0 0.0
    %637 = vmatprep.subr.mxu0 0.0
    %638 = vmatpush1.msra.mxu0 0.0
    %639 = vmatprep.subr.mxu0 0.0
    %640 = vmatpush1.msra.mxu0 0.0
    %641 = vmatprep.mubr.f32.mxu0 %v575
    %642 = vmatmul.mubr.f32.gmra.mrb[0].mxu0 %v572
    %v643 = vpop.f32.mrb[0].mxu0
    %v644 = vadd.f32 0.0, %v643
    %v645 = vpop.f32.mrb[0].mxu0
    %646 = vdwg.mxu0
    %v647 = vadd.f32 %v317, %v644
    %v648 = vmul.f32 %v647, 0.5
    %v649 = vtanh.pop %v648
    %v650 = vmul.f32 %v649, 0.5
    %v651 = vadd.f32 %v650, 0.5
    %v652 = vtanh.pop %v647
    %v653 = vmul.f32 %v651, 0.0
    %655 = vrot.lane.b32.xlu0 %v652, 64
    %v656 = vpop.permute.xlu0 %655
    %v658 = vmul.f32 %v651, %v656
    %660 = vrot.lane.b32.xlu0 %v658, 32
    %v661 = vpop.permute.xlu0 %660
    %v663 = vadd.f32 %v653, %v661
    %v664 = vtanh.pop %v663
    %666 = vrot.lane.b32.xlu0 %v664, 64
    %v667 = vpop.permute.xlu0 %666
    %v669 = vmul.f32 %v651, %v667
    %670 = vmatprep.subr.mxu0 %v326
    %671 = vmatpush1.msra.mxu0 %v325
    %672 = vmatprep.subr.mxu0 %v330
    %673 = vmatpush1.msra.mxu0 %v329
    %674 = vmatprep.subr.mxu0 %v334
    %675 = vmatpush1.msra.mxu0 %v333
    %676 = vmatprep.subr.mxu0 %v338
    %677 = vmatpush1.msra.mxu0 %v337
    %678 = vmatprep.subr.mxu0 %v342
    %679 = vmatpush1.msra.mxu0 %v341
    %680 = vmatprep.subr.mxu0 %v346
    %681 = vmatpush1.msra.mxu0 %v345
    %682 = vmatprep.subr.mxu0 %v350
    %683 = vmatpush1.msra.mxu0 %v349
    %684 = vmatprep.subr.mxu0 %v354
    %685 = vmatpush1.msra.mxu0 %v353
    %686 = vmatprep.subr.mxu0 %v358
    %687 = vmatpush1.msra.mxu0 %v357
    %688 = vmatprep.subr.mxu0 %v362
    %689 = vmatpush1.msra.mxu0 %v361
    %690 = vmatprep.subr.mxu0 %v366
    %691 = vmatpush1.msra.mxu0 %v365
    %692 = vmatprep.subr.mxu0 %v370
    %693 = vmatpush1.msra.mxu0 %v369
    %694 = vmatprep.subr.mxu0 %v374
    %695 = vmatpush1.msra.mxu0 %v373
    %696 = vmatprep.subr.mxu0 %v378
    %697 = vmatpush1.msra.mxu0 %v377
    %698 = vmatprep.subr.mxu0 %v382
    %699 = vmatpush1.msra.mxu0 %v381
    %700 = vmatprep.subr.mxu0 %v386
    %701 = vmatpush1.msra.mxu0 %v385
    %702 = vmatprep.subr.mxu0 0.0
    %703 = vmatpush1.msra.mxu0 0.0
    %704 = vmatprep.subr.mxu0 0.0
    %705 = vmatpush1.msra.mxu0 0.0
    %706 = vmatprep.subr.mxu0 0.0
    %707 = vmatpush1.msra.mxu0 0.0
    %708 = vmatprep.subr.mxu0 0.0
    %709 = vmatpush1.msra.mxu0 0.0
    %710 = vmatprep.subr.mxu0 0.0
    %711 = vmatpush1.msra.mxu0 0.0
    %712 = vmatprep.subr.mxu0 0.0
    %713 = vmatpush1.msra.mxu0 0.0
    %714 = vmatprep.subr.mxu0 0.0
    %715 = vmatpush1.msra.mxu0 0.0
    %716 = vmatprep.subr.mxu0 0.0
    %717 = vmatpush1.msra.mxu0 0.0
    %718 = vmatprep.subr.mxu0 0.0
    %719 = vmatpush1.msra.mxu0 0.0
    %720 = vmatprep.subr.mxu0 0.0
    %721 = vmatpush1.msra.mxu0 0.0
    %722 = vmatprep.subr.mxu0 0.0
    %723 = vmatpush1.msra.mxu0 0.0
    %724 = vmatprep.subr.mxu0 0.0
    %725 = vmatpush1.msra.mxu0 0.0
    %726 = vmatprep.subr.mxu0 0.0
    %727 = vmatpush1.msra.mxu0 0.0
    %728 = vmatprep.subr.mxu0 0.0
    %729 = vmatpush1.msra.mxu0 0.0
    %730 = vmatprep.subr.mxu0 0.0
    %731 = vmatpush1.msra.mxu0 0.0
    %732 = vmatprep.subr.mxu0 0.0
    %733 = vmatpush1.msra.mxu0 0.0
    %734 = vmatprep.mubr.f32.mxu0 0.0
    %735 = vmatmul.mubr.f32.gmra.mrb[0].mxu0 %v572
    %v736 = vpop.f32.mrb[0].mxu0
    %v737 = vadd.f32 0.0, %v736
    %v738 = vpop.f32.mrb[0].mxu0
    %v739 = vadd.f32 0.0, %v738
    %740 = vdwg.mxu0
    %741 = vmatprep.subr.mxu0 %v328
    %742 = vmatpush1.msra.mxu0 %v327
    %743 = vmatprep.subr.mxu0 %v332
    %744 = vmatpush1.msra.mxu0 %v331
    %745 = vmatprep.subr.mxu0 %v336
    %746 = vmatpush1.msra.mxu0 %v335
    %747 = vmatprep.subr.mxu0 %v340
    %748 = vmatpush1.msra.mxu0 %v339
    %749 = vmatprep.subr.mxu0 %v344
    %750 = vmatpush1.msra.mxu0 %v343
    %751 = vmatprep.subr.mxu0 %v348
    %752 = vmatpush1.msra.mxu0 %v347
    %753 = vmatprep.subr.mxu0 %v352
    %754 = vmatpush1.msra.mxu0 %v351
    %755 = vmatprep.subr.mxu0 %v356
    %756 = vmatpush1.msra.mxu0 %v355
    %757 = vmatprep.subr.mxu0 %v360
    %758 = vmatpush1.msra.mxu0 %v359
    %759 = vmatprep.subr.mxu0 %v364
    %760 = vmatpush1.msra.mxu0 %v363
    %761 = vmatprep.subr.mxu0 %v368
    %762 = vmatpush1.msra.mxu0 %v367
    %763 = vmatprep.subr.mxu0 %v372
    %764 = vmatpush1.msra.mxu0 %v371
    %765 = vmatprep.subr.mxu0 %v376
    %766 = vmatpush1.msra.mxu0 %v375
    %767 = vmatprep.subr.mxu0 %v380
    %768 = vmatpush1.msra.mxu0 %v379
    %769 = vmatprep.subr.mxu0 %v384
    %770 = vmatpush1.msra.mxu0 %v383
    %771 = vmatprep.subr.mxu0 %v388
    %772 = vmatpush1.msra.mxu0 %v387
    %773 = vmatprep.subr.mxu0 0.0
    %774 = vmatpush1.msra.mxu0 0.0
    %775 = vmatprep.subr.mxu0 0.0
    %776 = vmatpush1.msra.mxu0 0.0
    %777 = vmatprep.subr.mxu0 0.0
    %778 = vmatpush1.msra.mxu0 0.0
    %779 = vmatprep.subr.mxu0 0.0
    %780 = vmatpush1.msra.mxu0 0.0
    %781 = vmatprep.subr.mxu0 0.0
    %782 = vmatpush1.msra.mxu0 0.0
    %783 = vmatprep.subr.mxu0 0.0
    %784 = vmatpush1.msra.mxu0 0.0
    %785 = vmatprep.subr.mxu0 0.0
    %786 = vmatpush1.msra.mxu0 0.0
    %787 = vmatprep.subr.mxu0 0.0
    %788 = vmatpush1.msra.mxu0 0.0
    %789 = vmatprep.subr.mxu0 0.0
    %790 = vmatpush1.msra.mxu0 0.0
    %791 = vmatprep.subr.mxu0 0.0
    %792 = vmatpush1.msra.mxu0 0.0
    %793 = vmatprep.subr.mxu0 0.0
    %794 = vmatpush1.msra.mxu0 0.0
    %795 = vmatprep.subr.mxu0 0.0
    %796 = vmatpush1.msra.mxu0 0.0
    %797 = vmatprep.subr.mxu0 0.0
    %798 = vmatpush1.msra.mxu0 0.0
    %799 = vmatprep.subr.mxu0 0.0
    %800 = vmatpush1.msra.mxu0 0.0
    %801 = vmatprep.subr.mxu0 0.0
    %802 = vmatpush1.msra.mxu0 0.0
    %803 = vmatprep.subr.mxu0 0.0
    %804 = vmatpush1.msra.mxu0 0.0
    %805 = vmatprep.mubr.f32.mxu0 0.0
    %806 = vmatmul.mubr.f32.gmra.mrb[0].mxu0 %v572
    %v807 = vpop.f32.mrb[0].mxu0
    %v808 = vadd.f32 0.0, %v807
    %v809 = vpop.f32.mrb[0].mxu0
    %v810 = vadd.f32 0.0, %v809
    %811 = vdwg.mxu0
    %v816 = vrot.slane %v737, 6
    %v817 = vrot.slane %v739, 6
    %v818 = vrot.slane %v808, 6
    %v819 = vrot.slane %v810, 6
    %v824 = vadd.f32 %v152, %v816
    %v825 = vadd.f32 %v154, %v817
    %v826 = vadd.f32 %v229, %v818
    %v827 = vadd.f32 %v231, %v819
    %v828 = vmul.f32 %v824, 0.5
    %v829 = vtanh.pop %v828
    %v830 = vmul.f32 %v829, 0.5
    %v831 = vadd.f32 %v830, 0.5
    %v832 = vmul.f32 %v825, 0.5
    %v833 = vtanh.pop %v832
    %v834 = vmul.f32 %v833, 0.5
    %v835 = vadd.f32 %v834, 0.5
    %v836 = vtanh.pop %v826
    %v837 = vmul.f32 %v827, 0.5
    %v838 = vtanh.pop %v837
    %v839 = vmul.f32 %v838, 0.5
    %v840 = vadd.f32 %v839, 0.5
    %v842 = vrot.slane %v570, 6
    %v844 = vmul.f32 %v835, %v842
    %v845 = vmul.f32 %v831, %v836
    %v846 = vadd.f32 %v844, %v845
    %v847 = vtanh.pop %v846
    %v848 = vmul.f32 %v840, %v847
    %v850 = vrot.slane %v669, 6
    %851 = vrot.lane.b32.xlu0 %v850, 32
    %v852 = vpop.permute.xlu0 %851
    %v854 = vrot.slane %v848, 2
    %v855 = vrot.slane %v852, 2
    %v857 = vsel %vm573, %v855, 0
    %859 = vmatprep.subr.mxu0 0.0
    %860 = vmatpush1.msra.mxu0 %v389
    %861 = vmatprep.subr.mxu0 0.0
    %862 = vmatpush1.msra.mxu0 %v390
    %863 = vmatprep.subr.mxu0 0.0
    %864 = vmatpush1.msra.mxu0 %v391
    %865 = vmatprep.subr.mxu0 0.0
    %866 = vmatpush1.msra.mxu0 %v392
    %867 = vmatprep.subr.mxu0 0.0
    %868 = vmatpush1.msra.mxu0 %v393
    %869 = vmatprep.subr.mxu0 0.0
    %870 = vmatpush1.msra.mxu0 %v394
    %871 = vmatprep.subr.mxu0 0.0
    %872 = vmatpush1.msra.mxu0 %v395
    %873 = vmatprep.subr.mxu0 0.0
    %874 = vmatpush1.msra.mxu0 %v396
    %875 = vmatprep.subr.mxu0 0.0
    %876 = vmatpush1.msra.mxu0 %v397
    %877 = vmatprep.subr.mxu0 0.0
    %878 = vmatpush1.msra.mxu0 %v398
    %879 = vmatprep.subr.mxu0 0.0
    %880 = vmatpush1.msra.mxu0 %v399
    %881 = vmatprep.subr.mxu0 0.0
    %882 = vmatpush1.msra.mxu0 %v400
    %883 = vmatprep.subr.mxu0 0.0
    %884 = vmatpush1.msra.mxu0 %v401
    %885 = vmatprep.subr.mxu0 0.0
    %886 = vmatpush1.msra.mxu0 %v402
    %887 = vmatprep.subr.mxu0 0.0
    %888 = vmatpush1.msra.mxu0 %v403
    %889 = vmatprep.subr.mxu0 0.0
    %890 = vmatpush1.msra.mxu0 %v404
    %891 = vmatprep.subr.mxu0 0.0
    %892 = vmatpush1.msra.mxu0 %v405
    %893 = vmatprep.subr.mxu0 0.0
    %894 = vmatpush1.msra.mxu0 %v406
    %895 = vmatprep.subr.mxu0 0.0
    %896 = vmatpush1.msra.mxu0 %v407
    %897 = vmatprep.subr.mxu0 0.0
    %898 = vmatpush1.msra.mxu0 %v408
    %899 = vmatprep.subr.mxu0 0.0
    %900 = vmatpush1.msra.mxu0 0.0
    %901 = vmatprep.subr.mxu0 0.0
    %902 = vmatpush1.msra.mxu0 0.0
    %903 = vmatprep.subr.mxu0 0.0
    %904 = vmatpush1.msra.mxu0 0.0
    %905 = vmatprep.subr.mxu0 0.0
    %906 = vmatpush1.msra.mxu0 0.0
    %907 = vmatprep.subr.mxu0 0.0
    %908 = vmatpush1.msra.mxu0 0.0
    %909 = vmatprep.subr.mxu0 0.0
    %910 = vmatpush1.msra.mxu0 0.0
    %911 = vmatprep.subr.mxu0 0.0
    %912 = vmatpush1.msra.mxu0 0.0
    %913 = vmatprep.subr.mxu0 0.0
    %914 = vmatpush1.msra.mxu0 0.0
    %915 = vmatprep.subr.mxu0 0.0
    %916 = vmatpush1.msra.mxu0 0.0
    %917 = vmatprep.subr.mxu0 0.0
    %918 = vmatpush1.msra.mxu0 0.0
    %919 = vmatprep.subr.mxu0 0.0
    %920 = vmatpush1.msra.mxu0 0.0
    %921 = vmatprep.subr.mxu0 0.0
    %922 = vmatpush1.msra.mxu0 0.0
    %923 = vmatprep.mubr.f32.mxu0 %v857
    %924 = vmatmul.mubr.f32.gmra.mrb[0].mxu0 %v854
    %v925 = vpop.f32.mrb[0].mxu0
    %v926 = vadd.f32 0.0, %v925
    %v927 = vpop.f32.mrb[0].mxu0
    %928 = vdwg.mxu0
    %v930 = vrot.slane %v926, 6
    %v932 = vadd.f32 %v317, %v930
    %v933 = vmul.f32 %v932, 0.5
    %v934 = vtanh.pop %v933
    %v935 = vmul.f32 %v934, 0.5
    %v936 = vadd.f32 %v935, 0.5
    %v937 = vtanh.pop %v932
    %v939 = vrot.slane %v663, 6
    %v941 = vmul.f32 %v936, %v939
    %943 = vrot.lane.b32.xlu0 %v937, 64
    %v944 = vpop.permute.xlu0 %943
    %v946 = vmul.f32 %v936, %v944
    %948 = vrot.lane.b32.xlu0 %v946, 32
    %v949 = vpop.permute.xlu0 %948
    %v951 = vadd.f32 %v941, %v949
    %v952 = vtanh.pop %v951
    %954 = vrot.lane.b32.xlu0 %v952, 64
    %v955 = vpop.permute.xlu0 %954
    %v957 = vmul.f32 %v936, %v955
    %958 = vmatprep.subr.mxu0 %v326
    %959 = vmatpush1.msra.mxu0 %v325
    %960 = vmatprep.subr.mxu0 %v330
    %961 = vmatpush1.msra.mxu0 %v329
    %962 = vmatprep.subr.mxu0 %v334
    %963 = vmatpush1.msra.mxu0 %v333
    %964 = vmatprep.subr.mxu0 %v338
    %965 = vmatpush1.msra.mxu0 %v337
    %966 = vmatprep.subr.mxu0 %v342
    %967 = vmatpush1.msra.mxu0 %v341
    %968 = vmatprep.subr.mxu0 %v346
    %969 = vmatpush1.msra.mxu0 %v345
    %970 = vmatprep.subr.mxu0 %v350
    %971 = vmatpush1.msra.mxu0 %v349
    %972 = vmatprep.subr.mxu0 %v354
    %973 = vmatpush1.msra.mxu0 %v353
    %974 = vmatprep.subr.mxu0 %v358
    %975 = vmatpush1.msra.mxu0 %v357
    %976 = vmatprep.subr.mxu0 %v362
    %977 = vmatpush1.msra.mxu0 %v361
    %978 = vmatprep.subr.mxu0 %v366
    %979 = vmatpush1.msra.mxu0 %v365
    %980 = vmatprep.subr.mxu0 %v370
    %981 = vmatpush1.msra.mxu0 %v369
    %982 = vmatprep.subr.mxu0 %v374
    %983 = vmatpush1.msra.mxu0 %v373
    %984 = vmatprep.subr.mxu0 %v378
    %985 = vmatpush1.msra.mxu0 %v377
    %986 = vmatprep.subr.mxu0 %v382
    %987 = vmatpush1.msra.mxu0 %v381
    %988 = vmatprep.subr.mxu0 %v386
    %989 = vmatpush1.msra.mxu0 %v385
    %990 = vmatprep.subr.mxu0 0.0
    %991 = vmatpush1.msra.mxu0 0.0
    %992 = vmatprep.subr.mxu0 0.0
    %993 = vmatpush1.msra.mxu0 0.0
    %994 = vmatprep.subr.mxu0 0.0
    %995 = vmatpush1.msra.mxu0 0.0
    %996 = vmatprep.subr.mxu0 0.0
    %997 = vmatpush1.msra.mxu0 0.0
    %998 = vmatprep.subr.mxu0 0.0
    %999 = vmatpush1.msra.mxu0 0.0
    %1000 = vmatprep.subr.mxu0 0.0
    %1001 = vmatpush1.msra.mxu0 0.0
    %1002 = vmatprep.subr.mxu0 0.0
    %1003 = vmatpush1.msra.mxu0 0.0
    %1004 = vmatprep.subr.mxu0 0.0
    %1005 = vmatpush1.msra.mxu0 0.0
    %1006 = vmatprep.subr.mxu0 0.0
    %1007 = vmatpush1.msra.mxu0 0.0
    %1008 = vmatprep.subr.mxu0 0.0
    %1009 = vmatpush1.msra.mxu0 0.0
    %1010 = vmatprep.subr.mxu0 0.0
    %1011 = vmatpush1.msra.mxu0 0.0
    %1012 = vmatprep.subr.mxu0 0.0
    %1013 = vmatpush1.msra.mxu0 0.0
    %1014 = vmatprep.subr.mxu0 0.0
    %1015 = vmatpush1.msra.mxu0 0.0
    %1016 = vmatprep.subr.mxu0 0.0
    %1017 = vmatpush1.msra.mxu0 0.0
    %1018 = vmatprep.subr.mxu0 0.0
    %1019 = vmatpush1.msra.mxu0 0.0
    %1020 = vmatprep.subr.mxu0 0.0
    %1021 = vmatpush1.msra.mxu0 0.0
    %1022 = vmatprep.mubr.f32.mxu0 0.0
    %1023 = vmatmul.mubr.f32.gmra.mrb[0].mxu0 %v854
    %v1024 = vpop.f32.mrb[0].mxu0
    %v1025 = vadd.f32 0.0, %v1024
    %v1026 = vpop.f32.mrb[0].mxu0
    %v1027 = vadd.f32 0.0, %v1026
    %1028 = vdwg.mxu0
    %1029 = vmatprep.subr.mxu0 %v328
    %1030 = vmatpush1.msra.mxu0 %v327
    %1031 = vmatprep.subr.mxu0 %v332
    %1032 = vmatpush1.msra.mxu0 %v331
    %1033 = vmatprep.subr.mxu0 %v336
    %1034 = vmatpush1.msra.mxu0 %v335
    %1035 = vmatprep.subr.mxu0 %v340
    %1036 = vmatpush1.msra.mxu0 %v339
    %1037 = vmatprep.subr.mxu0 %v344
    %1038 = vmatpush1.msra.mxu0 %v343
    %1039 = vmatprep.subr.mxu0 %v348
    %1040 = vmatpush1.msra.mxu0 %v347
    %1041 = vmatprep.subr.mxu0 %v352
    %1042 = vmatpush1.msra.mxu0 %v351
    %1043 = vmatprep.subr.mxu0 %v356
    %1044 = vmatpush1.msra.mxu0 %v355
    %1045 = vmatprep.subr.mxu0 %v360
    %1046 = vmatpush1.msra.mxu0 %v359
    %1047 = vmatprep.subr.mxu0 %v364
    %1048 = vmatpush1.msra.mxu0 %v363
    %1049 = vmatprep.subr.mxu0 %v368
    %1050 = vmatpush1.msra.mxu0 %v367
    %1051 = vmatprep.subr.mxu0 %v372
    %1052 = vmatpush1.msra.mxu0 %v371
    %1053 = vmatprep.subr.mxu0 %v376
    %1054 = vmatpush1.msra.mxu0 %v375
    %1055 = vmatprep.subr.mxu0 %v380
    %1056 = vmatpush1.msra.mxu0 %v379
    %1057 = vmatprep.subr.mxu0 %v384
    %1058 = vmatpush1.msra.mxu0 %v383
    %1059 = vmatprep.subr.mxu0 %v388
    %1060 = vmatpush1.msra.mxu0 %v387
    %1061 = vmatprep.subr.mxu0 0.0
    %1062 = vmatpush1.msra.mxu0 0.0
    %1063 = vmatprep.subr.mxu0 0.0
    %1064 = vmatpush1.msra.mxu0 0.0
    %1065 = vmatprep.subr.mxu0 0.0
    %1066 = vmatpush1.msra.mxu0 0.0
    %1067 = vmatprep.subr.mxu0 0.0
    %1068 = vmatpush1.msra.mxu0 0.0
    %1069 = vmatprep.subr.mxu0 0.0
    %1070 = vmatpush1.msra.mxu0 0.0
    %1071 = vmatprep.subr.mxu0 0.0
    %1072 = vmatpush1.msra.mxu0 0.0
    %1073 = vmatprep.subr.mxu0 0.0
    %1074 = vmatpush1.msra.mxu0 0.0
    %1075 = vmatprep.subr.mxu0 0.0
    %1076 = vmatpush1.msra.mxu0 0.0
    %1077 = vmatprep.subr.mxu0 0.0
    %1078 = vmatpush1.msra.mxu0 0.0
    %1079 = vmatprep.subr.mxu0 0.0
    %1080 = vmatpush1.msra.mxu0 0.0
    %1081 = vmatprep.subr.mxu0 0.0
    %1082 = vmatpush1.msra.mxu0 0.0
    %1083 = vmatprep.subr.mxu0 0.0
    %1084 = vmatpush1.msra.mxu0 0.0
    %1085 = vmatprep.subr.mxu0 0.0
    %1086 = vmatpush1.msra.mxu0 0.0
    %1087 = vmatprep.subr.mxu0 0.0
    %1088 = vmatpush1.msra.mxu0 0.0
    %1089 = vmatprep.subr.mxu0 0.0
    %1090 = vmatpush1.msra.mxu0 0.0
    %1091 = vmatprep.subr.mxu0 0.0
    %1092 = vmatpush1.msra.mxu0 0.0
    %1093 = vmatprep.mubr.f32.mxu0 0.0
    %1094 = vmatmul.mubr.f32.gmra.mrb[0].mxu0 %v854
    %v1095 = vpop.f32.mrb[0].mxu0
    %v1096 = vadd.f32 0.0, %v1095
    %v1097 = vpop.f32.mrb[0].mxu0
    %v1098 = vadd.f32 0.0, %v1097
    %1099 = vdwg.mxu0
    %v1104 = vrot.slane %v1025, 4
    %v1105 = vrot.slane %v1027, 4
    %v1106 = vrot.slane %v1096, 4
    %v1107 = vrot.slane %v1098, 4
    %v1112 = vadd.f32 %v152, %v1104
    %v1113 = vadd.f32 %v154, %v1105
    %v1114 = vadd.f32 %v229, %v1106
    %v1115 = vadd.f32 %v231, %v1107
    %v1116 = vmul.f32 %v1112, 0.5
    %v1117 = vtanh.pop %v1116
    %v1118 = vmul.f32 %v1117, 0.5
    %v1119 = vadd.f32 %v1118, 0.5
    %v1120 = vmul.f32 %v1113, 0.5
    %v1121 = vtanh.pop %v1120
    %v1122 = vmul.f32 %v1121, 0.5
    %v1123 = vadd.f32 %v1122, 0.5
    %v1124 = vtanh.pop %v1114
    %v1125 = vmul.f32 %v1115, 0.5
    %v1126 = vtanh.pop %v1125
    %v1127 = vmul.f32 %v1126, 0.5
    %v1128 = vadd.f32 %v1127, 0.5
    %v1130 = vrot.slane %v846, 6
    %v1132 = vmul.f32 %v1123, %v1130
    %v1133 = vmul.f32 %v1119, %v1124
    %v1134 = vadd.f32 %v1132, %v1133
    %v1135 = vtanh.pop %v1134
    %v1136 = vmul.f32 %v1128, %v1135
    %v1138 = vrot.slane %v957, 6
    %1139 = vrot.lane.b32.xlu0 %v1138, 32
    %v1140 = vpop.permute.xlu0 %1139
    %v1142 = vrot.slane %v1136, 4
    %v1143 = vrot.slane %v1140, 4
    %v1145 = vsel %vm573, %v1143, 0
    %1147 = vmatprep.subr.mxu0 0.0
    %1148 = vmatpush1.msra.mxu0 %v389
    %1149 = vmatprep.subr.mxu0 0.0
    %1150 = vmatpush1.msra.mxu0 %v390
    %1151 = vmatprep.subr.mxu0 0.0
    %1152 = vmatpush1.msra.mxu0 %v391
    %1153 = vmatprep.subr.mxu0 0.0
    %1154 = vmatpush1.msra.mxu0 %v392
    %1155 = vmatprep.subr.mxu0 0.0
    %1156 = vmatpush1.msra.mxu0 %v393
    %1157 = vmatprep.subr.mxu0 0.0
    %1158 = vmatpush1.msra.mxu0 %v394
    %1159 = vmatprep.subr.mxu0 0.0
    %1160 = vmatpush1.msra.mxu0 %v395
    %1161 = vmatprep.subr.mxu0 0.0
    %1162 = vmatpush1.msra.mxu0 %v396
    %1163 = vmatprep.subr.mxu0 0.0
    %1164 = vmatpush1.msra.mxu0 %v397
    %1165 = vmatprep.subr.mxu0 0.0
    %1166 = vmatpush1.msra.mxu0 %v398
    %1167 = vmatprep.subr.mxu0 0.0
    %1168 = vmatpush1.msra.mxu0 %v399
    %1169 = vmatprep.subr.mxu0 0.0
    %1170 = vmatpush1.msra.mxu0 %v400
    %1171 = vmatprep.subr.mxu0 0.0
    %1172 = vmatpush1.msra.mxu0 %v401
    %1173 = vmatprep.subr.mxu0 0.0
    %1174 = vmatpush1.msra.mxu0 %v402
    %1175 = vmatprep.subr.mxu0 0.0
    %1176 = vmatpush1.msra.mxu0 %v403
    %1177 = vmatprep.subr.mxu0 0.0
    %1178 = vmatpush1.msra.mxu0 %v404
    %1179 = vmatprep.subr.mxu0 0.0
    %1180 = vmatpush1.msra.mxu0 %v405
    %1181 = vmatprep.subr.mxu0 0.0
    %1182 = vmatpush1.msra.mxu0 %v406
    %1183 = vmatprep.subr.mxu0 0.0
    %1184 = vmatpush1.msra.mxu0 %v407
    %1185 = vmatprep.subr.mxu0 0.0
    %1186 = vmatpush1.msra.mxu0 %v408
    %1187 = vmatprep.subr.mxu0 0.0
    %1188 = vmatpush1.msra.mxu0 0.0
    %1189 = vmatprep.subr.mxu0 0.0
    %1190 = vmatpush1.msra.mxu0 0.0
    %1191 = vmatprep.subr.mxu0 0.0
    %1192 = vmatpush1.msra.mxu0 0.0
    %1193 = vmatprep.subr.mxu0 0.0
    %1194 = vmatpush1.msra.mxu0 0.0
    %1195 = vmatprep.subr.mxu0 0.0
    %1196 = vmatpush1.msra.mxu0 0.0
    %1197 = vmatprep.subr.mxu0 0.0
    %1198 = vmatpush1.msra.mxu0 0.0
    %1199 = vmatprep.subr.mxu0 0.0
    %1200 = vmatpush1.msra.mxu0 0.0
    %1201 = vmatprep.subr.mxu0 0.0
    %1202 = vmatpush1.msra.mxu0 0.0
    %1203 = vmatprep.subr.mxu0 0.0
    %1204 = vmatpush1.msra.mxu0 0.0
    %1205 = vmatprep.subr.mxu0 0.0
    %1206 = vmatpush1.msra.mxu0 0.0
    %1207 = vmatprep.subr.mxu0 0.0
    %1208 = vmatpush1.msra.mxu0 0.0
    %1209 = vmatprep.subr.mxu0 0.0
    %1210 = vmatpush1.msra.mxu0 0.0
    %1211 = vmatprep.mubr.f32.mxu0 %v1145
    %1212 = vmatmul.mubr.f32.gmra.mrb[0].mxu0 %v1142
    %v1213 = vpop.f32.mrb[0].mxu0
    %v1214 = vadd.f32 0.0, %v1213
    %v1215 = vpop.f32.mrb[0].mxu0
    %1216 = vdwg.mxu0
    %v1218 = vrot.slane %v1214, 4
    %v1220 = vadd.f32 %v317, %v1218
    %v1221 = vmul.f32 %v1220, 0.5
    %v1222 = vtanh.pop %v1221
    %v1223 = vmul.f32 %v1222, 0.5
    %v1224 = vadd.f32 %v1223, 0.5
    %v1225 = vtanh.pop %v1220
    %v1227 = vrot.slane %v951, 6
    %v1229 = vmul.f32 %v1224, %v1227
    %1231 = vrot.lane.b32.xlu0 %v1225, 64
    %v1232 = vpop.permute.xlu0 %1231
    %v1234 = vmul.f32 %v1224, %v1232
    %1236 = vrot.lane.b32.xlu0 %v1234, 32
    %v1237 = vpop.permute.xlu0 %1236
    %v1239 = vadd.f32 %v1229, %v1237
    %v1240 = vtanh.pop %v1239
    %1242 = vrot.lane.b32.xlu0 %v1240, 64
    %v1243 = vpop.permute.xlu0 %1242
    %v1245 = vmul.f32 %v1224, %v1243
    %1246 = vmatprep.subr.mxu0 %v326
    %1247 = vmatpush1.msra.mxu0 %v325
    %1248 = vmatprep.subr.mxu0 %v330
    %1249 = vmatpush1.msra.mxu0 %v329
    %1250 = vmatprep.subr.mxu0 %v334
    %1251 = vmatpush1.msra.mxu0 %v333
    %1252 = vmatprep.subr.mxu0 %v338
    %1253 = vmatpush1.msra.mxu0 %v337
    %1254 = vmatprep.subr.mxu0 %v342
    %1255 = vmatpush1.msra.mxu0 %v341
    %1256 = vmatprep.subr.mxu0 %v346
    %1257 = vmatpush1.msra.mxu0 %v345
    %1258 = vmatprep.subr.mxu0 %v350
    %1259 = vmatpush1.msra.mxu0 %v349
    %1260 = vmatprep.subr.mxu0 %v354
    %1261 = vmatpush1.msra.mxu0 %v353
    %1262 = vmatprep.subr.mxu0 %v358
    %1263 = vmatpush1.msra.mxu0 %v357
    %1264 = vmatprep.subr.mxu0 %v362
    %1265 = vmatpush1.msra.mxu0 %v361
    %1266 = vmatprep.subr.mxu0 %v366
    %1267 = vmatpush1.msra.mxu0 %v365
    %1268 = vmatprep.subr.mxu0 %v370
    %1269 = vmatpush1.msra.mxu0 %v369
    %1270 = vmatprep.subr.mxu0 %v374
    %1271 = vmatpush1.msra.mxu0 %v373
    %1272 = vmatprep.subr.mxu0 %v378
    %1273 = vmatpush1.msra.mxu0 %v377
    %1274 = vmatprep.subr.mxu0 %v382
    %1275 = vmatpush1.msra.mxu0 %v381
    %1276 = vmatprep.subr.mxu0 %v386
    %1277 = vmatpush1.msra.mxu0 %v385
    %1278 = vmatprep.subr.mxu0 0.0
    %1279 = vmatpush1.msra.mxu0 0.0
    %1280 = vmatprep.subr.mxu0 0.0
    %1281 = vmatpush1.msra.mxu0 0.0
    %1282 = vmatprep.subr.mxu0 0.0
    %1283 = vmatpush1.msra.mxu0 0.0
    %1284 = vmatprep.subr.mxu0 0.0
    %1285 = vmatpush1.msra.mxu0 0.0
    %1286 = vmatprep.subr.mxu0 0.0
    %1287 = vmatpush1.msra.mxu0 0.0
    %1288 = vmatprep.subr.mxu0 0.0
    %1289 = vmatpush1.msra.mxu0 0.0
    %1290 = vmatprep.subr.mxu0 0.0
    %1291 = vmatpush1.msra.mxu0 0.0
    %1292 = vmatprep.subr.mxu0 0.0
    %1293 = vmatpush1.msra.mxu0 0.0
    %1294 = vmatprep.subr.mxu0 0.0
    %1295 = vmatpush1.msra.mxu0 0.0
    %1296 = vmatprep.subr.mxu0 0.0
    %1297 = vmatpush1.msra.mxu0 0.0
    %1298 = vmatprep.subr.mxu0 0.0
    %1299 = vmatpush1.msra.mxu0 0.0
    %1300 = vmatprep.subr.mxu0 0.0
    %1301 = vmatpush1.msra.mxu0 0.0
    %1302 = vmatprep.subr.mxu0 0.0
    %1303 = vmatpush1.msra.mxu0 0.0
    %1304 = vmatprep.subr.mxu0 0.0
    %1305 = vmatpush1.msra.mxu0 0.0
    %1306 = vmatprep.subr.mxu0 0.0
    %1307 = vmatpush1.msra.mxu0 0.0
    %1308 = vmatprep.subr.mxu0 0.0
    %1309 = vmatpush1.msra.mxu0 0.0
    %1310 = vmatprep.mubr.f32.mxu0 0.0
    %1311 = vmatmul.mubr.f32.gmra.mrb[0].mxu0 %v1142
    %v1312 = vpop.f32.mrb[0].mxu0
    %v1313 = vadd.f32 0.0, %v1312
    %v1314 = vpop.f32.mrb[0].mxu0
    %v1315 = vadd.f32 0.0, %v1314
    %1316 = vdwg.mxu0
    %1317 = vmatprep.subr.mxu0 %v328
    %1318 = vmatpush1.msra.mxu0 %v327
    %1319 = vmatprep.subr.mxu0 %v332
    %1320 = vmatpush1.msra.mxu0 %v331
    %1321 = vmatprep.subr.mxu0 %v336
    %1322 = vmatpush1.msra.mxu0 %v335
    %1323 = vmatprep.subr.mxu0 %v340
    %1324 = vmatpush1.msra.mxu0 %v339
    %1325 = vmatprep.subr.mxu0 %v344
    %1326 = vmatpush1.msra.mxu0 %v343
    %1327 = vmatprep.subr.mxu0 %v348
    %1328 = vmatpush1.msra.mxu0 %v347
    %1329 = vmatprep.subr.mxu0 %v352
    %1330 = vmatpush1.msra.mxu0 %v351
    %1331 = vmatprep.subr.mxu0 %v356
    %1332 = vmatpush1.msra.mxu0 %v355
    %1333 = vmatprep.subr.mxu0 %v360
    %1334 = vmatpush1.msra.mxu0 %v359
    %1335 = vmatprep.subr.mxu0 %v364
    %1336 = vmatpush1.msra.mxu0 %v363
    %1337 = vmatprep.subr.mxu0 %v368
    %1338 = vmatpush1.msra.mxu0 %v367
    %1339 = vmatprep.subr.mxu0 %v372
    %1340 = vmatpush1.msra.mxu0 %v371
    %1341 = vmatprep.subr.mxu0 %v376
    %1342 = vmatpush1.msra.mxu0 %v375
    %1343 = vmatprep.subr.mxu0 %v380
    %1344 = vmatpush1.msra.mxu0 %v379
    %1345 = vmatprep.subr.mxu0 %v384
    %1346 = vmatpush1.msra.mxu0 %v383
    %1347 = vmatprep.subr.mxu0 %v388
    %1348 = vmatpush1.msra.mxu0 %v387
    %1349 = vmatprep.subr.mxu0 0.0
    %1350 = vmatpush1.msra.mxu0 0.0
    %1351 = vmatprep.subr.mxu0 0.0
    %1352 = vmatpush1.msra.mxu0 0.0
    %1353 = vmatprep.subr.mxu0 0.0
    %1354 = vmatpush1.msra.mxu0 0.0
    %1355 = vmatprep.subr.mxu0 0.0
    %1356 = vmatpush1.msra.mxu0 0.0
    %1357 = vmatprep.subr.mxu0 0.0
    %1358 = vmatpush1.msra.mxu0 0.0
    %1359 = vmatprep.subr.mxu0 0.0
    %1360 = vmatpush1.msra.mxu0 0.0
    %1361 = vmatprep.subr.mxu0 0.0
    %1362 = vmatpush1.msra.mxu0 0.0
    %1363 = vmatprep.subr.mxu0 0.0
    %1364 = vmatpush1.msra.mxu0 0.0
    %1365 = vmatprep.subr.mxu0 0.0
    %1366 = vmatpush1.msra.mxu0 0.0
    %1367 = vmatprep.subr.mxu0 0.0
    %1368 = vmatpush1.msra.mxu0 0.0
    %1369 = vmatprep.subr.mxu0 0.0
    %1370 = vmatpush1.msra.mxu0 0.0
    %1371 = vmatprep.subr.mxu0 0.0
    %1372 = vmatpush1.msra.mxu0 0.0
    %1373 = vmatprep.subr.mxu0 0.0
    %1374 = vmatpush1.msra.mxu0 0.0
    %1375 = vmatprep.subr.mxu0 0.0
    %1376 = vmatpush1.msra.mxu0 0.0
    %1377 = vmatprep.subr.mxu0 0.0
    %1378 = vmatpush1.msra.mxu0 0.0
    %1379 = vmatprep.subr.mxu0 0.0
    %1380 = vmatpush1.msra.mxu0 0.0
    %1381 = vmatprep.mubr.f32.mxu0 0.0
    %1382 = vmatmul.mubr.f32.gmra.mrb[0].mxu0 %v1142
    %v1383 = vpop.f32.mrb[0].mxu0
    %v1384 = vadd.f32 0.0, %v1383
    %v1385 = vpop.f32.mrb[0].mxu0
    %v1386 = vadd.f32 0.0, %v1385
    %1387 = vdwg.mxu0
    %v1392 = vrot.slane %v1313, 2
    %v1393 = vrot.slane %v1315, 2
    %v1394 = vrot.slane %v1384, 2
    %v1395 = vrot.slane %v1386, 2
    %v1400 = vadd.f32 %v152, %v1392
    %v1401 = vadd.f32 %v154, %v1393
    %v1402 = vadd.f32 %v229, %v1394
    %v1403 = vadd.f32 %v231, %v1395
    %v1404 = vmul.f32 %v1400, 0.5
    %v1405 = vtanh.pop %v1404
    %v1406 = vmul.f32 %v1405, 0.5
    %v1407 = vadd.f32 %v1406, 0.5
    %v1408 = vmul.f32 %v1401, 0.5
    %v1409 = vtanh.pop %v1408
    %v1410 = vmul.f32 %v1409, 0.5
    %v1411 = vadd.f32 %v1410, 0.5
    %v1412 = vtanh.pop %v1402
    %v1413 = vmul.f32 %v1403, 0.5
    %v1414 = vtanh.pop %v1413
    %v1415 = vmul.f32 %v1414, 0.5
    %v1416 = vadd.f32 %v1415, 0.5
    %v1418 = vrot.slane %v1134, 6
    %v1420 = vmul.f32 %v1411, %v1418
    %v1421 = vmul.f32 %v1407, %v1412
    %v1422 = vadd.f32 %v1420, %v1421
    %v1423 = vtanh.pop %v1422
    %v1424 = vmul.f32 %v1416, %v1423
    %v1426 = vrot.slane %v1245, 6
    %1427 = vrot.lane.b32.xlu0 %v1426, 32
    %v1428 = vpop.permute.xlu0 %1427
    %v1430 = vrot.slane %v1424, 6
    %v1431 = vrot.slane %v1428, 6
    %v1433 = vsel %vm573, %v1431, 0
    %1435 = vmatprep.subr.mxu0 0.0
    %1436 = vmatpush1.msra.mxu0 %v389
    %1437 = vmatprep.subr.mxu0 0.0
    %1438 = vmatpush1.msra.mxu0 %v390
    %1439 = vmatprep.subr.mxu0 0.0
    %1440 = vmatpush1.msra.mxu0 %v391
    %1441 = vmatprep.subr.mxu0 0.0
    %1442 = vmatpush1.msra.mxu0 %v392
    %1443 = vmatprep.subr.mxu0 0.0
    %1444 = vmatpush1.msra.mxu0 %v393
    %1445 = vmatprep.subr.mxu0 0.0
    %1446 = vmatpush1.msra.mxu0 %v394
    %1447 = vmatprep.subr.mxu0 0.0
    %1448 = vmatpush1.msra.mxu0 %v395
    %1449 = vmatprep.subr.mxu0 0.0
    %1450 = vmatpush1.msra.mxu0 %v396
    %1451 = vmatprep.subr.mxu0 0.0
    %1452 = vmatpush1.msra.mxu0 %v397
    %1453 = vmatprep.subr.mxu0 0.0
    %1454 = vmatpush1.msra.mxu0 %v398
    %1455 = vmatprep.subr.mxu0 0.0
    %1456 = vmatpush1.msra.mxu0 %v399
    %1457 = vmatprep.subr.mxu0 0.0
    %1458 = vmatpush1.msra.mxu0 %v400
    %1459 = vmatprep.subr.mxu0 0.0
    %1460 = vmatpush1.msra.mxu0 %v401
    %1461 = vmatprep.subr.mxu0 0.0
    %1462 = vmatpush1.msra.mxu0 %v402
    %1463 = vmatprep.subr.mxu0 0.0
    %1464 = vmatpush1.msra.mxu0 %v403
    %1465 = vmatprep.subr.mxu0 0.0
    %1466 = vmatpush1.msra.mxu0 %v404
    %1467 = vmatprep.subr.mxu0 0.0
    %1468 = vmatpush1.msra.mxu0 %v405
    %1469 = vmatprep.subr.mxu0 0.0
    %1470 = vmatpush1.msra.mxu0 %v406
    %1471 = vmatprep.subr.mxu0 0.0
    %1472 = vmatpush1.msra.mxu0 %v407
    %1473 = vmatprep.subr.mxu0 0.0
    %1474 = vmatpush1.msra.mxu0 %v408
    %1475 = vmatprep.subr.mxu0 0.0
    %1476 = vmatpush1.msra.mxu0 0.0
    %1477 = vmatprep.subr.mxu0 0.0
    %1478 = vmatpush1.msra.mxu0 0.0
    %1479 = vmatprep.subr.mxu0 0.0
    %1480 = vmatpush1.msra.mxu0 0.0
    %1481 = vmatprep.subr.mxu0 0.0
    %1482 = vmatpush1.msra.mxu0 0.0
    %1483 = vmatprep.subr.mxu0 0.0
    %1484 = vmatpush1.msra.mxu0 0.0
    %1485 = vmatprep.subr.mxu0 0.0
    %1486 = vmatpush1.msra.mxu0 0.0
    %1487 = vmatprep.subr.mxu0 0.0
    %1488 = vmatpush1.msra.mxu0 0.0
    %1489 = vmatprep.subr.mxu0 0.0
    %1490 = vmatpush1.msra.mxu0 0.0
    %1491 = vmatprep.subr.mxu0 0.0
    %1492 = vmatpush1.msra.mxu0 0.0
    %1493 = vmatprep.subr.mxu0 0.0
    %1494 = vmatpush1.msra.mxu0 0.0
    %1495 = vmatprep.subr.mxu0 0.0
    %1496 = vmatpush1.msra.mxu0 0.0
    %1497 = vmatprep.subr.mxu0 0.0
    %1498 = vmatpush1.msra.mxu0 0.0
    %1499 = vmatprep.mubr.f32.mxu0 %v1433
    %1500 = vmatmul.mubr.f32.gmra.mrb[0].mxu0 %v1430
    %v1501 = vpop.f32.mrb[0].mxu0
    %v1502 = vadd.f32 0.0, %v1501
    %v1503 = vpop.f32.mrb[0].mxu0
    %1504 = vdwg.mxu0
    %v1506 = vrot.slane %v1502, 2
    %v1508 = vadd.f32 %v317, %v1506
    %v1509 = vmul.f32 %v1508, 0.5
    %v1510 = vtanh.pop %v1509
    %v1511 = vmul.f32 %v1510, 0.5
    %v1512 = vadd.f32 %v1511, 0.5
    %v1513 = vtanh.pop %v1508
    %v1515 = vrot.slane %v1239, 6
    %v1517 = vmul.f32 %v1512, %v1515
    %1519 = vrot.lane.b32.xlu0 %v1513, 64
    %v1520 = vpop.permute.xlu0 %1519
    %v1522 = vmul.f32 %v1512, %v1520
    %1524 = vrot.lane.b32.xlu0 %v1522, 32
    %v1525 = vpop.permute.xlu0 %1524
    %v1527 = vadd.f32 %v1517, %v1525
    %v1528 = vtanh.pop %v1527
    %1530 = vrot.lane.b32.xlu0 %v1528, 64
    %v1531 = vpop.permute.xlu0 %1530
    %v1533 = vmul.f32 %v1512, %v1531
    %1534 = vmatprep.subr.mxu0 %v326
    %1535 = vmatpush1.msra.mxu0 %v325
    %1536 = vmatprep.subr.mxu0 %v330
    %1537 = vmatpush1.msra.mxu0 %v329
    %1538 = vmatprep.subr.mxu0 %v334
    %1539 = vmatpush1.msra.mxu0 %v333
    %1540 = vmatprep.subr.mxu0 %v338
    %1541 = vmatpush1.msra.mxu0 %v337
    %1542 = vmatprep.subr.mxu0 %v342
    %1543 = vmatpush1.msra.mxu0 %v341
    %1544 = vmatprep.subr.mxu0 %v346
    %1545 = vmatpush1.msra.mxu0 %v345
    %1546 = vmatprep.subr.mxu0 %v350
    %1547 = vmatpush1.msra.mxu0 %v349
    %1548 = vmatprep.subr.mxu0 %v354
    %1549 = vmatpush1.msra.mxu0 %v353
    %1550 = vmatprep.subr.mxu0 %v358
    %1551 = vmatpush1.msra.mxu0 %v357
    %1552 = vmatprep.subr.mxu0 %v362
    %1553 = vmatpush1.msra.mxu0 %v361
    %1554 = vmatprep.subr.mxu0 %v366
    %1555 = vmatpush1.msra.mxu0 %v365
    %1556 = vmatprep.subr.mxu0 %v370
    %1557 = vmatpush1.msra.mxu0 %v369
    %1558 = vmatprep.subr.mxu0 %v374
    %1559 = vmatpush1.msra.mxu0 %v373
    %1560 = vmatprep.subr.mxu0 %v378
    %1561 = vmatpush1.msra.mxu0 %v377
    %1562 = vmatprep.subr.mxu0 %v382
    %1563 = vmatpush1.msra.mxu0 %v381
    %1564 = vmatprep.subr.mxu0 %v386
    %1565 = vmatpush1.msra.mxu0 %v385
    %1566 = vmatprep.subr.mxu0 0.0
    %1567 = vmatpush1.msra.mxu0 0.0
    %1568 = vmatprep.subr.mxu0 0.0
    %1569 = vmatpush1.msra.mxu0 0.0
    %1570 = vmatprep.subr.mxu0 0.0
    %1571 = vmatpush1.msra.mxu0 0.0
    %1572 = vmatprep.subr.mxu0 0.0
    %1573 = vmatpush1.msra.mxu0 0.0
    %1574 = vmatprep.subr.mxu0 0.0
    %1575 = vmatpush1.msra.mxu0 0.0
    %1576 = vmatprep.subr.mxu0 0.0
    %1577 = vmatpush1.msra.mxu0 0.0
    %1578 = vmatprep.subr.mxu0 0.0
    %1579 = vmatpush1.msra.mxu0 0.0
    %1580 = vmatprep.subr.mxu0 0.0
    %1581 = vmatpush1.msra.mxu0 0.0
    %1582 = vmatprep.subr.mxu0 0.0
    %1583 = vmatpush1.msra.mxu0 0.0
    %1584 = vmatprep.subr.mxu0 0.0
    %1585 = vmatpush1.msra.mxu0 0.0
    %1586 = vmatprep.subr.mxu0 0.0
    %1587 = vmatpush1.msra.mxu0 0.0
    %1588 = vmatprep.subr.mxu0 0.0
    %1589 = vmatpush1.msra.mxu0 0.0
    %1590 = vmatprep.subr.mxu0 0.0
    %1591 = vmatpush1.msra.mxu0 0.0
    %1592 = vmatprep.subr.mxu0 0.0
    %1593 = vmatpush1.msra.mxu0 0.0
    %1594 = vmatprep.subr.mxu0 0.0
    %1595 = vmatpush1.msra.mxu0 0.0
    %1596 = vmatprep.subr.mxu0 0.0
    %1597 = vmatpush1.msra.mxu0 0.0
    %1598 = vmatprep.mubr.f32.mxu0 0.0
    %1599 = vmatmul.mubr.f32.gmra.mrb[0].mxu0 %v1430
    %v1600 = vpop.f32.mrb[0].mxu0
    %v1601 = vadd.f32 0.0, %v1600
    %v1602 = vpop.f32.mrb[0].mxu0
    %v1603 = vadd.f32 0.0, %v1602
    %1604 = vdwg.mxu0
    %1605 = vmatprep.subr.mxu0 %v328
    %1606 = vmatpush1.msra.mxu0 %v327
    %1607 = vmatprep.subr.mxu0 %v332
    %1608 = vmatpush1.msra.mxu0 %v331
    %1609 = vmatprep.subr.mxu0 %v336
    %1610 = vmatpush1.msra.mxu0 %v335
    %1611 = vmatprep.subr.mxu0 %v340
    %1612 = vmatpush1.msra.mxu0 %v339
    %1613 = vmatprep.subr.mxu0 %v344
    %1614 = vmatpush1.msra.mxu0 %v343
    %1615 = vmatprep.subr.mxu0 %v348
    %1616 = vmatpush1.msra.mxu0 %v347
    %1617 = vmatprep.subr.mxu0 %v352
    %1618 = vmatpush1.msra.mxu0 %v351
    %1619 = vmatprep.subr.mxu0 %v356
    %1620 = vmatpush1.msra.mxu0 %v355
    %1621 = vmatprep.subr.mxu0 %v360
    %1622 = vmatpush1.msra.mxu0 %v359
    %1623 = vmatprep.subr.mxu0 %v364
    %1624 = vmatpush1.msra.mxu0 %v363
    %1625 = vmatprep.subr.mxu0 %v368
    %1626 = vmatpush1.msra.mxu0 %v367
    %1627 = vmatprep.subr.mxu0 %v372
    %1628 = vmatpush1.msra.mxu0 %v371
    %1629 = vmatprep.subr.mxu0 %v376
    %1630 = vmatpush1.msra.mxu0 %v375
    %1631 = vmatprep.subr.mxu0 %v380
    %1632 = vmatpush1.msra.mxu0 %v379
    %1633 = vmatprep.subr.mxu0 %v384
    %1634 = vmatpush1.msra.mxu0 %v383
    %1635 = vmatprep.subr.mxu0 %v388
    %1636 = vmatpush1.msra.mxu0 %v387
    %1637 = vmatprep.subr.mxu0 0.0
    %1638 = vmatpush1.msra.mxu0 0.0
    %1639 = vmatprep.subr.mxu0 0.0
    %1640 = vmatpush1.msra.mxu0 0.0
    %1641 = vmatprep.subr.mxu0 0.0
    %1642 = vmatpush1.msra.mxu0 0.0
    %1643 = vmatprep.subr.mxu0 0.0
    %1644 = vmatpush1.msra.mxu0 0.0
    %1645 = vmatprep.subr.mxu0 0.0
    %1646 = vmatpush1.msra.mxu0 0.0
    %1647 = vmatprep.subr.mxu0 0.0
    %1648 = vmatpush1.msra.mxu0 0.0
    %1649 = vmatprep.subr.mxu0 0.0
    %1650 = vmatpush1.msra.mxu0 0.0
    %1651 = vmatprep.subr.mxu0 0.0
    %1652 = vmatpush1.msra.mxu0 0.0
    %1653 = vmatprep.subr.mxu0 0.0
    %1654 = vmatpush1.msra.mxu0 0.0
    %1655 = vmatprep.subr.mxu0 0.0
    %1656 = vmatpush1.msra.mxu0 0.0
    %1657 = vmatprep.subr.mxu0 0.0
    %1658 = vmatpush1.msra.mxu0 0.0
    %1659 = vmatprep.subr.mxu0 0.0
    %1660 = vmatpush1.msra.mxu0 0.0
    %1661 = vmatprep.subr.mxu0 0.0
    %1662 = vmatpush1.msra.mxu0 0.0
    %1663 = vmatprep.subr.mxu0 0.0
    %1664 = vmatpush1.msra.mxu0 0.0
    %1665 = vmatprep.subr.mxu0 0.0
    %1666 = vmatpush1.msra.mxu0 0.0
    %1667 = vmatprep.subr.mxu0 0.0
    %1668 = vmatpush1.msra.mxu0 0.0
    %1669 = vmatprep.mubr.f32.mxu0 0.0
    %1670 = vmatmul.mubr.f32.gmra.mrb[0].mxu0 %v1430
    %v1671 = vpop.f32.mrb[0].mxu0
    %v1672 = vadd.f32 0.0, %v1671
    %v1673 = vpop.f32.mrb[0].mxu0
    %v1674 = vadd.f32 0.0, %v1673
    %1675 = vdwg.mxu0
    %v1676 = vadd.f32 %v158, %v1601
    %v1677 = vadd.f32 %v160, %v1603
    %v1678 = vadd.f32 %v235, %v1672
    %v1679 = vadd.f32 %v237, %v1674
    %v1680 = vmul.f32 %v1676, 0.5
    %v1681 = vtanh.pop %v1680
    %v1682 = vmul.f32 %v1681, 0.5
    %v1683 = vadd.f32 %v1682, 0.5
    %v1684 = vmul.f32 %v1677, 0.5
    %v1685 = vtanh.pop %v1684
    %v1686 = vmul.f32 %v1685, 0.5
    %v1687 = vadd.f32 %v1686, 0.5
    %v1688 = vtanh.pop %v1678
    %v1689 = vmul.f32 %v1679, 0.5
    %v1690 = vtanh.pop %v1689
    %v1691 = vmul.f32 %v1690, 0.5
    %v1692 = vadd.f32 %v1691, 0.5
    %v1694 = vrot.slane %v1422, 6
    %v1696 = vmul.f32 %v1687, %v1694
    %v1697 = vmul.f32 %v1683, %v1688
    %v1698 = vadd.f32 %v1696, %v1697
    %v1699 = vtanh.pop %v1698
    %v1700 = vmul.f32 %v1692, %v1699
    %v1702 = vrot.slane %v1533, 6
    %1703 = vrot.lane.b32.xlu0 %v1702, 32
    %v1704 = vpop.permute.xlu0 %1703
    %v1705 = vsel %vm573, %v1704, 0
    %1707 = vmatprep.subr.mxu0 0.0
    %1708 = vmatpush1.msra.mxu0 %v389
    %1709 = vmatprep.subr.mxu0 0.0
    %1710 = vmatpush1.msra.mxu0 %v390
    %1711 = vmatprep.subr.mxu0 0.0
    %1712 = vmatpush1.msra.mxu0 %v391
    %1713 = vmatprep.subr.mxu0 0.0
    %1714 = vmatpush1.msra.mxu0 %v392
    %1715 = vmatprep.subr.mxu0 0.0
    %1716 = vmatpush1.msra.mxu0 %v393
    %1717 = vmatprep.subr.mxu0 0.0
    %1718 = vmatpush1.msra.mxu0 %v394
    %1719 = vmatprep.subr.mxu0 0.0
    %1720 = vmatpush1.msra.mxu0 %v395
    %1721 = vmatprep.subr.mxu0 0.0
    %1722 = vmatpush1.msra.mxu0 %v396
    %1723 = vmatprep.subr.mxu0 0.0
    %1724 = vmatpush1.msra.mxu0 %v397
    %1725 = vmatprep.subr.mxu0 0.0
    %1726 = vmatpush1.msra.mxu0 %v398
    %1727 = vmatprep.subr.mxu0 0.0
    %1728 = vmatpush1.msra.mxu0 %v399
    %1729 = vmatprep.subr.mxu0 0.0
    %1730 = vmatpush1.msra.mxu0 %v400
    %1731 = vmatprep.subr.mxu0 0.0
    %1732 = vmatpush1.msra.mxu0 %v401
    %1733 = vmatprep.subr.mxu0 0.0
    %1734 = vmatpush1.msra.mxu0 %v402
    %1735 = vmatprep.subr.mxu0 0.0
    %1736 = vmatpush1.msra.mxu0 %v403
    %1737 = vmatprep.subr.mxu0 0.0
    %1738 = vmatpush1.msra.mxu0 %v404
    %1739 = vmatprep.subr.mxu0 0.0
    %1740 = vmatpush1.msra.mxu0 %v405
    %1741 = vmatprep.subr.mxu0 0.0
    %1742 = vmatpush1.msra.mxu0 %v406
    %1743 = vmatprep.subr.mxu0 0.0
    %1744 = vmatpush1.msra.mxu0 %v407
    %1745 = vmatprep.subr.mxu0 0.0
    %1746 = vmatpush1.msra.mxu0 %v408
    %1747 = vmatprep.subr.mxu0 0.0
    %1748 = vmatpush1.msra.mxu0 0.0
    %1749 = vmatprep.subr.mxu0 0.0
    %1750 = vmatpush1.msra.mxu0 0.0
    %1751 = vmatprep.subr.mxu0 0.0
    %1752 = vmatpush1.msra.mxu0 0.0
    %1753 = vmatprep.subr.mxu0 0.0
    %1754 = vmatpush1.msra.mxu0 0.0
    %1755 = vmatprep.subr.mxu0 0.0
    %1756 = vmatpush1.msra.mxu0 0.0
    %1757 = vmatprep.subr.mxu0 0.0
    %1758 = vmatpush1.msra.mxu0 0.0
    %1759 = vmatprep.subr.mxu0 0.0
    %1760 = vmatpush1.msra.mxu0 0.0
    %1761 = vmatprep.subr.mxu0 0.0
    %1762 = vmatpush1.msra.mxu0 0.0
    %1763 = vmatprep.subr.mxu0 0.0
    %1764 = vmatpush1.msra.mxu0 0.0
    %1765 = vmatprep.subr.mxu0 0.0
    %1766 = vmatpush1.msra.mxu0 0.0
    %1767 = vmatprep.subr.mxu0 0.0
    %1768 = vmatpush1.msra.mxu0 0.0
    %1769 = vmatprep.subr.mxu0 0.0
    %1770 = vmatpush1.msra.mxu0 0.0
    %1771 = vmatprep.mubr.f32.mxu0 %v1705
    %1772 = vmatmul.mubr.f32.gmra.mrb[0].mxu0 %v1700
    %v1773 = vpop.f32.mrb[0].mxu0
    %v1774 = vadd.f32 0.0, %v1773
    %v1775 = vpop.f32.mrb[0].mxu0
    %1776 = vdwg.mxu0
    %v1777 = vadd.f32 %v322, %v1774
    %v1778 = vmul.f32 %v1777, 0.5
    %v1779 = vtanh.pop %v1778
    %v1780 = vmul.f32 %v1779, 0.5
    %v1781 = vadd.f32 %v1780, 0.5
    %v1782 = vtanh.pop %v1777
    %v1784 = vrot.slane %v1527, 6
    %v1786 = vmul.f32 %v1781, %v1784
    %1788 = vrot.lane.b32.xlu0 %v1782, 64
    %v1789 = vpop.permute.xlu0 %1788
    %v1791 = vmul.f32 %v1781, %v1789
    %1793 = vrot.lane.b32.xlu0 %v1791, 32
    %v1794 = vpop.permute.xlu0 %1793
    %v1796 = vadd.f32 %v1786, %v1794
    %v1797 = vtanh.pop %v1796
    %1799 = vrot.lane.b32.xlu0 %v1797, 64
    %v1800 = vpop.permute.xlu0 %1799
    %v1802 = vmul.f32 %v1781, %v1800
    %1803 = vmatprep.subr.mxu0 %v326
    %1804 = vmatpush1.msra.mxu0 %v325
    %1805 = vmatprep.subr.mxu0 %v330
    %1806 = vmatpush1.msra.mxu0 %v329
    %1807 = vmatprep.subr.mxu0 %v334
    %1808 = vmatpush1.msra.mxu0 %v333
    %1809 = vmatprep.subr.mxu0 %v338
    %1810 = vmatpush1.msra.mxu0 %v337
    %1811 = vmatprep.subr.mxu0 %v342
    %1812 = vmatpush1.msra.mxu0 %v341
    %1813 = vmatprep.subr.mxu0 %v346
    %1814 = vmatpush1.msra.mxu0 %v345
    %1815 = vmatprep.subr.mxu0 %v350
    %1816 = vmatpush1.msra.mxu0 %v349
    %1817 = vmatprep.subr.mxu0 %v354
    %1818 = vmatpush1.msra.mxu0 %v353
    %1819 = vmatprep.subr.mxu0 %v358
    %1820 = vmatpush1.msra.mxu0 %v357
    %1821 = vmatprep.subr.mxu0 %v362
    %1822 = vmatpush1.msra.mxu0 %v361
    %1823 = vmatprep.subr.mxu0 %v366
    %1824 = vmatpush1.msra.mxu0 %v365
    %1825 = vmatprep.subr.mxu0 %v370
    %1826 = vmatpush1.msra.mxu0 %v369
    %1827 = vmatprep.subr.mxu0 %v374
    %1828 = vmatpush1.msra.mxu0 %v373
    %1829 = vmatprep.subr.mxu0 %v378
    %1830 = vmatpush1.msra.mxu0 %v377
    %1831 = vmatprep.subr.mxu0 %v382
    %1832 = vmatpush1.msra.mxu0 %v381
    %1833 = vmatprep.subr.mxu0 %v386
    %1834 = vmatpush1.msra.mxu0 %v385
    %1835 = vmatprep.subr.mxu0 0.0
    %1836 = vmatpush1.msra.mxu0 0.0
    %1837 = vmatprep.subr.mxu0 0.0
    %1838 = vmatpush1.msra.mxu0 0.0
    %1839 = vmatprep.subr.mxu0 0.0
    %1840 = vmatpush1.msra.mxu0 0.0
    %1841 = vmatprep.subr.mxu0 0.0
    %1842 = vmatpush1.msra.mxu0 0.0
    %1843 = vmatprep.subr.mxu0 0.0
    %1844 = vmatpush1.msra.mxu0 0.0
    %1845 = vmatprep.subr.mxu0 0.0
    %1846 = vmatpush1.msra.mxu0 0.0
    %1847 = vmatprep.subr.mxu0 0.0
    %1848 = vmatpush1.msra.mxu0 0.0
    %1849 = vmatprep.subr.mxu0 0.0
    %1850 = vmatpush1.msra.mxu0 0.0
    %1851 = vmatprep.subr.mxu0 0.0
    %1852 = vmatpush1.msra.mxu0 0.0
    %1853 = vmatprep.subr.mxu0 0.0
    %1854 = vmatpush1.msra.mxu0 0.0
    %1855 = vmatprep.subr.mxu0 0.0
    %1856 = vmatpush1.msra.mxu0 0.0
    %1857 = vmatprep.subr.mxu0 0.0
    %1858 = vmatpush1.msra.mxu0 0.0
    %1859 = vmatprep.subr.mxu0 0.0
    %1860 = vmatpush1.msra.mxu0 0.0
    %1861 = vmatprep.subr.mxu0 0.0
    %1862 = vmatpush1.msra.mxu0 0.0
    %1863 = vmatprep.subr.mxu0 0.0
    %1864 = vmatpush1.msra.mxu0 0.0
    %1865 = vmatprep.subr.mxu0 0.0
    %1866 = vmatpush1.msra.mxu0 0.0
    %1867 = vmatprep.mubr.f32.mxu0 0.0
    %1868 = vmatmul.mubr.f32.gmra.mrb[0].mxu0 %v1700
    %v1869 = vpop.f32.mrb[0].mxu0
    %v1870 = vadd.f32 0.0, %v1869
    %v1871 = vpop.f32.mrb[0].mxu0
    %v1872 = vadd.f32 0.0, %v1871
    %1873 = vdwg.mxu0
    %1874 = vmatprep.subr.mxu0 %v328
    %1875 = vmatpush1.msra.mxu0 %v327
    %1876 = vmatprep.subr.mxu0 %v332
    %1877 = vmatpush1.msra.mxu0 %v331
    %1878 = vmatprep.subr.mxu0 %v336
    %1879 = vmatpush1.msra.mxu0 %v335
    %1880 = vmatprep.subr.mxu0 %v340
    %1881 = vmatpush1.msra.mxu0 %v339
    %1882 = vmatprep.subr.mxu0 %v344
    %1883 = vmatpush1.msra.mxu0 %v343
    %1884 = vmatprep.subr.mxu0 %v348
    %1885 = vmatpush1.msra.mxu0 %v347
    %1886 = vmatprep.subr.mxu0 %v352
    %1887 = vmatpush1.msra.mxu0 %v351
    %1888 = vmatprep.subr.mxu0 %v356
    %1889 = vmatpush1.msra.mxu0 %v355
    %1890 = vmatprep.subr.mxu0 %v360
    %1891 = vmatpush1.msra.mxu0 %v359
    %1892 = vmatprep.subr.mxu0 %v364
    %1893 = vmatpush1.msra.mxu0 %v363
    %1894 = vmatprep.subr.mxu0 %v368
    %1895 = vmatpush1.msra.mxu0 %v367
    %1896 = vmatprep.subr.mxu0 %v372
    %1897 = vmatpush1.msra.mxu0 %v371
    %1898 = vmatprep.subr.mxu0 %v376
    %1899 = vmatpush1.msra.mxu0 %v375
    %1900 = vmatprep.subr.mxu0 %v380
    %1901 = vmatpush1.msra.mxu0 %v379
    %1902 = vmatprep.subr.mxu0 %v384
    %1903 = vmatpush1.msra.mxu0 %v383
    %1904 = vmatprep.subr.mxu0 %v388
    %1905 = vmatpush1.msra.mxu0 %v387
    %1906 = vmatprep.subr.mxu0 0.0
    %1907 = vmatpush1.msra.mxu0 0.0
    %1908 = vmatprep.subr.mxu0 0.0
    %1909 = vmatpush1.msra.mxu0 0.0
    %1910 = vmatprep.subr.mxu0 0.0
    %1911 = vmatpush1.msra.mxu0 0.0
    %1912 = vmatprep.subr.mxu0 0.0
    %1913 = vmatpush1.msra.mxu0 0.0
    %1914 = vmatprep.subr.mxu0 0.0
    %1915 = vmatpush1.msra.mxu0 0.0
    %1916 = vmatprep.subr.mxu0 0.0
    %1917 = vmatpush1.msra.mxu0 0.0
    %1918 = vmatprep.subr.mxu0 0.0
    %1919 = vmatpush1.msra.mxu0 0.0
    %1920 = vmatprep.subr.mxu0 0.0
    %1921 = vmatpush1.msra.mxu0 0.0
    %1922 = vmatprep.subr.mxu0 0.0
    %1923 = vmatpush1.msra.mxu0 0.0
    %1924 = vmatprep.subr.mxu0 0.0
    %1925 = vmatpush1.msra.mxu0 0.0
    %1926 = vmatprep.subr.mxu0 0.0
    %1927 = vmatpush1.msra.mxu0 0.0
    %1928 = vmatprep.subr.mxu0 0.0
    %1929 = vmatpush1.msra.mxu0 0.0
    %1930 = vmatprep.subr.mxu0 0.0
    %1931 = vmatpush1.msra.mxu0 0.0
    %1932 = vmatprep.subr.mxu0 0.0
    %1933 = vmatpush1.msra.mxu0 0.0
    %1934 = vmatprep.subr.mxu0 0.0
    %1935 = vmatpush1.msra.mxu0 0.0
    %1936 = vmatprep.subr.mxu0 0.0
    %1937 = vmatpush1.msra.mxu0 0.0
    %1938 = vmatprep.mubr.f32.mxu0 0.0
    %1939 = vmatmul.mubr.f32.gmra.mrb[0].mxu0 %v1700
    %v1940 = vpop.f32.mrb[0].mxu0
    %v1941 = vadd.f32 0.0, %v1940
    %v1942 = vpop.f32.mrb[0].mxu0
    %v1943 = vadd.f32 0.0, %v1942
    %1944 = vdwg.mxu0
    %v1949 = vrot.slane %v1870, 6
    %v1950 = vrot.slane %v1872, 6
    %v1951 = vrot.slane %v1941, 6
    %v1952 = vrot.slane %v1943, 6
    %v1957 = vadd.f32 %v158, %v1949
    %v1958 = vadd.f32 %v160, %v1950
    %v1959 = vadd.f32 %v235, %v1951
    %v1960 = vadd.f32 %v237, %v1952
    %v1961 = vmul.f32 %v1957, 0.5
    %v1962 = vtanh.pop %v1961
    %v1963 = vmul.f32 %v1962, 0.5
    %v1964 = vadd.f32 %v1963, 0.5
    %v1965 = vmul.f32 %v1958, 0.5
    %v1966 = vtanh.pop %v1965
    %v1967 = vmul.f32 %v1966, 0.5
    %v1968 = vadd.f32 %v1967, 0.5
    %v1969 = vtanh.pop %v1959
    %v1970 = vmul.f32 %v1960, 0.5
    %v1971 = vtanh.pop %v1970
    %v1972 = vmul.f32 %v1971, 0.5
    %v1973 = vadd.f32 %v1972, 0.5
    %v1975 = vrot.slane %v1698, 6
    %v1977 = vmul.f32 %v1968, %v1975
    %v1978 = vmul.f32 %v1964, %v1969
    %v1979 = vadd.f32 %v1977, %v1978
    %v1980 = vtanh.pop %v1979
    %v1981 = vmul.f32 %v1973, %v1980
    %v1983 = vrot.slane %v1802, 6
    %1984 = vrot.lane.b32.xlu0 %v1983, 32
    %v1985 = vpop.permute.xlu0 %1984
    %v1987 = vrot.slane %v1981, 2
    %v1988 = vrot.slane %v1985, 2
    %v1990 = vsel %vm573, %v1988, 0
    %1992 = vmatprep.subr.mxu0 0.0
    %1993 = vmatpush1.msra.mxu0 %v389
    %1994 = vmatprep.subr.mxu0 0.0
    %1995 = vmatpush1.msra.mxu0 %v390
    %1996 = vmatprep.subr.mxu0 0.0
    %1997 = vmatpush1.msra.mxu0 %v391
    %1998 = vmatprep.subr.mxu0 0.0
    %1999 = vmatpush1.msra.mxu0 %v392
    %2000 = vmatprep.subr.mxu0 0.0
    %2001 = vmatpush1.msra.mxu0 %v393
    %2002 = vmatprep.subr.mxu0 0.0
    %2003 = vmatpush1.msra.mxu0 %v394
    %2004 = vmatprep.subr.mxu0 0.0
    %2005 = vmatpush1.msra.mxu0 %v395
    %2006 = vmatprep.subr.mxu0 0.0
    %2007 = vmatpush1.msra.mxu0 %v396
    %2008 = vmatprep.subr.mxu0 0.0
    %2009 = vmatpush1.msra.mxu0 %v397
    %2010 = vmatprep.subr.mxu0 0.0
    %2011 = vmatpush1.msra.mxu0 %v398
    %2012 = vmatprep.subr.mxu0 0.0
    %2013 = vmatpush1.msra.mxu0 %v399
    %2014 = vmatprep.subr.mxu0 0.0
    %2015 = vmatpush1.msra.mxu0 %v400
    %2016 = vmatprep.subr.mxu0 0.0
    %2017 = vmatpush1.msra.mxu0 %v401
    %2018 = vmatprep.subr.mxu0 0.0
    %2019 = vmatpush1.msra.mxu0 %v402
    %2020 = vmatprep.subr.mxu0 0.0
    %2021 = vmatpush1.msra.mxu0 %v403
    %2022 = vmatprep.subr.mxu0 0.0
    %2023 = vmatpush1.msra.mxu0 %v404
    %2024 = vmatprep.subr.mxu0 0.0
    %2025 = vmatpush1.msra.mxu0 %v405
    %2026 = vmatprep.subr.mxu0 0.0
    %2027 = vmatpush1.msra.mxu0 %v406
    %2028 = vmatprep.subr.mxu0 0.0
    %2029 = vmatpush1.msra.mxu0 %v407
    %2030 = vmatprep.subr.mxu0 0.0
    %2031 = vmatpush1.msra.mxu0 %v408
    %2032 = vmatprep.subr.mxu0 0.0
    %2033 = vmatpush1.msra.mxu0 0.0
    %2034 = vmatprep.subr.mxu0 0.0
    %2035 = vmatpush1.msra.mxu0 0.0
    %2036 = vmatprep.subr.mxu0 0.0
    %2037 = vmatpush1.msra.mxu0 0.0
    %2038 = vmatprep.subr.mxu0 0.0
    %2039 = vmatpush1.msra.mxu0 0.0
    %2040 = vmatprep.subr.mxu0 0.0
    %2041 = vmatpush1.msra.mxu0 0.0
    %2042 = vmatprep.subr.mxu0 0.0
    %2043 = vmatpush1.msra.mxu0 0.0
    %2044 = vmatprep.subr.mxu0 0.0
    %2045 = vmatpush1.msra.mxu0 0.0
    %2046 = vmatprep.subr.mxu0 0.0
    %2047 = vmatpush1.msra.mxu0 0.0
    %2048 = vmatprep.subr.mxu0 0.0
    %2049 = vmatpush1.msra.mxu0 0.0
    %2050 = vmatprep.subr.mxu0 0.0
    %2051 = vmatpush1.msra.mxu0 0.0
    %2052 = vmatprep.subr.mxu0 0.0
    %2053 = vmatpush1.msra.mxu0 0.0
    %2054 = vmatprep.subr.mxu0 0.0
    %2055 = vmatpush1.msra.mxu0 0.0
    %2056 = vmatprep.mubr.f32.mxu0 %v1990
    %2057 = vmatmul.mubr.f32.gmra.mrb[0].mxu0 %v1987
    %v2058 = vpop.f32.mrb[0].mxu0
    %v2059 = vadd.f32 0.0, %v2058
    %v2060 = vpop.f32.mrb[0].mxu0
    %2061 = vdwg.mxu0
    %v2063 = vrot.slane %v2059, 6
    %v2065 = vadd.f32 %v322, %v2063
    %v2066 = vmul.f32 %v2065, 0.5
    %v2067 = vtanh.pop %v2066
    %v2068 = vmul.f32 %v2067, 0.5
    %v2069 = vadd.f32 %v2068, 0.5
    %v2070 = vtanh.pop %v2065
    %v2072 = vrot.slane %v1796, 6
    %v2074 = vmul.f32 %v2069, %v2072
    %2076 = vrot.lane.b32.xlu0 %v2070, 64
    %v2077 = vpop.permute.xlu0 %2076
    %v2079 = vmul.f32 %v2069, %v2077
    %2081 = vrot.lane.b32.xlu0 %v2079, 32
    %v2082 = vpop.permute.xlu0 %2081
    %v2084 = vadd.f32 %v2074, %v2082
    %v2085 = vtanh.pop %v2084
    %2087 = vrot.lane.b32.xlu0 %v2085, 64
    %v2088 = vpop.permute.xlu0 %2087
    %v2090 = vmul.f32 %v2069, %v2088
    %2091 = vmatprep.subr.mxu0 %v326
    %2092 = vmatpush1.msra.mxu0 %v325
    %2093 = vmatprep.subr.mxu0 %v330
    %2094 = vmatpush1.msra.mxu0 %v329
    %2095 = vmatprep.subr.mxu0 %v334
    %2096 = vmatpush1.msra.mxu0 %v333
    %2097 = vmatprep.subr.mxu0 %v338
    %2098 = vmatpush1.msra.mxu0 %v337
    %2099 = vmatprep.subr.mxu0 %v342
    %2100 = vmatpush1.msra.mxu0 %v341
    %2101 = vmatprep.subr.mxu0 %v346
    %2102 = vmatpush1.msra.mxu0 %v345
    %2103 = vmatprep.subr.mxu0 %v350
    %2104 = vmatpush1.msra.mxu0 %v349
    %2105 = vmatprep.subr.mxu0 %v354
    %2106 = vmatpush1.msra.mxu0 %v353
    %2107 = vmatprep.subr.mxu0 %v358
    %2108 = vmatpush1.msra.mxu0 %v357
    %2109 = vmatprep.subr.mxu0 %v362
    %2110 = vmatpush1.msra.mxu0 %v361
    %2111 = vmatprep.subr.mxu0 %v366
    %2112 = vmatpush1.msra.mxu0 %v365
    %2113 = vmatprep.subr.mxu0 %v370
    %2114 = vmatpush1.msra.mxu0 %v369
    %2115 = vmatprep.subr.mxu0 %v374
    %2116 = vmatpush1.msra.mxu0 %v373
    %2117 = vmatprep.subr.mxu0 %v378
    %2118 = vmatpush1.msra.mxu0 %v377
    %2119 = vmatprep.subr.mxu0 %v382
    %2120 = vmatpush1.msra.mxu0 %v381
    %2121 = vmatprep.subr.mxu0 %v386
    %2122 = vmatpush1.msra.mxu0 %v385
    %2123 = vmatprep.subr.mxu0 0.0
    %2124 = vmatpush1.msra.mxu0 0.0
    %2125 = vmatprep.subr.mxu0 0.0
    %2126 = vmatpush1.msra.mxu0 0.0
    %2127 = vmatprep.subr.mxu0 0.0
    %2128 = vmatpush1.msra.mxu0 0.0
    %2129 = vmatprep.subr.mxu0 0.0
    %2130 = vmatpush1.msra.mxu0 0.0
    %2131 = vmatprep.subr.mxu0 0.0
    %2132 = vmatpush1.msra.mxu0 0.0
    %2133 = vmatprep.subr.mxu0 0.0
    %2134 = vmatpush1.msra.mxu0 0.0
    %2135 = vmatprep.subr.mxu0 0.0
    %2136 = vmatpush1.msra.mxu0 0.0
    %2137 = vmatprep.subr.mxu0 0.0
    %2138 = vmatpush1.msra.mxu0 0.0
    %2139 = vmatprep.subr.mxu0 0.0
    %2140 = vmatpush1.msra.mxu0 0.0
    %2141 = vmatprep.subr.mxu0 0.0
    %2142 = vmatpush1.msra.mxu0 0.0
    %2143 = vmatprep.subr.mxu0 0.0
    %2144 = vmatpush1.msra.mxu0 0.0
    %2145 = vmatprep.subr.mxu0 0.0
    %2146 = vmatpush1.msra.mxu0 0.0
    %2147 = vmatprep.subr.mxu0 0.0
    %2148 = vmatpush1.msra.mxu0 0.0
    %2149 = vmatprep.subr.mxu0 0.0
    %2150 = vmatpush1.msra.mxu0 0.0
    %2151 = vmatprep.subr.mxu0 0.0
    %2152 = vmatpush1.msra.mxu0 0.0
    %2153 = vmatprep.subr.mxu0 0.0
    %2154 = vmatpush1.msra.mxu0 0.0
    %2155 = vmatprep.mubr.f32.mxu0 0.0
    %2156 = vmatmul.mubr.f32.gmra.mrb[0].mxu0 %v1987
    %v2157 = vpop.f32.mrb[0].mxu0
    %v2158 = vadd.f32 0.0, %v2157
    %v2159 = vpop.f32.mrb[0].mxu0
    %v2160 = vadd.f32 0.0, %v2159
    %2161 = vdwg.mxu0
    %2162 = vmatprep.subr.mxu0 %v328
    %2163 = vmatpush1.msra.mxu0 %v327
    %2164 = vmatprep.subr.mxu0 %v332
    %2165 = vmatpush1.msra.mxu0 %v331
    %2166 = vmatprep.subr.mxu0 %v336
    %2167 = vmatpush1.msra.mxu0 %v335
    %2168 = vmatprep.subr.mxu0 %v340
    %2169 = vmatpush1.msra.mxu0 %v339
    %2170 = vmatprep.subr.mxu0 %v344
    %2171 = vmatpush1.msra.mxu0 %v343
    %2172 = vmatprep.subr.mxu0 %v348
    %2173 = vmatpush1.msra.mxu0 %v347
    %2174 = vmatprep.subr.mxu0 %v352
    %2175 = vmatpush1.msra.mxu0 %v351
    %2176 = vmatprep.subr.mxu0 %v356
    %2177 = vmatpush1.msra.mxu0 %v355
    %2178 = vmatprep.subr.mxu0 %v360
    %2179 = vmatpush1.msra.mxu0 %v359
    %2180 = vmatprep.subr.mxu0 %v364
    %2181 = vmatpush1.msra.mxu0 %v363
    %2182 = vmatprep.subr.mxu0 %v368
    %2183 = vmatpush1.msra.mxu0 %v367
    %2184 = vmatprep.subr.mxu0 %v372
    %2185 = vmatpush1.msra.mxu0 %v371
    %2186 = vmatprep.subr.mxu0 %v376
    %2187 = vmatpush1.msra.mxu0 %v375
    %2188 = vmatprep.subr.mxu0 %v380
    %2189 = vmatpush1.msra.mxu0 %v379
    %2190 = vmatprep.subr.mxu0 %v384
    %2191 = vmatpush1.msra.mxu0 %v383
    %2192 = vmatprep.subr.mxu0 %v388
    %2193 = vmatpush1.msra.mxu0 %v387
    %2194 = vmatprep.subr.mxu0 0.0
    %2195 = vmatpush1.msra.mxu0 0.0
    %2196 = vmatprep.subr.mxu0 0.0
    %2197 = vmatpush1.msra.mxu0 0.0
    %2198 = vmatprep.subr.mxu0 0.0
    %2199 = vmatpush1.msra.mxu0 0.0
    %2200 = vmatprep.subr.mxu0 0.0
    %2201 = vmatpush1.msra.mxu0 0.0
    %2202 = vmatprep.subr.mxu0 0.0
    %2203 = vmatpush1.msra.mxu0 0.0
    %2204 = vmatprep.subr.mxu0 0.0
    %2205 = vmatpush1.msra.mxu0 0.0
    %2206 = vmatprep.subr.mxu0 0.0
    %2207 = vmatpush1.msra.mxu0 0.0
    %2208 = vmatprep.subr.mxu0 0.0
    %2209 = vmatpush1.msra.mxu0 0.0
    %2210 = vmatprep.subr.mxu0 0.0
    %2211 = vmatpush1.msra.mxu0 0.0
    %2212 = vmatprep.subr.mxu0 0.0
    %2213 = vmatpush1.msra.mxu0 0.0
    %2214 = vmatprep.subr.mxu0 0.0
    %2215 = vmatpush1.msra.mxu0 0.0
    %2216 = vmatprep.subr.mxu0 0.0
    %2217 = vmatpush1.msra.mxu0 0.0
    %2218 = vmatprep.subr.mxu0 0.0
    %2219 = vmatpush1.msra.mxu0 0.0
    %2220 = vmatprep.subr.mxu0 0.0
    %2221 = vmatpush1.msra.mxu0 0.0
    %2222 = vmatprep.subr.mxu0 0.0
    %2223 = vmatpush1.msra.mxu0 0.0
    %2224 = vmatprep.subr.mxu0 0.0
    %2225 = vmatpush1.msra.mxu0 0.0
    %2226 = vmatprep.mubr.f32.mxu0 0.0
    %2227 = vmatmul.mubr.f32.gmra.mrb[0].mxu0 %v1987
    %v2228 = vpop.f32.mrb[0].mxu0
    %v2229 = vadd.f32 0.0, %v2228
    %v2230 = vpop.f32.mrb[0].mxu0
    %v2231 = vadd.f32 0.0, %v2230
    %2232 = vdwg.mxu0
    %v2237 = vrot.slane %v2158, 4
    %v2238 = vrot.slane %v2160, 4
    %v2239 = vrot.slane %v2229, 4
    %v2240 = vrot.slane %v2231, 4
    %v2245 = vadd.f32 %v158, %v2237
    %v2246 = vadd.f32 %v160, %v2238
    %v2247 = vadd.f32 %v235, %v2239
    %v2248 = vadd.f32 %v237, %v2240
    %v2249 = vmul.f32 %v2245, 0.5
    %v2250 = vtanh.pop %v2249
    %v2251 = vmul.f32 %v2250, 0.5
    %v2252 = vadd.f32 %v2251, 0.5
    %v2253 = vmul.f32 %v2246, 0.5
    %v2254 = vtanh.pop %v2253
    %v2255 = vmul.f32 %v2254, 0.5
    %v2256 = vadd.f32 %v2255, 0.5
    %v2257 = vtanh.pop %v2247
    %v2258 = vmul.f32 %v2248, 0.5
    %v2259 = vtanh.pop %v2258
    %v2260 = vmul.f32 %v2259, 0.5
    %v2261 = vadd.f32 %v2260, 0.5
    %v2263 = vrot.slane %v1979, 6
    %v2265 = vmul.f32 %v2256, %v2263
    %v2266 = vmul.f32 %v2252, %v2257
    %v2267 = vadd.f32 %v2265, %v2266
    %v2268 = vtanh.pop %v2267
    %v2269 = vmul.f32 %v2261, %v2268
    %v2271 = vrot.slane %v2090, 6
    %2272 = vrot.lane.b32.xlu0 %v2271, 32
    %v2273 = vpop.permute.xlu0 %2272
    %v2275 = vrot.slane %v2269, 4
    %v2276 = vrot.slane %v2273, 4
    %v2278 = vsel %vm573, %v2276, 0
    %2280 = vmatprep.subr.mxu0 0.0
    %2281 = vmatpush1.msra.mxu0 %v389
    %2282 = vmatprep.subr.mxu0 0.0
    %2283 = vmatpush1.msra.mxu0 %v390
    %2284 = vmatprep.subr.mxu0 0.0
    %2285 = vmatpush1.msra.mxu0 %v391
    %2286 = vmatprep.subr.mxu0 0.0
    %2287 = vmatpush1.msra.mxu0 %v392
    %2288 = vmatprep.subr.mxu0 0.0
    %2289 = vmatpush1.msra.mxu0 %v393
    %2290 = vmatprep.subr.mxu0 0.0
    %2291 = vmatpush1.msra.mxu0 %v394
    %2292 = vmatprep.subr.mxu0 0.0
    %2293 = vmatpush1.msra.mxu0 %v395
    %2294 = vmatprep.subr.mxu0 0.0
    %2295 = vmatpush1.msra.mxu0 %v396
    %2296 = vmatprep.subr.mxu0 0.0
    %2297 = vmatpush1.msra.mxu0 %v397
    %2298 = vmatprep.subr.mxu0 0.0
    %2299 = vmatpush1.msra.mxu0 %v398
    %2300 = vmatprep.subr.mxu0 0.0
    %2301 = vmatpush1.msra.mxu0 %v399
    %2302 = vmatprep.subr.mxu0 0.0
    %2303 = vmatpush1.msra.mxu0 %v400
    %2304 = vmatprep.subr.mxu0 0.0
    %2305 = vmatpush1.msra.mxu0 %v401
    %2306 = vmatprep.subr.mxu0 0.0
    %2307 = vmatpush1.msra.mxu0 %v402
    %2308 = vmatprep.subr.mxu0 0.0
    %2309 = vmatpush1.msra.mxu0 %v403
    %2310 = vmatprep.subr.mxu0 0.0
    %2311 = vmatpush1.msra.mxu0 %v404
    %2312 = vmatprep.subr.mxu0 0.0
    %2313 = vmatpush1.msra.mxu0 %v405
    %2314 = vmatprep.subr.mxu0 0.0
    %2315 = vmatpush1.msra.mxu0 %v406
    %2316 = vmatprep.subr.mxu0 0.0
    %2317 = vmatpush1.msra.mxu0 %v407
    %2318 = vmatprep.subr.mxu0 0.0
    %2319 = vmatpush1.msra.mxu0 %v408
    %2320 = vmatprep.subr.mxu0 0.0
    %2321 = vmatpush1.msra.mxu0 0.0
    %2322 = vmatprep.subr.mxu0 0.0
    %2323 = vmatpush1.msra.mxu0 0.0
    %2324 = vmatprep.subr.mxu0 0.0
    %2325 = vmatpush1.msra.mxu0 0.0
    %2326 = vmatprep.subr.mxu0 0.0
    %2327 = vmatpush1.msra.mxu0 0.0
    %2328 = vmatprep.subr.mxu0 0.0
    %2329 = vmatpush1.msra.mxu0 0.0
    %2330 = vmatprep.subr.mxu0 0.0
    %2331 = vmatpush1.msra.mxu0 0.0
    %2332 = vmatprep.subr.mxu0 0.0
    %2333 = vmatpush1.msra.mxu0 0.0
    %2334 = vmatprep.subr.mxu0 0.0
    %2335 = vmatpush1.msra.mxu0 0.0
    %2336 = vmatprep.subr.mxu0 0.0
    %2337 = vmatpush1.msra.mxu0 0.0
    %2338 = vmatprep.subr.mxu0 0.0
    %2339 = vmatpush1.msra.mxu0 0.0
    %2340 = vmatprep.subr.mxu0 0.0
    %2341 = vmatpush1.msra.mxu0 0.0
    %2342 = vmatprep.subr.mxu0 0.0
    %2343 = vmatpush1.msra.mxu0 0.0
    %2344 = vmatprep.mubr.f32.mxu0 %v2278
    %2345 = vmatmul.mubr.f32.gmra.mrb[0].mxu0 %v2275
    %v2346 = vpop.f32.mrb[0].mxu0
    %v2347 = vadd.f32 0.0, %v2346
    %v2348 = vpop.f32.mrb[0].mxu0
    %2349 = vdwg.mxu0
    %v2351 = vrot.slane %v2347, 4
    %v2353 = vadd.f32 %v322, %v2351
    %v2354 = vmul.f32 %v2353, 0.5
    %v2355 = vtanh.pop %v2354
    %v2356 = vmul.f32 %v2355, 0.5
    %v2357 = vadd.f32 %v2356, 0.5
    %v2358 = vtanh.pop %v2353
    %v2360 = vrot.slane %v2084, 6
    %v2362 = vmul.f32 %v2357, %v2360
    %2364 = vrot.lane.b32.xlu0 %v2358, 64
    %v2365 = vpop.permute.xlu0 %2364
    %v2367 = vmul.f32 %v2357, %v2365
    %2369 = vrot.lane.b32.xlu0 %v2367, 32
    %v2370 = vpop.permute.xlu0 %2369
    %v2372 = vadd.f32 %v2362, %v2370
    %v2373 = vtanh.pop %v2372
    %2375 = vrot.lane.b32.xlu0 %v2373, 64
    %v2376 = vpop.permute.xlu0 %2375
    %v2378 = vmul.f32 %v2357, %v2376
    %2379 = vmatprep.subr.mxu0 %v326
    %2380 = vmatpush1.msra.mxu0 %v325
    %2381 = vmatprep.subr.mxu0 %v330
    %2382 = vmatpush1.msra.mxu0 %v329
    %2383 = vmatprep.subr.mxu0 %v334
    %2384 = vmatpush1.msra.mxu0 %v333
    %2385 = vmatprep.subr.mxu0 %v338
    %2386 = vmatpush1.msra.mxu0 %v337
    %2387 = vmatprep.subr.mxu0 %v342
    %2388 = vmatpush1.msra.mxu0 %v341
    %2389 = vmatprep.subr.mxu0 %v346
    %2390 = vmatpush1.msra.mxu0 %v345
    %2391 = vmatprep.subr.mxu0 %v350
    %2392 = vmatpush1.msra.mxu0 %v349
    %2393 = vmatprep.subr.mxu0 %v354
    %2394 = vmatpush1.msra.mxu0 %v353
    %2395 = vmatprep.subr.mxu0 %v358
    %2396 = vmatpush1.msra.mxu0 %v357
    %2397 = vmatprep.subr.mxu0 %v362
    %2398 = vmatpush1.msra.mxu0 %v361
    %2399 = vmatprep.subr.mxu0 %v366
    %2400 = vmatpush1.msra.mxu0 %v365
    %2401 = vmatprep.subr.mxu0 %v370
    %2402 = vmatpush1.msra.mxu0 %v369
    %2403 = vmatprep.subr.mxu0 %v374
    %2404 = vmatpush1.msra.mxu0 %v373
    %2405 = vmatprep.subr.mxu0 %v378
    %2406 = vmatpush1.msra.mxu0 %v377
    %2407 = vmatprep.subr.mxu0 %v382
    %2408 = vmatpush1.msra.mxu0 %v381
    %2409 = vmatprep.subr.mxu0 %v386
    %2410 = vmatpush1.msra.mxu0 %v385
    %2411 = vmatprep.subr.mxu0 0.0
    %2412 = vmatpush1.msra.mxu0 0.0
    %2413 = vmatprep.subr.mxu0 0.0
    %2414 = vmatpush1.msra.mxu0 0.0
    %2415 = vmatprep.subr.mxu0 0.0
    %2416 = vmatpush1.msra.mxu0 0.0
    %2417 = vmatprep.subr.mxu0 0.0
    %2418 = vmatpush1.msra.mxu0 0.0
    %2419 = vmatprep.subr.mxu0 0.0
    %2420 = vmatpush1.msra.mxu0 0.0
    %2421 = vmatprep.subr.mxu0 0.0
    %2422 = vmatpush1.msra.mxu0 0.0
    %2423 = vmatprep.subr.mxu0 0.0
    %2424 = vmatpush1.msra.mxu0 0.0
    %2425 = vmatprep.subr.mxu0 0.0
    %2426 = vmatpush1.msra.mxu0 0.0
    %2427 = vmatprep.subr.mxu0 0.0
    %2428 = vmatpush1.msra.mxu0 0.0
    %2429 = vmatprep.subr.mxu0 0.0
    %2430 = vmatpush1.msra.mxu0 0.0
    %2431 = vmatprep.subr.mxu0 0.0
    %2432 = vmatpush1.msra.mxu0 0.0
    %2433 = vmatprep.subr.mxu0 0.0
    %2434 = vmatpush1.msra.mxu0 0.0
    %2435 = vmatprep.subr.mxu0 0.0
    %2436 = vmatpush1.msra.mxu0 0.0
    %2437 = vmatprep.subr.mxu0 0.0
    %2438 = vmatpush1.msra.mxu0 0.0
    %2439 = vmatprep.subr.mxu0 0.0
    %2440 = vmatpush1.msra.mxu0 0.0
    %2441 = vmatprep.subr.mxu0 0.0
    %2442 = vmatpush1.msra.mxu0 0.0
    %2443 = vmatprep.mubr.f32.mxu0 0.0
    %2444 = vmatmul.mubr.f32.gmra.mrb[0].mxu0 %v2275
    %v2445 = vpop.f32.mrb[0].mxu0
    %v2446 = vadd.f32 0.0, %v2445
    %v2447 = vpop.f32.mrb[0].mxu0
    %v2448 = vadd.f32 0.0, %v2447
    %2449 = vdwg.mxu0
    %2450 = vmatprep.subr.mxu0 %v328
    %2451 = vmatpush1.msra.mxu0 %v327
    %2452 = vmatprep.subr.mxu0 %v332
    %2453 = vmatpush1.msra.mxu0 %v331
    %2454 = vmatprep.subr.mxu0 %v336
    %2455 = vmatpush1.msra.mxu0 %v335
    %2456 = vmatprep.subr.mxu0 %v340
    %2457 = vmatpush1.msra.mxu0 %v339
    %2458 = vmatprep.subr.mxu0 %v344
    %2459 = vmatpush1.msra.mxu0 %v343
    %2460 = vmatprep.subr.mxu0 %v348
    %2461 = vmatpush1.msra.mxu0 %v347
    %2462 = vmatprep.subr.mxu0 %v352
    %2463 = vmatpush1.msra.mxu0 %v351
    %2464 = vmatprep.subr.mxu0 %v356
    %2465 = vmatpush1.msra.mxu0 %v355
    %2466 = vmatprep.subr.mxu0 %v360
    %2467 = vmatpush1.msra.mxu0 %v359
    %2468 = vmatprep.subr.mxu0 %v364
    %2469 = vmatpush1.msra.mxu0 %v363
    %2470 = vmatprep.subr.mxu0 %v368
    %2471 = vmatpush1.msra.mxu0 %v367
    %2472 = vmatprep.subr.mxu0 %v372
    %2473 = vmatpush1.msra.mxu0 %v371
    %2474 = vmatprep.subr.mxu0 %v376
    %2475 = vmatpush1.msra.mxu0 %v375
    %2476 = vmatprep.subr.mxu0 %v380
    %2477 = vmatpush1.msra.mxu0 %v379
    %2478 = vmatprep.subr.mxu0 %v384
    %2479 = vmatpush1.msra.mxu0 %v383
    %2480 = vmatprep.subr.mxu0 %v388
    %2481 = vmatpush1.msra.mxu0 %v387
    %2482 = vmatprep.subr.mxu0 0.0
    %2483 = vmatpush1.msra.mxu0 0.0
    %2484 = vmatprep.subr.mxu0 0.0
    %2485 = vmatpush1.msra.mxu0 0.0
    %2486 = vmatprep.subr.mxu0 0.0
    %2487 = vmatpush1.msra.mxu0 0.0
    %2488 = vmatprep.subr.mxu0 0.0
    %2489 = vmatpush1.msra.mxu0 0.0
    %2490 = vmatprep.subr.mxu0 0.0
    %2491 = vmatpush1.msra.mxu0 0.0
    %2492 = vmatprep.subr.mxu0 0.0
    %2493 = vmatpush1.msra.mxu0 0.0
    %2494 = vmatprep.subr.mxu0 0.0
    %2495 = vmatpush1.msra.mxu0 0.0
    %2496 = vmatprep.subr.mxu0 0.0
    %2497 = vmatpush1.msra.mxu0 0.0
    %2498 = vmatprep.subr.mxu0 0.0
    %2499 = vmatpush1.msra.mxu0 0.0
    %2500 = vmatprep.subr.mxu0 0.0
    %2501 = vmatpush1.msra.mxu0 0.0
    %2502 = vmatprep.subr.mxu0 0.0
    %2503 = vmatpush1.msra.mxu0 0.0
    %2504 = vmatprep.subr.mxu0 0.0
    %2505 = vmatpush1.msra.mxu0 0.0
    %2506 = vmatprep.subr.mxu0 0.0
    %2507 = vmatpush1.msra.mxu0 0.0
    %2508 = vmatprep.subr.mxu0 0.0
    %2509 = vmatpush1.msra.mxu0 0.0
    %2510 = vmatprep.subr.mxu0 0.0
    %2511 = vmatpush1.msra.mxu0 0.0
    %2512 = vmatprep.subr.mxu0 0.0
    %2513 = vmatpush1.msra.mxu0 0.0
    %2514 = vmatprep.mubr.f32.mxu0 0.0
    %2515 = vmatmul.mubr.f32.gmra.mrb[0].mxu0 %v2275
    %v2516 = vpop.f32.mrb[0].mxu0
    %v2517 = vadd.f32 0.0, %v2516
    %v2518 = vpop.f32.mrb[0].mxu0
    %v2519 = vadd.f32 0.0, %v2518
    %2520 = vdwg.mxu0
    %v2525 = vrot.slane %v2446, 2
    %v2526 = vrot.slane %v2448, 2
    %v2527 = vrot.slane %v2517, 2
    %v2528 = vrot.slane %v2519, 2
    %v2533 = vadd.f32 %v158, %v2525
    %v2534 = vadd.f32 %v160, %v2526
    %v2535 = vadd.f32 %v235, %v2527
    %v2536 = vadd.f32 %v237, %v2528
    %v2537 = vmul.f32 %v2533, 0.5
    %v2538 = vtanh.pop %v2537
    %v2539 = vmul.f32 %v2538, 0.5
    %v2540 = vadd.f32 %v2539, 0.5
    %v2541 = vmul.f32 %v2534, 0.5
    %v2542 = vtanh.pop %v2541
    %v2543 = vmul.f32 %v2542, 0.5
    %v2544 = vadd.f32 %v2543, 0.5
    %v2545 = vtanh.pop %v2535
    %v2546 = vmul.f32 %v2536, 0.5
    %v2547 = vtanh.pop %v2546
    %v2548 = vmul.f32 %v2547, 0.5
    %v2549 = vadd.f32 %v2548, 0.5
    %v2551 = vrot.slane %v2267, 6
    %v2553 = vmul.f32 %v2544, %v2551
    %v2554 = vmul.f32 %v2540, %v2545
    %v2555 = vadd.f32 %v2553, %v2554
    %v2556 = vtanh.pop %v2555
    %v2557 = vmul.f32 %v2549, %v2556
    %v2559 = vrot.slane %v2378, 6
    %2560 = vrot.lane.b32.xlu0 %v2559, 32
    %v2561 = vpop.permute.xlu0 %2560
    %v2563 = vrot.slane %v2557, 6
    %v2564 = vrot.slane %v2561, 6
    %v2566 = vsel %vm573, %v2564, 0
    %2568 = vmatprep.subr.mxu0 0.0
    %2569 = vmatpush1.msra.mxu0 %v389
    %2570 = vmatprep.subr.mxu0 0.0
    %2571 = vmatpush1.msra.mxu0 %v390
    %2572 = vmatprep.subr.mxu0 0.0
    %2573 = vmatpush1.msra.mxu0 %v391
    %2574 = vmatprep.subr.mxu0 0.0
    %2575 = vmatpush1.msra.mxu0 %v392
    %2576 = vmatprep.subr.mxu0 0.0
    %2577 = vmatpush1.msra.mxu0 %v393
    %2578 = vmatprep.subr.mxu0 0.0
    %2579 = vmatpush1.msra.mxu0 %v394
    %2580 = vmatprep.subr.mxu0 0.0
    %2581 = vmatpush1.msra.mxu0 %v395
    %2582 = vmatprep.subr.mxu0 0.0
    %2583 = vmatpush1.msra.mxu0 %v396
    %2584 = vmatprep.subr.mxu0 0.0
    %2585 = vmatpush1.msra.mxu0 %v397
    %2586 = vmatprep.subr.mxu0 0.0
    %2587 = vmatpush1.msra.mxu0 %v398
    %2588 = vmatprep.subr.mxu0 0.0
    %2589 = vmatpush1.msra.mxu0 %v399
    %2590 = vmatprep.subr.mxu0 0.0
    %2591 = vmatpush1.msra.mxu0 %v400
    %2592 = vmatprep.subr.mxu0 0.0
    %2593 = vmatpush1.msra.mxu0 %v401
    %2594 = vmatprep.subr.mxu0 0.0
    %2595 = vmatpush1.msra.mxu0 %v402
    %2596 = vmatprep.subr.mxu0 0.0
    %2597 = vmatpush1.msra.mxu0 %v403
    %2598 = vmatprep.subr.mxu0 0.0
    %2599 = vmatpush1.msra.mxu0 %v404
    %2600 = vmatprep.subr.mxu0 0.0
    %2601 = vmatpush1.msra.mxu0 %v405
    %2602 = vmatprep.subr.mxu0 0.0
    %2603 = vmatpush1.msra.mxu0 %v406
    %2604 = vmatprep.subr.mxu0 0.0
    %2605 = vmatpush1.msra.mxu0 %v407
    %2606 = vmatprep.subr.mxu0 0.0
    %2607 = vmatpush1.msra.mxu0 %v408
    %2608 = vmatprep.subr.mxu0 0.0
    %2609 = vmatpush1.msra.mxu0 0.0
    %2610 = vmatprep.subr.mxu0 0.0
    %2611 = vmatpush1.msra.mxu0 0.0
    %2612 = vmatprep.subr.mxu0 0.0
    %2613 = vmatpush1.msra.mxu0 0.0
    %2614 = vmatprep.subr.mxu0 0.0
    %2615 = vmatpush1.msra.mxu0 0.0
    %2616 = vmatprep.subr.mxu0 0.0
    %2617 = vmatpush1.msra.mxu0 0.0
    %2618 = vmatprep.subr.mxu0 0.0
    %2619 = vmatpush1.msra.mxu0 0.0
    %2620 = vmatprep.subr.mxu0 0.0
    %2621 = vmatpush1.msra.mxu0 0.0
    %2622 = vmatprep.subr.mxu0 0.0
    %2623 = vmatpush1.msra.mxu0 0.0
    %2624 = vmatprep.subr.mxu0 0.0
    %2625 = vmatpush1.msra.mxu0 0.0
    %2626 = vmatprep.subr.mxu0 0.0
    %2627 = vmatpush1.msra.mxu0 0.0
    %2628 = vmatprep.subr.mxu0 0.0
    %2629 = vmatpush1.msra.mxu0 0.0
    %2630 = vmatprep.subr.mxu0 0.0
    %2631 = vmatpush1.msra.mxu0 0.0
    %2632 = vmatprep.mubr.f32.mxu0 %v2566
    %2633 = vmatmul.mubr.f32.gmra.mrb[0].mxu0 %v2563
    %v2634 = vpop.f32.mrb[0].mxu0
    %v2635 = vadd.f32 0.0, %v2634
    %v2636 = vpop.f32.mrb[0].mxu0
    %2637 = vdwg.mxu0
    %v2639 = vrot.slane %v2635, 2
    %v2641 = vadd.f32 %v322, %v2639
    %v2642 = vmul.f32 %v2641, 0.5
    %v2643 = vtanh.pop %v2642
    %v2644 = vmul.f32 %v2643, 0.5
    %v2645 = vadd.f32 %v2644, 0.5
    %v2646 = vtanh.pop %v2641
    %v2648 = vrot.slane %v2372, 6
    %v2650 = vmul.f32 %v2645, %v2648
    %2652 = vrot.lane.b32.xlu0 %v2646, 64
    %v2653 = vpop.permute.xlu0 %2652
    %v2655 = vmul.f32 %v2645, %v2653
    %2657 = vrot.lane.b32.xlu0 %v2655, 32
    %v2658 = vpop.permute.xlu0 %2657
    %v2660 = vadd.f32 %v2650, %v2658
    %v2661 = vtanh.pop %v2660
    %2663 = vrot.lane.b32.xlu0 %v2661, 64
    %v2664 = vpop.permute.xlu0 %2663
    %v2666 = vmul.f32 %v2645, %v2664
    %v2667 = vld [vmem:[%s7] sm:$0xff]
    %v2668 = vld [vmem:[%s7 + $0x8] sm:$0xff]
    %v2669 = vld [vmem:[%s7 + $0x10] sm:$0xff]
    %v2670 = vld [vmem:[%s7 + $0x18] sm:$0xff]
    %v2671 = vld [vmem:[%s7 + $0x20] sm:$0xff]
    %v2672 = vld [vmem:[%s7 + $0x28] sm:$0xff]
    %v2673 = vld [vmem:[%s7 + $0x30] sm:$0xff]
    %v2674 = vld [vmem:[%s7 + $0x38] sm:$0xff]
    %v2675 = vld [vmem:[%s7 + $0x40] sm:$0xff]
    %v2676 = vld [vmem:[%s7 + $0x48] sm:$0xff]
    %v2677 = vld [vmem:[%s7 + $0x50] sm:$0xff]
    %v2678 = vld [vmem:[%s7 + $0x58] sm:$0xff]
    %v2679 = vld [vmem:[%s7 + $0x60] sm:$0xff]
    %v2680 = vld [vmem:[%s7 + $0x68] sm:$0xff]
    %v2681 = vld [vmem:[%s7 + $0x70] sm:$0xff]
    %v2682 = vld [vmem:[%s7 + $0x78] sm:$0xff]
    %v2683 = vld [vmem:[%s7 + $0x80] sm:$0xff]
    %v2684 = vld [vmem:[%s7 + $0x88] sm:$0xff]
    %v2685 = vld [vmem:[%s7 + $0x90] sm:$0xff]
    %v2686 = vld [vmem:[%s7 + $0x98] sm:$0xff]
    %v2687 = vld [vmem:[%s7 + $0xa0] sm:$0xff]
    %v2688 = vld [vmem:[%s7 + $0xa8] sm:$0xff]
    %v2689 = vld [vmem:[%s7 + $0xb0] sm:$0xff]
    %v2690 = vld [vmem:[%s7 + $0xb8] sm:$0xff]
    %v2691 = vld [vmem:[%s7 + $0xc0] sm:$0xff]
    %v2692 = vld [vmem:[%s7 + $0xc8] sm:$0xff]
    %v2693 = vld [vmem:[%s7 + $0xd0] sm:$0xff]
    %v2694 = vld [vmem:[%s7 + $0xd8] sm:$0xff]
    %v2695 = vld [vmem:[%s7 + $0xe0] sm:$0xff]
    %v2696 = vld [vmem:[%s7 + $0xe8] sm:$0xff]
    %v2697 = vld [vmem:[%s7 + $0xf0] sm:$0xff]
    %v2698 = vld [vmem:[%s7 + $0xf8] sm:$0xff]
    %v2699 = vld [vmem:[%s8] sm:$0xff]
    %v2701 = vlaneseq
    %v2702 = vshrl.u32 %v2701, 7
    %v2703 = vsub.s32 0, %v2702
    %v2704 = vrot.slane %v2699, %v2703
    %v2705 = vlaneseq
    %v2706 = vshrl.u32 %v2705, 7
    %v2707 = vsub.s32 1, %v2706
    %v2708 = vrot.slane %v2699, %v2707
    %v2709 = vlaneseq
    %v2710 = vshrl.u32 %v2709, 7
    %v2711 = vsub.s32 2, %v2710
    %v2712 = vrot.slane %v2699, %v2711
    %v2713 = vlaneseq
    %v2714 = vshrl.u32 %v2713, 7
    %v2715 = vsub.s32 3, %v2714
    %v2716 = vrot.slane %v2699, %v2715
    %v2717 = vlaneseq
    %v2718 = vshrl.u32 %v2717, 7
    %v2719 = vsub.s32 4, %v2718
    %v2720 = vrot.slane %v2699, %v2719
    %v2721 = vlaneseq
    %v2722 = vshrl.u32 %v2721, 7
    %v2723 = vsub.s32 5, %v2722
    %v2724 = vrot.slane %v2699, %v2723
    %v2725 = vlaneseq
    %v2726 = vshrl.u32 %v2725, 7
    %v2727 = vsub.s32 6, %v2726
    %v2728 = vrot.slane %v2699, %v2727
    %v2729 = vlaneseq
    %v2730 = vshrl.u32 %v2729, 7
    %v2731 = vsub.s32 7, %v2730
    %v2732 = vrot.slane %v2699, %v2731
    %v2742 = vrot.slane %v2666, 6
    %2743 = vrot.lane.b32.xlu0 %v2742, 32
    %v2744 = vpop.permute.xlu0 %2743
    %v2745 = vsel %vm573, %v2744, 0
    %2747 = vmatprep.subr.mxu0 %v2668
    %2748 = vmatpush1.msra.mxu0 %v2667
    %2749 = vmatprep.subr.mxu0 %v2676
    %2750 = vmatpush1.msra.mxu0 %v2675
    %2751 = vmatprep.subr.mxu0 %v2684
    %2752 = vmatpush1.msra.mxu0 %v2683
    %2753 = vmatprep.subr.mxu0 %v2692
    %2754 = vmatpush1.msra.mxu0 %v2691
    %2755 = vmatprep.subr.mxu0 0.0
    %2756 = vmatpush1.msra.mxu0 0.0
    %2757 = vmatprep.subr.mxu0 0.0
    %2758 = vmatpush1.msra.mxu0 0.0
    %2759 = vmatprep.subr.mxu0 0.0
    %2760 = vmatpush1.msra.mxu0 0.0
    %2761 = vmatprep.subr.mxu0 0.0
    %2762 = vmatpush1.msra.mxu0 0.0
    %2763 = vmatprep.subr.mxu0 0.0
    %2764 = vmatpush1.msra.mxu0 0.0
    %2765 = vmatprep.subr.mxu0 0.0
    %2766 = vmatpush1.msra.mxu0 0.0
    %2767 = vmatprep.subr.mxu0 0.0
    %2768 = vmatpush1.msra.mxu0 0.0
    %2769 = vmatprep.subr.mxu0 0.0
    %2770 = vmatpush1.msra.mxu0 0.0
    %2771 = vmatprep.subr.mxu0 0.0
    %2772 = vmatpush1.msra.mxu0 0.0
    %2773 = vmatprep.subr.mxu0 0.0
    %2774 = vmatpush1.msra.mxu0 0.0
    %2775 = vmatprep.subr.mxu0 0.0
    %2776 = vmatpush1.msra.mxu0 0.0
    %2777 = vmatprep.subr.mxu0 0.0
    %2778 = vmatpush1.msra.mxu0 0.0
    %2779 = vmatprep.subr.mxu0 0.0
    %2780 = vmatpush1.msra.mxu0 0.0
    %2781 = vmatprep.subr.mxu0 0.0
    %2782 = vmatpush1.msra.mxu0 0.0
    %2783 = vmatprep.subr.mxu0 0.0
    %2784 = vmatpush1.msra.mxu0 0.0
    %2785 = vmatprep.subr.mxu0 0.0
    %2786 = vmatpush1.msra.mxu0 0.0
    %2787 = vmatprep.subr.mxu0 0.0
    %2788 = vmatpush1.msra.mxu0 0.0
    %2789 = vmatprep.subr.mxu0 0.0
    %2790 = vmatpush1.msra.mxu0 0.0
    %2791 = vmatprep.subr.mxu0 0.0
    %2792 = vmatpush1.msra.mxu0 0.0
    %2793 = vmatprep.subr.mxu0 0.0
    %2794 = vmatpush1.msra.mxu0 0.0
    %2795 = vmatprep.subr.mxu0 0.0
    %2796 = vmatpush1.msra.mxu0 0.0
    %2797 = vmatprep.subr.mxu0 0.0
    %2798 = vmatpush1.msra.mxu0 0.0
    %2799 = vmatprep.subr.mxu0 0.0
    %2800 = vmatpush1.msra.mxu0 0.0
    %2801 = vmatprep.subr.mxu0 0.0
    %2802 = vmatpush1.msra.mxu0 0.0
    %2803 = vmatprep.subr.mxu0 0.0
    %2804 = vmatpush1.msra.mxu0 0.0
    %2805 = vmatprep.subr.mxu0 0.0
    %2806 = vmatpush1.msra.mxu0 0.0
    %2807 = vmatprep.subr.mxu0 0.0
    %2808 = vmatpush1.msra.mxu0 0.0
    %2809 = vmatprep.subr.mxu0 0.0
    %2810 = vmatpush1.msra.mxu0 0.0
    %2811 = vmatprep.mubr.f32.mxu0 0.0
    %2812 = vmatmul.mubr.f32.gmra.mrb[0].mxu0 %v2745
    %v2813 = vpop.f32.mrb[0].mxu0
    %v2814 = vadd.f32 %v2704, %v2813
    %v2815 = vpop.f32.mrb[0].mxu0
    %v2816 = vadd.f32 %v2708, %v2815
    %2817 = vdwg.mxu0
    %2818 = vmatprep.subr.mxu0 %v2670
    %2819 = vmatpush1.msra.mxu0 %v2669
    %2820 = vmatprep.subr.mxu0 %v2678
    %2821 = vmatpush1.msra.mxu0 %v2677
    %2822 = vmatprep.subr.mxu0 %v2686
    %2823 = vmatpush1.msra.mxu0 %v2685
    %2824 = vmatprep.subr.mxu0 %v2694
    %2825 = vmatpush1.msra.mxu0 %v2693
    %2826 = vmatprep.subr.mxu0 0.0
    %2827 = vmatpush1.msra.mxu0 0.0
    %2828 = vmatprep.subr.mxu0 0.0
    %2829 = vmatpush1.msra.mxu0 0.0
    %2830 = vmatprep.subr.mxu0 0.0
    %2831 = vmatpush1.msra.mxu0 0.0
    %2832 = vmatprep.subr.mxu0 0.0
    %2833 = vmatpush1.msra.mxu0 0.0
    %2834 = vmatprep.subr.mxu0 0.0
    %2835 = vmatpush1.msra.mxu0 0.0
    %2836 = vmatprep.subr.mxu0 0.0
    %2837 = vmatpush1.msra.mxu0 0.0
    %2838 = vmatprep.subr.mxu0 0.0
    %2839 = vmatpush1.msra.mxu0 0.0
    %2840 = vmatprep.subr.mxu0 0.0
    %2841 = vmatpush1.msra.mxu0 0.0
    %2842 = vmatprep.subr.mxu0 0.0
    %2843 = vmatpush1.msra.mxu0 0.0
    %2844 = vmatprep.subr.mxu0 0.0
    %2845 = vmatpush1.msra.mxu0 0.0
    %2846 = vmatprep.subr.mxu0 0.0
    %2847 = vmatpush1.msra.mxu0 0.0
    %2848 = vmatprep.subr.mxu0 0.0
    %2849 = vmatpush1.msra.mxu0 0.0
    %2850 = vmatprep.subr.mxu0 0.0
    %2851 = vmatpush1.msra.mxu0 0.0
    %2852 = vmatprep.subr.mxu0 0.0
    %2853 = vmatpush1.msra.mxu0 0.0
    %2854 = vmatprep.subr.mxu0 0.0
    %2855 = vmatpush1.msra.mxu0 0.0
    %2856 = vmatprep.subr.mxu0 0.0
    %2857 = vmatpush1.msra.mxu0 0.0
    %2858 = vmatprep.subr.mxu0 0.0
    %2859 = vmatpush1.msra.mxu0 0.0
    %2860 = vmatprep.subr.mxu0 0.0
    %2861 = vmatpush1.msra.mxu0 0.0
    %2862 = vmatprep.subr.mxu0 0.0
    %2863 = vmatpush1.msra.mxu0 0.0
    %2864 = vmatprep.subr.mxu0 0.0
    %2865 = vmatpush1.msra.mxu0 0.0
    %2866 = vmatprep.subr.mxu0 0.0
    %2867 = vmatpush1.msra.mxu0 0.0
    %2868 = vmatprep.subr.mxu0 0.0
    %2869 = vmatpush1.msra.mxu0 0.0
    %2870 = vmatprep.subr.mxu0 0.0
    %2871 = vmatpush1.msra.mxu0 0.0
    %2872 = vmatprep.subr.mxu0 0.0
    %2873 = vmatpush1.msra.mxu0 0.0
    %2874 = vmatprep.subr.mxu0 0.0
    %2875 = vmatpush1.msra.mxu0 0.0
    %2876 = vmatprep.subr.mxu0 0.0
    %2877 = vmatpush1.msra.mxu0 0.0
    %2878 = vmatprep.subr.mxu0 0.0
    %2879 = vmatpush1.msra.mxu0 0.0
    %2880 = vmatprep.subr.mxu0 0.0
    %2881 = vmatpush1.msra.mxu0 0.0
    %2882 = vmatprep.mubr.f32.mxu0 0.0
    %2883 = vmatmul.mubr.f32.gmra.mrb[0].mxu0 %v2745
    %v2884 = vpop.f32.mrb[0].mxu0
    %v2885 = vadd.f32 %v2712, %v2884
    %v2886 = vpop.f32.mrb[0].mxu0
    %v2887 = vadd.f32 %v2716, %v2886
    %2888 = vdwg.mxu0
    %2889 = vmatprep.subr.mxu0 %v2672
    %2890 = vmatpush1.msra.mxu0 %v2671
    %2891 = vmatprep.subr.mxu0 %v2680
    %2892 = vmatpush1.msra.mxu0 %v2679
    %2893 = vmatprep.subr.mxu0 %v2688
    %2894 = vmatpush1.msra.mxu0 %v2687
    %2895 = vmatprep.subr.mxu0 %v2696
    %2896 = vmatpush1.msra.mxu0 %v2695
    %2897 = vmatprep.subr.mxu0 0.0
    %2898 = vmatpush1.msra.mxu0 0.0
    %2899 = vmatprep.subr.mxu0 0.0
    %2900 = vmatpush1.msra.mxu0 0.0
    %2901 = vmatprep.subr.mxu0 0.0
    %2902 = vmatpush1.msra.mxu0 0.0
    %2903 = vmatprep.subr.mxu0 0.0
    %2904 = vmatpush1.msra.mxu0 0.0
    %2905 = vmatprep.subr.mxu0 0.0
    %2906 = vmatpush1.msra.mxu0 0.0
    %2907 = vmatprep.subr.mxu0 0.0
    %2908 = vmatpush1.msra.mxu0 0.0
    %2909 = vmatprep.subr.mxu0 0.0
    %2910 = vmatpush1.msra.mxu0 0.0
    %2911 = vmatprep.subr.mxu0 0.0
    %2912 = vmatpush1.msra.mxu0 0.0
    %2913 = vmatprep.subr.mxu0 0.0
    %2914 = vmatpush1.msra.mxu0 0.0
    %2915 = vmatprep.subr.mxu0 0.0
    %2916 = vmatpush1.msra.mxu0 0.0
    %2917 = vmatprep.subr.mxu0 0.0
    %2918 = vmatpush1.msra.mxu0 0.0
    %2919 = vmatprep.subr.mxu0 0.0
    %2920 = vmatpush1.msra.mxu0 0.0
    %2921 = vmatprep.subr.mxu0 0.0
    %2922 = vmatpush1.msra.mxu0 0.0
    %2923 = vmatprep.subr.mxu0 0.0
    %2924 = vmatpush1.msra.mxu0 0.0
    %2925 = vmatprep.subr.mxu0 0.0
    %2926 = vmatpush1.msra.mxu0 0.0
    %2927 = vmatprep.subr.mxu0 0.0
    %2928 = vmatpush1.msra.mxu0 0.0
    %2929 = vmatprep.subr.mxu0 0.0
    %2930 = vmatpush1.msra.mxu0 0.0
    %2931 = vmatprep.subr.mxu0 0.0
    %2932 = vmatpush1.msra.mxu0 0.0
    %2933 = vmatprep.subr.mxu0 0.0
    %2934 = vmatpush1.msra.mxu0 0.0
    %2935 = vmatprep.subr.mxu0 0.0
    %2936 = vmatpush1.msra.mxu0 0.0
    %2937 = vmatprep.subr.mxu0 0.0
    %2938 = vmatpush1.msra.mxu0 0.0
    %2939 = vmatprep.subr.mxu0 0.0
    %2940 = vmatpush1.msra.mxu0 0.0
    %2941 = vmatprep.subr.mxu0 0.0
    %2942 = vmatpush1.msra.mxu0 0.0
    %2943 = vmatprep.subr.mxu0 0.0
    %2944 = vmatpush1.msra.mxu0 0.0
    %2945 = vmatprep.subr.mxu0 0.0
    %2946 = vmatpush1.msra.mxu0 0.0
    %2947 = vmatprep.subr.mxu0 0.0
    %2948 = vmatpush1.msra.mxu0 0.0
    %2949 = vmatprep.subr.mxu0 0.0
    %2950 = vmatpush1.msra.mxu0 0.0
    %2951 = vmatprep.subr.mxu0 0.0
    %2952 = vmatpush1.msra.mxu0 0.0
    %2953 = vmatprep.mubr.f32.mxu0 0.0
    %2954 = vmatmul.mubr.f32.gmra.mrb[0].mxu0 %v2745
    %v2955 = vpop.f32.mrb[0].mxu0
    %v2956 = vadd.f32 %v2720, %v2955
    %v2957 = vpop.f32.mrb[0].mxu0
    %v2958 = vadd.f32 %v2724, %v2957
    %2959 = vdwg.mxu0
    %2960 = vmatprep.subr.mxu0 %v2674
    %2961 = vmatpush1.msra.mxu0 %v2673
    %2962 = vmatprep.subr.mxu0 %v2682
    %2963 = vmatpush1.msra.mxu0 %v2681
    %2964 = vmatprep.subr.mxu0 %v2690
    %2965 = vmatpush1.msra.mxu0 %v2689
    %2966 = vmatprep.subr.mxu0 %v2698
    %2967 = vmatpush1.msra.mxu0 %v2697
    %2968 = vmatprep.subr.mxu0 0.0
    %2969 = vmatpush1.msra.mxu0 0.0
    %2970 = vmatprep.subr.mxu0 0.0
    %2971 = vmatpush1.msra.mxu0 0.0
    %2972 = vmatprep.subr.mxu0 0.0
    %2973 = vmatpush1.msra.mxu0 0.0
    %2974 = vmatprep.subr.mxu0 0.0
    %2975 = vmatpush1.msra.mxu0 0.0
    %2976 = vmatprep.subr.mxu0 0.0
    %2977 = vmatpush1.msra.mxu0 0.0
    %2978 = vmatprep.subr.mxu0 0.0
    %2979 = vmatpush1.msra.mxu0 0.0
    %2980 = vmatprep.subr.mxu0 0.0
    %2981 = vmatpush1.msra.mxu0 0.0
    %2982 = vmatprep.subr.mxu0 0.0
    %2983 = vmatpush1.msra.mxu0 0.0
    %2984 = vmatprep.subr.mxu0 0.0
    %2985 = vmatpush1.msra.mxu0 0.0
    %2986 = vmatprep.subr.mxu0 0.0
    %2987 = vmatpush1.msra.mxu0 0.0
    %2988 = vmatprep.subr.mxu0 0.0
    %2989 = vmatpush1.msra.mxu0 0.0
    %2990 = vmatprep.subr.mxu0 0.0
    %2991 = vmatpush1.msra.mxu0 0.0
    %2992 = vmatprep.subr.mxu0 0.0
    %2993 = vmatpush1.msra.mxu0 0.0
    %2994 = vmatprep.subr.mxu0 0.0
    %2995 = vmatpush1.msra.mxu0 0.0
    %2996 = vmatprep.subr.mxu0 0.0
    %2997 = vmatpush1.msra.mxu0 0.0
    %2998 = vmatprep.subr.mxu0 0.0
    %2999 = vmatpush1.msra.mxu0 0.0
    %3000 = vmatprep.subr.mxu0 0.0
    %3001 = vmatpush1.msra.mxu0 0.0
    %3002 = vmatprep.subr.mxu0 0.0
    %3003 = vmatpush1.msra.mxu0 0.0
    %3004 = vmatprep.subr.mxu0 0.0
    %3005 = vmatpush1.msra.mxu0 0.0
    %3006 = vmatprep.subr.mxu0 0.0
    %3007 = vmatpush1.msra.mxu0 0.0
    %3008 = vmatprep.subr.mxu0 0.0
    %3009 = vmatpush1.msra.mxu0 0.0
    %3010 = vmatprep.subr.mxu0 0.0
    %3011 = vmatpush1.msra.mxu0 0.0
    %3012 = vmatprep.subr.mxu0 0.0
    %3013 = vmatpush1.msra.mxu0 0.0
    %3014 = vmatprep.subr.mxu0 0.0
    %3015 = vmatpush1.msra.mxu0 0.0
    %3016 = vmatprep.subr.mxu0 0.0
    %3017 = vmatpush1.msra.mxu0 0.0
    %3018 = vmatprep.subr.mxu0 0.0
    %3019 = vmatpush1.msra.mxu0 0.0
    %3020 = vmatprep.subr.mxu0 0.0
    %3021 = vmatpush1.msra.mxu0 0.0
    %3022 = vmatprep.subr.mxu0 0.0
    %3023 = vmatpush1.msra.mxu0 0.0
    %3024 = vmatprep.mubr.f32.mxu0 0.0
    %3025 = vmatmul.mubr.f32.gmra.mrb[0].mxu0 %v2745
    %v3026 = vpop.f32.mrb[0].mxu0
    %v3027 = vadd.f32 %v2728, %v3026
    %v3028 = vpop.f32.mrb[0].mxu0
    %v3029 = vadd.f32 %v2732, %v3028
    %3030 = vdwg.mxu0
    %v3031 = vmax.f32 %v2814, 0.0
    %v3032 = vmax.f32 %v2816, 0.0
    %v3033 = vmax.f32 %v2885, 0.0
    %v3034 = vmax.f32 %v2887, 0.0
    %v3035 = vmax.f32 %v2956, 0.0
    %v3036 = vmax.f32 %v2958, 0.0
    %v3037 = vmax.f32 %v3027, 0.0
    %v3038 = vmax.f32 %v3029, 0.0
    %v3039 = vld [vmem:[%s9] sm:$0xff]
    %v3040 = vld [vmem:[%s9 + $0x8] sm:$0xff]
    %v3041 = vld [vmem:[%s9 + $0x10] sm:$0xff]
    %v3042 = vld [vmem:[%s9 + $0x18] sm:$0xff]
    %v3043 = vld [vmem:[%s9 + $0x20] sm:$0xff]
    %v3044 = vld [vmem:[%s9 + $0x28] sm:$0xff]
    %v3045 = vld [vmem:[%s9 + $0x30] sm:$0xff]
    %v3046 = vld [vmem:[%s9 + $0x38] sm:$0xff]
    %v3047 = vld [vmem:[%s9 + $0x40] sm:$0xff]
    %v3048 = vld [vmem:[%s9 + $0x48] sm:$0xff]
    %v3049 = vld [vmem:[%s9 + $0x50] sm:$0xff]
    %v3050 = vld [vmem:[%s9 + $0x58] sm:$0xff]
    %v3051 = vld [vmem:[%s9 + $0x60] sm:$0xff]
    %v3052 = vld [vmem:[%s9 + $0x68] sm:$0xff]
    %v3053 = vld [vmem:[%s9 + $0x70] sm:$0xff]
    %v3054 = vld [vmem:[%s9 + $0x78] sm:$0xff]
    %v3055 = vld [vmem:[%s9 + $0x80] sm:$0xff]
    %v3056 = vld [vmem:[%s9 + $0x88] sm:$0xff]
    %v3057 = vld [vmem:[%s9 + $0x90] sm:$0xff]
    %v3058 = vld [vmem:[%s9 + $0x98] sm:$0xff]
    %v3059 = vld [vmem:[%s9 + $0xa0] sm:$0xff]
    %v3060 = vld [vmem:[%s9 + $0xa8] sm:$0xff]
    %v3061 = vld [vmem:[%s9 + $0xb0] sm:$0xff]
    %v3062 = vld [vmem:[%s9 + $0xb8] sm:$0xff]
    %v3063 = vld [vmem:[%s9 + $0xc0] sm:$0xff]
    %v3064 = vld [vmem:[%s9 + $0xc8] sm:$0xff]
    %v3065 = vld [vmem:[%s9 + $0xd0] sm:$0xff]
    %v3066 = vld [vmem:[%s9 + $0xd8] sm:$0xff]
    %v3067 = vld [vmem:[%s9 + $0xe0] sm:$0xff]
    %v3068 = vld [vmem:[%s9 + $0xe8] sm:$0xff]
    %v3069 = vld [vmem:[%s9 + $0xf0] sm:$0xff]
    %v3070 = vld [vmem:[%s9 + $0xf8] sm:$0xff]
    %v3071 = vld [vmem:[%s9 + $0x100] sm:$0xff]
    %v3072 = vld [vmem:[%s9 + $0x108] sm:$0xff]
    %v3073 = vld [vmem:[%s9 + $0x110] sm:$0xff]
    %v3074 = vld [vmem:[%s9 + $0x118] sm:$0xff]
    %v3075 = vld [vmem:[%s9 + $0x120] sm:$0xff]
    %v3076 = vld [vmem:[%s9 + $0x128] sm:$0xff]
    %v3077 = vld [vmem:[%s9 + $0x130] sm:$0xff]
    %v3078 = vld [vmem:[%s9 + $0x138] sm:$0xff]
    %v3079 = vld [vmem:[%s9 + $0x140] sm:$0xff]
    %v3080 = vld [vmem:[%s9 + $0x148] sm:$0xff]
    %v3081 = vld [vmem:[%s9 + $0x150] sm:$0xff]
    %v3082 = vld [vmem:[%s9 + $0x158] sm:$0xff]
    %v3083 = vld [vmem:[%s9 + $0x160] sm:$0xff]
    %v3084 = vld [vmem:[%s9 + $0x168] sm:$0xff]
    %v3085 = vld [vmem:[%s9 + $0x170] sm:$0xff]
    %v3086 = vld [vmem:[%s9 + $0x178] sm:$0xff]
    %v3087 = vld [vmem:[%s9 + $0x180] sm:$0xff]
    %v3088 = vld [vmem:[%s9 + $0x188] sm:$0xff]
    %v3089 = vld [vmem:[%s9 + $0x190] sm:$0xff]
    %v3090 = vld [vmem:[%s9 + $0x198] sm:$0xff]
    %v3091 = vld [vmem:[%s9 + $0x1a0] sm:$0xff]
    %v3092 = vld [vmem:[%s9 + $0x1a8] sm:$0xff]
    %v3093 = vld [vmem:[%s9 + $0x1b0] sm:$0xff]
    %v3094 = vld [vmem:[%s9 + $0x1b8] sm:$0xff]
    %v3095 = vld [vmem:[%s9 + $0x1c0] sm:$0xff]
    %v3096 = vld [vmem:[%s9 + $0x1c8] sm:$0xff]
    %v3097 = vld [vmem:[%s9 + $0x1d0] sm:$0xff]
    %v3098 = vld [vmem:[%s9 + $0x1d8] sm:$0xff]
    %v3099 = vld [vmem:[%s9 + $0x1e0] sm:$0xff]
    %v3100 = vld [vmem:[%s9 + $0x1e8] sm:$0xff]
    %v3101 = vld [vmem:[%s9 + $0x1f0] sm:$0xff]
    %v3102 = vld [vmem:[%s9 + $0x1f8] sm:$0xff]
    %v3103 = vld [vmem:[%s9 + $0x200] sm:$0xff]
    %v3104 = vld [vmem:[%s9 + $0x208] sm:$0xff]
    %v3105 = vld [vmem:[%s9 + $0x210] sm:$0xff]
    %v3106 = vld [vmem:[%s9 + $0x218] sm:$0xff]
    %v3107 = vld [vmem:[%s9 + $0x220] sm:$0xff]
    %v3108 = vld [vmem:[%s9 + $0x228] sm:$0xff]
    %v3109 = vld [vmem:[%s9 + $0x230] sm:$0xff]
    %v3110 = vld [vmem:[%s9 + $0x238] sm:$0xff]
    %v3111 = vld [vmem:[%s9 + $0x240] sm:$0xff]
    %v3112 = vld [vmem:[%s9 + $0x248] sm:$0xff]
    %v3113 = vld [vmem:[%s9 + $0x250] sm:$0xff]
    %v3114 = vld [vmem:[%s9 + $0x258] sm:$0xff]
    %v3115 = vld [vmem:[%s9 + $0x260] sm:$0xff]
    %v3116 = vld [vmem:[%s9 + $0x268] sm:$0xff]
    %v3117 = vld [vmem:[%s9 + $0x270] sm:$0xff]
    %v3118 = vld [vmem:[%s9 + $0x278] sm:$0xff]
    %v3119 = vld [vmem:[%s9 + $0x280] sm:$0xff]
    %v3120 = vld [vmem:[%s9 + $0x288] sm:$0xff]
    %v3121 = vld [vmem:[%s9 + $0x290] sm:$0xff]
    %v3122 = vld [vmem:[%s9 + $0x298] sm:$0xff]
    %v3123 = vld [vmem:[%s9 + $0x2a0] sm:$0xff]
    %v3124 = vld [vmem:[%s9 + $0x2a8] sm:$0xff]
    %v3125 = vld [vmem:[%s9 + $0x2b0] sm:$0xff]
    %v3126 = vld [vmem:[%s9 + $0x2b8] sm:$0xff]
    %v3127 = vld [vmem:[%s9 + $0x2c0] sm:$0xff]
    %v3128 = vld [vmem:[%s9 + $0x2c8] sm:$0xff]
    %v3129 = vld [vmem:[%s9 + $0x2d0] sm:$0xff]
    %v3130 = vld [vmem:[%s9 + $0x2d8] sm:$0xff]
    %v3131 = vld [vmem:[%s9 + $0x2e0] sm:$0xff]
    %v3132 = vld [vmem:[%s9 + $0x2e8] sm:$0xff]
    %v3133 = vld [vmem:[%s9 + $0x2f0] sm:$0xff]
    %v3134 = vld [vmem:[%s9 + $0x2f8] sm:$0xff]
    %v3135 = vld [vmem:[%s9 + $0x300] sm:$0xff]
    %v3136 = vld [vmem:[%s9 + $0x308] sm:$0xff]
    %v3137 = vld [vmem:[%s9 + $0x310] sm:$0xff]
    %v3138 = vld [vmem:[%s9 + $0x318] sm:$0xff]
    %v3139 = vld [vmem:[%s9 + $0x320] sm:$0xff]
    %v3140 = vld [vmem:[%s9 + $0x328] sm:$0xff]
    %v3141 = vld [vmem:[%s9 + $0x330] sm:$0xff]
    %v3142 = vld [vmem:[%s9 + $0x338] sm:$0xff]
    %v3143 = vld [vmem:[%s9 + $0x340] sm:$0xff]
    %v3144 = vld [vmem:[%s9 + $0x348] sm:$0xff]
    %v3145 = vld [vmem:[%s9 + $0x350] sm:$0xff]
    %v3146 = vld [vmem:[%s9 + $0x358] sm:$0xff]
    %v3147 = vld [vmem:[%s9 + $0x360] sm:$0xff]
    %v3148 = vld [vmem:[%s9 + $0x368] sm:$0xff]
    %v3149 = vld [vmem:[%s9 + $0x370] sm:$0xff]
    %v3150 = vld [vmem:[%s9 + $0x378] sm:$0xff]
    %v3151 = vld [vmem:[%s9 + $0x380] sm:$0xff]
    %v3152 = vld [vmem:[%s9 + $0x388] sm:$0xff]
    %v3153 = vld [vmem:[%s9 + $0x390] sm:$0xff]
    %v3154 = vld [vmem:[%s9 + $0x398] sm:$0xff]
    %v3155 = vld [vmem:[%s9 + $0x3a0] sm:$0xff]
    %v3156 = vld [vmem:[%s9 + $0x3a8] sm:$0xff]
    %v3157 = vld [vmem:[%s9 + $0x3b0] sm:$0xff]
    %v3158 = vld [vmem:[%s9 + $0x3b8] sm:$0xff]
    %v3159 = vld [vmem:[%s9 + $0x3c0] sm:$0xff]
    %v3160 = vld [vmem:[%s9 + $0x3c8] sm:$0xff]
    %v3161 = vld [vmem:[%s9 + $0x3d0] sm:$0xff]
    %v3162 = vld [vmem:[%s9 + $0x3d8] sm:$0xff]
    %v3163 = vld [vmem:[%s9 + $0x3e0] sm:$0xff]
    %v3164 = vld [vmem:[%s9 + $0x3e8] sm:$0xff]
    %v3165 = vld [vmem:[%s9 + $0x3f0] sm:$0xff]
    %v3166 = vld [vmem:[%s9 + $0x3f8] sm:$0xff]
    %v3167 = vld [vmem:[%s10] sm:$0x1]
    %v3169 = vlaneseq
    %v3170 = vshrl.u32 %v3169, 7
    %v3171 = vsub.s32 0, %v3170
    %v3172 = vrot.slane %v3167, %v3171
    %3174 = vmatprep.subr.mxu0 0.0
    %3175 = vmatpush1.msra.mxu0 %v3039
    %3176 = vmatprep.subr.mxu0 0.0
    %3177 = vmatpush1.msra.mxu0 %v3040
    %3178 = vmatprep.subr.mxu0 0.0
    %3179 = vmatpush1.msra.mxu0 %v3041
    %3180 = vmatprep.subr.mxu0 0.0
    %3181 = vmatpush1.msra.mxu0 %v3042
    %3182 = vmatprep.subr.mxu0 0.0
    %3183 = vmatpush1.msra.mxu0 %v3043
    %3184 = vmatprep.subr.mxu0 0.0
    %3185 = vmatpush1.msra.mxu0 %v3044
    %3186 = vmatprep.subr.mxu0 0.0
    %3187 = vmatpush1.msra.mxu0 %v3045
    %3188 = vmatprep.subr.mxu0 0.0
    %3189 = vmatpush1.msra.mxu0 %v3046
    %3190 = vmatprep.subr.mxu0 0.0
    %3191 = vmatpush1.msra.mxu0 %v3047
    %3192 = vmatprep.subr.mxu0 0.0
    %3193 = vmatpush1.msra.mxu0 %v3048
    %3194 = vmatprep.subr.mxu0 0.0
    %3195 = vmatpush1.msra.mxu0 %v3049
    %3196 = vmatprep.subr.mxu0 0.0
    %3197 = vmatpush1.msra.mxu0 %v3050
    %3198 = vmatprep.subr.mxu0 0.0
    %3199 = vmatpush1.msra.mxu0 %v3051
    %3200 = vmatprep.subr.mxu0 0.0
    %3201 = vmatpush1.msra.mxu0 %v3052
    %3202 = vmatprep.subr.mxu0 0.0
    %3203 = vmatpush1.msra.mxu0 %v3053
    %3204 = vmatprep.subr.mxu0 0.0
    %3205 = vmatpush1.msra.mxu0 %v3054
    %3206 = vmatprep.subr.mxu0 0.0
    %3207 = vmatpush1.msra.mxu0 %v3055
    %3208 = vmatprep.subr.mxu0 0.0
    %3209 = vmatpush1.msra.mxu0 %v3056
    %3210 = vmatprep.subr.mxu0 0.0
    %3211 = vmatpush1.msra.mxu0 %v3057
    %3212 = vmatprep.subr.mxu0 0.0
    %3213 = vmatpush1.msra.mxu0 %v3058
    %3214 = vmatprep.subr.mxu0 0.0
    %3215 = vmatpush1.msra.mxu0 %v3059
    %3216 = vmatprep.subr.mxu0 0.0
    %3217 = vmatpush1.msra.mxu0 %v3060
    %3218 = vmatprep.subr.mxu0 0.0
    %3219 = vmatpush1.msra.mxu0 %v3061
    %3220 = vmatprep.subr.mxu0 0.0
    %3221 = vmatpush1.msra.mxu0 %v3062
    %3222 = vmatprep.subr.mxu0 0.0
    %3223 = vmatpush1.msra.mxu0 %v3063
    %3224 = vmatprep.subr.mxu0 0.0
    %3225 = vmatpush1.msra.mxu0 %v3064
    %3226 = vmatprep.subr.mxu0 0.0
    %3227 = vmatpush1.msra.mxu0 %v3065
    %3228 = vmatprep.subr.mxu0 0.0
    %3229 = vmatpush1.msra.mxu0 %v3066
    %3230 = vmatprep.subr.mxu0 0.0
    %3231 = vmatpush1.msra.mxu0 %v3067
    %3232 = vmatprep.subr.mxu0 0.0
    %3233 = vmatpush1.msra.mxu0 %v3068
    %3234 = vmatprep.subr.mxu0 0.0
    %3235 = vmatpush1.msra.mxu0 %v3069
    %3236 = vmatprep.subr.mxu0 0.0
    %3237 = vmatpush1.msra.mxu0 %v3070
    %3238 = vmatprep.mubr.f32.mxu0 %v3032
    %3239 = vmatmul.mubr.f32.gmra.mrb[0].mxu0 %v3031
    %v3240 = vpop.f32.mrb[0].mxu0
    %v3241 = vadd.f32 %v3172, %v3240
    %v3242 = vpop.f32.mrb[0].mxu0
    %3243 = vdwg.mxu0
    %3244 = vmatprep.subr.mxu0 0.0
    %3245 = vmatpush1.msra.mxu0 %v3071
    %3246 = vmatprep.subr.mxu0 0.0
    %3247 = vmatpush1.msra.mxu0 %v3072
    %3248 = vmatprep.subr.mxu0 0.0
    %3249 = vmatpush1.msra.mxu0 %v3073
    %3250 = vmatprep.subr.mxu0 0.0
    %3251 = vmatpush1.msra.mxu0 %v3074
    %3252 = vmatprep.subr.mxu0 0.0
    %3253 = vmatpush1.msra.mxu0 %v3075
    %3254 = vmatprep.subr.mxu0 0.0
    %3255 = vmatpush1.msra.mxu0 %v3076
    %3256 = vmatprep.subr.mxu0 0.0
    %3257 = vmatpush1.msra.mxu0 %v3077
    %3258 = vmatprep.subr.mxu0 0.0
    %3259 = vmatpush1.msra.mxu0 %v3078
    %3260 = vmatprep.subr.mxu0 0.0
    %3261 = vmatpush1.msra.mxu0 %v3079
    %3262 = vmatprep.subr.mxu0 0.0
    %3263 = vmatpush1.msra.mxu0 %v3080
    %3264 = vmatprep.subr.mxu0 0.0
    %3265 = vmatpush1.msra.mxu0 %v3081
    %3266 = vmatprep.subr.mxu0 0.0
    %3267 = vmatpush1.msra.mxu0 %v3082
    %3268 = vmatprep.subr.mxu0 0.0
    %3269 = vmatpush1.msra.mxu0 %v3083
    %3270 = vmatprep.subr.mxu0 0.0
    %3271 = vmatpush1.msra.mxu0 %v3084
    %3272 = vmatprep.subr.mxu0 0.0
    %3273 = vmatpush1.msra.mxu0 %v3085
    %3274 = vmatprep.subr.mxu0 0.0
    %3275 = vmatpush1.msra.mxu0 %v3086
    %3276 = vmatprep.subr.mxu0 0.0
    %3277 = vmatpush1.msra.mxu0 %v3087
    %3278 = vmatprep.subr.mxu0 0.0
    %3279 = vmatpush1.msra.mxu0 %v3088
    %3280 = vmatprep.subr.mxu0 0.0
    %3281 = vmatpush1.msra.mxu0 %v3089
    %3282 = vmatprep.subr.mxu0 0.0
    %3283 = vmatpush1.msra.mxu0 %v3090
    %3284 = vmatprep.subr.mxu0 0.0
    %3285 = vmatpush1.msra.mxu0 %v3091
    %3286 = vmatprep.subr.mxu0 0.0
    %3287 = vmatpush1.msra.mxu0 %v3092
    %3288 = vmatprep.subr.mxu0 0.0
    %3289 = vmatpush1.msra.mxu0 %v3093
    %3290 = vmatprep.subr.mxu0 0.0
    %3291 = vmatpush1.msra.mxu0 %v3094
    %3292 = vmatprep.subr.mxu0 0.0
    %3293 = vmatpush1.msra.mxu0 %v3095
    %3294 = vmatprep.subr.mxu0 0.0
    %3295 = vmatpush1.msra.mxu0 %v3096
    %3296 = vmatprep.subr.mxu0 0.0
    %3297 = vmatpush1.msra.mxu0 %v3097
    %3298 = vmatprep.subr.mxu0 0.0
    %3299 = vmatpush1.msra.mxu0 %v3098
    %3300 = vmatprep.subr.mxu0 0.0
    %3301 = vmatpush1.msra.mxu0 %v3099
    %3302 = vmatprep.subr.mxu0 0.0
    %3303 = vmatpush1.msra.mxu0 %v3100
    %3304 = vmatprep.subr.mxu0 0.0
    %3305 = vmatpush1.msra.mxu0 %v3101
    %3306 = vmatprep.subr.mxu0 0.0
    %3307 = vmatpush1.msra.mxu0 %v3102
    %3308 = vmatprep.mubr.f32.mxu0 %v3034
    %3309 = vmatmul.mubr.f32.gmra.mrb[0].mxu0 %v3033
    %v3310 = vpop.f32.mrb[0].mxu0
    %v3311 = vadd.f32 %v3241, %v3310
    %v3312 = vpop.f32.mrb[0].mxu0
    %3313 = vdwg.mxu0
    %3314 = vmatprep.subr.mxu0 0.0
    %3315 = vmatpush1.msra.mxu0 %v3103
    %3316 = vmatprep.subr.mxu0 0.0
    %3317 = vmatpush1.msra.mxu0 %v3104
    %3318 = vmatprep.subr.mxu0 0.0
    %3319 = vmatpush1.msra.mxu0 %v3105
    %3320 = vmatprep.subr.mxu0 0.0
    %3321 = vmatpush1.msra.mxu0 %v3106
    %3322 = vmatprep.subr.mxu0 0.0
    %3323 = vmatpush1.msra.mxu0 %v3107
    %3324 = vmatprep.subr.mxu0 0.0
    %3325 = vmatpush1.msra.mxu0 %v3108
    %3326 = vmatprep.subr.mxu0 0.0
    %3327 = vmatpush1.msra.mxu0 %v3109
    %3328 = vmatprep.subr.mxu0 0.0
    %3329 = vmatpush1.msra.mxu0 %v3110
    %3330 = vmatprep.subr.mxu0 0.0
    %3331 = vmatpush1.msra.mxu0 %v3111
    %3332 = vmatprep.subr.mxu0 0.0
    %3333 = vmatpush1.msra.mxu0 %v3112
    %3334 = vmatprep.subr.mxu0 0.0
    %3335 = vmatpush1.msra.mxu0 %v3113
    %3336 = vmatprep.subr.mxu0 0.0
    %3337 = vmatpush1.msra.mxu0 %v3114
    %3338 = vmatprep.subr.mxu0 0.0
    %3339 = vmatpush1.msra.mxu0 %v3115
    %3340 = vmatprep.subr.mxu0 0.0
    %3341 = vmatpush1.msra.mxu0 %v3116
    %3342 = vmatprep.subr.mxu0 0.0
    %3343 = vmatpush1.msra.mxu0 %v3117
    %3344 = vmatprep.subr.mxu0 0.0
    %3345 = vmatpush1.msra.mxu0 %v3118
    %3346 = vmatprep.subr.mxu0 0.0
    %3347 = vmatpush1.msra.mxu0 %v3119
    %3348 = vmatprep.subr.mxu0 0.0
    %3349 = vmatpush1.msra.mxu0 %v3120
    %3350 = vmatprep.subr.mxu0 0.0
    %3351 = vmatpush1.msra.mxu0 %v3121
    %3352 = vmatprep.subr.mxu0 0.0
    %3353 = vmatpush1.msra.mxu0 %v3122
    %3354 = vmatprep.subr.mxu0 0.0
    %3355 = vmatpush1.msra.mxu0 %v3123
    %3356 = vmatprep.subr.mxu0 0.0
    %3357 = vmatpush1.msra.mxu0 %v3124
    %3358 = vmatprep.subr.mxu0 0.0
    %3359 = vmatpush1.msra.mxu0 %v3125
    %3360 = vmatprep.subr.mxu0 0.0
    %3361 = vmatpush1.msra.mxu0 %v3126
    %3362 = vmatprep.subr.mxu0 0.0
    %3363 = vmatpush1.msra.mxu0 %v3127
    %3364 = vmatprep.subr.mxu0 0.0
    %3365 = vmatpush1.msra.mxu0 %v3128
    %3366 = vmatprep.subr.mxu0 0.0
    %3367 = vmatpush1.msra.mxu0 %v3129
    %3368 = vmatprep.subr.mxu0 0.0
    %3369 = vmatpush1.msra.mxu0 %v3130
    %3370 = vmatprep.subr.mxu0 0.0
    %3371 = vmatpush1.msra.mxu0 %v3131
    %3372 = vmatprep.subr.mxu0 0.0
    %3373 = vmatpush1.msra.mxu0 %v3132
    %3374 = vmatprep.subr.mxu0 0.0
    %3375 = vmatpush1.msra.mxu0 %v3133
    %3376 = vmatprep.subr.mxu0 0.0
    %3377 = vmatpush1.msra.mxu0 %v3134
    %3378 = vmatprep.mubr.f32.mxu0 %v3036
    %3379 = vmatmul.mubr.f32.gmra.mrb[0].mxu0 %v3035
    %v3380 = vpop.f32.mrb[0].mxu0
    %v3381 = vadd.f32 %v3311, %v3380
    %v3382 = vpop.f32.mrb[0].mxu0
    %3383 = vdwg.mxu0
    %3384 = vmatprep.subr.mxu0 0.0
    %3385 = vmatpush1.msra.mxu0 %v3135
    %3386 = vmatprep.subr.mxu0 0.0
    %3387 = vmatpush1.msra.mxu0 %v3136
    %3388 = vmatprep.subr.mxu0 0.0
    %3389 = vmatpush1.msra.mxu0 %v3137
    %3390 = vmatprep.subr.mxu0 0.0
    %3391 = vmatpush1.msra.mxu0 %v3138
    %3392 = vmatprep.subr.mxu0 0.0
    %3393 = vmatpush1.msra.mxu0 %v3139
    %3394 = vmatprep.subr.mxu0 0.0
    %3395 = vmatpush1.msra.mxu0 %v3140
    %3396 = vmatprep.subr.mxu0 0.0
    %3397 = vmatpush1.msra.mxu0 %v3141
    %3398 = vmatprep.subr.mxu0 0.0
    %3399 = vmatpush1.msra.mxu0 %v3142
    %3400 = vmatprep.subr.mxu0 0.0
    %3401 = vmatpush1.msra.mxu0 %v3143
    %3402 = vmatprep.subr.mxu0 0.0
    %3403 = vmatpush1.msra.mxu0 %v3144
    %3404 = vmatprep.subr.mxu0 0.0
    %3405 = vmatpush1.msra.mxu0 %v3145
    %3406 = vmatprep.subr.mxu0 0.0
    %3407 = vmatpush1.msra.mxu0 %v3146
    %3408 = vmatprep.subr.mxu0 0.0
    %3409 = vmatpush1.msra.mxu0 %v3147
    %3410 = vmatprep.subr.mxu0 0.0
    %3411 = vmatpush1.msra.mxu0 %v3148
    %3412 = vmatprep.subr.mxu0 0.0
    %3413 = vmatpush1.msra.mxu0 %v3149
    %3414 = vmatprep.subr.mxu0 0.0
    %3415 = vmatpush1.msra.mxu0 %v3150
    %3416 = vmatprep.subr.mxu0 0.0
    %3417 = vmatpush1.msra.mxu0 %v3151
    %3418 = vmatprep.subr.mxu0 0.0
    %3419 = vmatpush1.msra.mxu0 %v3152
    %3420 = vmatprep.subr.mxu0 0.0
    %3421 = vmatpush1.msra.mxu0 %v3153
    %3422 = vmatprep.subr.mxu0 0.0
    %3423 = vmatpush1.msra.mxu0 %v3154
    %3424 = vmatprep.subr.mxu0 0.0
    %3425 = vmatpush1.msra.mxu0 %v3155
    %3426 = vmatprep.subr.mxu0 0.0
    %3427 = vmatpush1.msra.mxu0 %v3156
    %3428 = vmatprep.subr.mxu0 0.0
    %3429 = vmatpush1.msra.mxu0 %v3157
    %3430 = vmatprep.subr.mxu0 0.0
    %3431 = vmatpush1.msra.mxu0 %v3158
    %3432 = vmatprep.subr.mxu0 0.0
    %3433 = vmatpush1.msra.mxu0 %v3159
    %3434 = vmatprep.subr.mxu0 0.0
    %3435 = vmatpush1.msra.mxu0 %v3160
    %3436 = vmatprep.subr.mxu0 0.0
    %3437 = vmatpush1.msra.mxu0 %v3161
    %3438 = vmatprep.subr.mxu0 0.0
    %3439 = vmatpush1.msra.mxu0 %v3162
    %3440 = vmatprep.subr.mxu0 0.0
    %3441 = vmatpush1.msra.mxu0 %v3163
    %3442 = vmatprep.subr.mxu0 0.0
    %3443 = vmatpush1.msra.mxu0 %v3164
    %3444 = vmatprep.subr.mxu0 0.0
    %3445 = vmatpush1.msra.mxu0 %v3165
    %3446 = vmatprep.subr.mxu0 0.0
    %3447 = vmatpush1.msra.mxu0 %v3166
    %3448 = vmatprep.mubr.f32.mxu0 %v3038
    %3449 = vmatmul.mubr.f32.gmra.mrb[0].mxu0 %v3037
    %v3450 = vpop.f32.mrb[0].mxu0
    %v3451 = vadd.f32 %v3381, %v3450
    %v3452 = vpop.f32.mrb[0].mxu0
    %3453 = vdwg.mxu0
    %vm3454 = vcmask 25600
    %3455 = vst.msk [vmem:[#allocation2] sm:$0x3] %vm3454, %v3451
    // Predicated region
    $region46: #{mychallenge_forward.1} parent=1 // pred_check
      _
    $region47: #{mychallenge_forward.1} parent=1 // pred_check_branch
      %3457 = sbr.rel (0) target = $region49
    $region48: #{mychallenge_forward.1} parent=1 // pred_region
      %s3459 = ssub.s32 32, 32
      %3460 = vsyncadd [#allocation3], %s3459
      %s3462 = sshll.u32 [#allocation2], 4
      %s3463 = int_to_ptr.vmem [resolvable:$true] %s3462
      %3465 = dma.vmem_to_hbm [thread:$0]  %s3463, 32, %s11, [#allocation3]
    $region49: #{mychallenge_forward.1} parent=1 // pred_fallthru
      _
    // Predicated region
    $region50: #{mychallenge_forward.1} parent=1 // pred_check
      _
    $region51: #{mychallenge_forward.1} parent=1 // pred_check_branch
      %3467 = sbr.rel (0) target = $region53
    $region52: #{mychallenge_forward.1} parent=1 // pred_region
      %3468 = dma.done [#allocation3], 32
    $region53: #{mychallenge_forward.1} parent=1 // pred_fallthru
      _
    %3469 = vsyncpa [#allocation3], 1

</llo_original>
